<compile_context>
chip_gen: v6e
topology: v6e:2x2x1
jax: 0.10.0
libtpu: 0.0.40
codegen_flags: <defaults>
</compile_context>

<pallas_src>
import math
import jax
import jax.numpy as jnp
from jax.experimental import pallas as pl
from jax.experimental.pallas import tpu as pltpu

B = 2           # batch
S = 8           # seq len == max_seq_length
H = 32          # hidden_size
NH = 4          # num_attention_heads
HD = H // NH    # attention_head_size
NUM_DP = 4      # 4 dependency relation types (unlabeled graph, no diff pad)
EPS = 1e-12     # layer_norm_eps (BERT default)
INV_SQRT_HD = 1.0 / math.sqrt(HD)
PHB = 32                        # per-head lane block of the fused projection
FUSED = NH * PHB                # 128 fused output lanes (vreg aligned)
_PAD = PHB - (3 * HD + NUM_DP)  # zero-pad lanes per head block


def _layernorm(x, gamma, beta):
    mu = jnp.mean(x, axis=-1, keepdims=True)
    var = jnp.mean((x - mu) ** 2, axis=-1, keepdims=True)
    return (x - mu) * jax.lax.rsqrt(var + EPS) * gamma + beta


def attention_kernel(hid_ref, mask_ref, g_ref, gt_ref, wfull_ref, bfull_ref,
                     gktab_ref, gvw_ref, gvb_ref, embv_ref, out_ref):
    """BertGraphSelfAttention forward, all heads batched.

    hid_ref   : (bb, S, H)            hidden states
    mask_ref  : (bb, 1, S)            additive attention mask (over keys)
    g_ref     : (bb, S, S) int32      graph relation ids, graph[b, q, k]
    gt_ref    : (bb, S, S) int32      transposed ids, graph[b, k, q]
    wfull_ref : (H, 128)              fused weight, per-head 32-lane blocks
                                      [q/sqrt(hd) | k | v | rel_k | pad]
    bfull_ref : (1, 128)              fused bias (same layout)
    gktab_ref : (NH, 1, 1, NUM_DP)    key-gate table  sigmoid(LN(emb_k) gkw+gkb)
    gvw_ref   : (NH, 1, 1, S)         value-gate weight, head-major
    gvb_ref   : (NH, 1, 1, 1)         value-gate bias, head-major
    embv_ref  : (NUM_DP, HD)          LayerNormed value relation table
    out_ref   : (bb, S, H)            context layer
    """
    bb = hid_ref.shape[0]
    nb = NH * bb

    # One fused MXU pass: q (pre-scaled), k, v and the per-relation qk table.
    x2 = hid_ref[...].reshape(bb * S, H)
    qkvr = jnp.dot(x2, wfull_ref[...],
                   preferred_element_type=jnp.float32) + bfull_ref[...]
    qkvr = qkvr.reshape(bb, S, FUSED)

    # Head-major layout (n = h*bb + b): 4 static lane slices + one major concat.
    t = jnp.concatenate([qkvr[:, :, h * PHB:(h + 1) * PHB] for h in range(NH)],
                        axis=0)                              # (nb, S, PHB)
    qh = t[:, :, 0:HD]                                       # already / sqrt(hd)
    kh = t[:, :, HD:2 * HD]
    vh = t[:, :, 2 * HD:3 * HD]
    qk4 = t[:, :, 3 * HD:3 * HD + NUM_DP].reshape(NH, bb, S, NUM_DP)

    # Raw (scaled) scores for all heads: one batched einsum.
    s4 = jnp.einsum('nqd,nkd->nqk', qh, kh,
                    preferred_element_type=jnp.float32).reshape(NH, bb, S, S)

    # Graph-derived terms (relation ids only; no (B,S,S,HD) tensors ever built).
    # TODO(synk): graph ids are assumed to lie in [0, NUM_DP); padding-relation
    # configs (diff_pad_zero / labeled graphs) would need an extra relation row.
    gN = g_ref[...][None]                                    # (1, bb, S, S)
    gtN = gt_ref[...][None]
    gktab = gktab_ref[...]                                   # (NH, 1, 1, NUM_DP)
    masks = [gN == r for r in range(NUM_DP)]                 # reused below

    gate_k = sum(jnp.where(gtN == r, gktab[..., r:r + 1], 0.0)
                 for r in range(NUM_DP))                     # (NH, bb, S, S)
    rel_k = sum(jnp.where(masks[r], qk4[..., r:r + 1], 0.0)
                for r in range(NUM_DP))                      # (NH, bb, S, S)

    s4 = s4 + gate_k * rel_k + mask_ref[...][None]           # mask over keys

    # Softmax over keys (one chain for all heads); dropout p=0 / eval mode,
    # head_mask=None.  EUP reciprocal + one Newton step (keeps <=1e-4 error).
    m = jnp.max(s4, axis=-1, keepdims=True)
    e = jnp.exp(s4 - m)
    den = jnp.sum(e, axis=-1, keepdims=True)
    inv = pl.reciprocal(den, approx=True)
    inv = inv * (2.0 - den * inv)
    p4 = e * inv                                             # (NH, bb, S, S)

    # Context for all heads: one batched einsum.
    ctx4 = jnp.einsum('nqk,nkd->nqd', p4.reshape(nb, S, S), vh,
                      preferred_element_type=jnp.float32).reshape(NH, bb, S, HD)

    # Per-relation aggregation feeding rel_v and the value gate:
    #   pr[r][h,b,q] = sum_k probs[h,b,q,k] * [graph[b,q,k]==r]
    #   av[r][h,b,q] = sum_j gvw[j,h]       * [graph[b,q,j]==r]
    gvw4 = gvw_ref[...]                                      # (NH, 1, 1, S)
    pr = [jnp.sum(jnp.where(masks[r], p4, 0.0), axis=-1, keepdims=True)
          for r in range(NUM_DP)]
    av = [jnp.sum(jnp.where(masks[r], gvw4, 0.0), axis=-1, keepdims=True)
          for r in range(NUM_DP)]
    tab_in = jnp.concatenate(
        [jnp.concatenate(pr, axis=-1), jnp.concatenate(av, axis=-1)],
        axis=0)                                              # (2*NH, bb, S, NUM_DP)
    # Single tiny MXU matmul against the LN'ed value relation table.
    tab_out = jnp.dot(tab_in.reshape(2 * nb * S, NUM_DP), embv_ref[...],
                      preferred_element_type=jnp.float32
                      ).reshape(2 * NH, bb, S, HD)
    rel_v = tab_out[0:NH]                                    # (NH, bb, S, HD)
    gate_v = jax.nn.sigmoid(tab_out[NH:2 * NH] + gvb_ref[...])

    # TODO(synk): batchnorm_key / batchnorm_value (nn.BatchNorm2d) branches are
    # disabled in this config and not implemented.
    ctx4 = ctx4 + gate_v * rel_v

    # Head merge = lane concat -> single full-block (bb, S, H) store.
    out_ref[...] = jnp.concatenate([ctx4[h] for h in range(NH)], axis=-1)


def bert_graph_self_attention(hidden, mask, graph, emb_k, emb_v,
                              wq, bq, wk, bk, wv, bv,
                              lnkg, lnkb, lnvg, lnvb,
                              gkw, gkb, gvw, gvb):
    bsz, seq, hid = hidden.shape
    assert (seq, hid) == (S, H)

    # ---- parameter-only precomputation (hoisted out of the kernel) ----------
    # LayerNorm commutes with the embedding gather -> normalize the tiny
    # (NUM_DP, HD) relation tables once.
    emb_k_ln = _layernorm(emb_k, lnkg, lnkb)                 # (NUM_DP, HD)
    emb_v_ln = _layernorm(emb_v, lnvg, lnvb)                 # (NUM_DP, HD)
    # Key gate depends only on the relation id -> (NUM_DP, NH) table.
    gate_k_tab = jax.nn.sigmoid(emb_k_ln @ gkw + gkb)        # (NUM_DP, NH)

    # Fused projection: per-head 32-lane block [q/sqrt(hd) | k | v | rel | pad],
    # with the relative-key projection wq_h @ emb_k_ln^T folded in as columns.
    zpad_w = jnp.zeros((H, _PAD), jnp.float32)
    zpad_b = jnp.zeros((1, _PAD), jnp.float32)
    wblk, bblk = [], []
    for h in range(NH):
        sl = slice(h * HD, (h + 1) * HD)
        wblk += [wq[:, sl] * INV_SQRT_HD, wk[:, sl], wv[:, sl],
                 wq[:, sl] @ emb_k_ln.T, zpad_w]
        bblk += [bq[:, sl] * INV_SQRT_HD, bk[:, sl], bv[:, sl],
                 bq[:, sl] @ emb_k_ln.T, zpad_b]
    wfull = jnp.concatenate(wblk, axis=1)                    # (H, 128)
    bfull = jnp.concatenate(bblk, axis=1)                    # (1, 128)

    # Broadcast-ready head-major parameter blocks (replace the old SMEM table).
    gktab4 = gate_k_tab.T.reshape(NH, 1, 1, NUM_DP)
    gvw4 = gvw.T.reshape(NH, 1, 1, S)
    gvb4 = gvb.reshape(NH, 1, 1, 1)
    graph_t = graph.transpose(0, 2, 1)

    # Single grid step on every chip: per-step compute << the ~0.35us grid
    # overhead, so splitting B=2 across v7x's two TensorCores would only hurt.
    bb = bsz
    grid = (bsz // bb,)

    in_specs = [
        pl.BlockSpec((bb, S, H), lambda i: (i, 0, 0)),               # hidden
        pl.BlockSpec((bb, 1, S), lambda i: (i, 0, 0)),               # mask
        pl.BlockSpec((bb, S, S), lambda i: (i, 0, 0)),               # graph ids
        pl.BlockSpec((bb, S, S), lambda i: (i, 0, 0)),               # graph^T ids
        pl.BlockSpec((H, FUSED), lambda i: (0, 0)),                  # fused W
        pl.BlockSpec((1, FUSED), lambda i: (0, 0)),                  # fused b
        pl.BlockSpec((NH, 1, 1, NUM_DP), lambda i: (0, 0, 0, 0)),    # key-gate tab
        pl.BlockSpec((NH, 1, 1, S), lambda i: (0, 0, 0, 0)),         # value-gate W
        pl.BlockSpec((NH, 1, 1, 1), lambda i: (0, 0, 0, 0)),         # value-gate b
        pl.BlockSpec((NUM_DP, HD), lambda i: (0, 0)),                # LN value tab
    ]
    out_specs = pl.BlockSpec((bb, S, H), lambda i: (i, 0, 0))

    flops = (2 * bsz * S * H * FUSED            # fused projection
             + 4 * bsz * NH * S * S * HD        # scores + context einsums
             + 4 * bsz * NH * S * NUM_DP * HD   # rel_v / gate_v table matmul
             + 64 * bsz * NH * S * S)           # elementwise graph terms
    transcendentals = 2 * bsz * NH * S * S + bsz * NH * S * HD
    bytes_accessed = 4 * (hidden.size + mask.size + wfull.size + bfull.size
                          + gktab4.size + gvw4.size + gvb4.size + emb_v_ln.size
                          + bsz * S * H) + 8 * graph.size

    return pl.pallas_call(
        attention_kernel,
        out_shape=jax.ShapeDtypeStruct((bsz, S, H), jnp.float32),
        grid=grid,
        in_specs=in_specs,
        out_specs=out_specs,
        compiler_params=pltpu.CompilerParams(
            dimension_semantics=("arbitrary",)),
        cost_estimate=pl.CostEstimate(flops=flops,
                                      transcendentals=transcendentals,
                                      bytes_accessed=bytes_accessed),
    )(hidden, mask, graph, graph_t, wfull, bfull,
      gktab4, gvw4, gvb4, emb_v_ln)


def reference(hidden, mask, graph, emb_k, emb_v,
              wq, bq, wk, bk, wv, bv,
              lnkg, lnkb, lnvg, lnvb,
              gkw, gkb, gvw, gvb):
    """Pure-JAX mirror of the PyTorch forward (for validation)."""
    bsz = hidden.shape[0]

    def t4s(x):
        return x.reshape(bsz, S, NH, HD).transpose(0, 2, 1, 3)

    q = t4s(hidden @ wq + bq)
    k = t4s(hidden @ wk + bk)
    v = t4s(hidden @ wv + bv)
    dpk = _layernorm(jnp.take(emb_k, graph, axis=0), lnkg, lnkb)   # (B,S,S,HD)
    dpv = _layernorm(jnp.take(emb_v, graph, axis=0), lnvg, lnvb)
    scores = jnp.einsum('bhqd,bhkd->bhqk', q, k) * INV_SQRT_HD
    rel_k = jnp.einsum('bhqd,bqkd->bhqk', q, dpk)
    G = jax.nn.sigmoid(jnp.einsum('bijd,dh->bijh', dpk, gkw) + gkb[0])
    gate_k = G.transpose(0, 3, 2, 1)                  # torch .transpose(1, 3)
    scores = scores + gate_k * rel_k + mask[:, None, :, :]
    probs = jax.nn.softmax(scores, axis=-1)
    ctx = jnp.einsum('bhqk,bhkd->bhqd', probs, v)
    rel_v = jnp.einsum('bhqk,bqkd->bhqd', probs, dpv)
    gvl = jnp.einsum('bqjd,jh->bqdh', dpv, gvw) + gvb[0]
    gate_v = jax.nn.sigmoid(gvl).transpose(0, 3, 1, 2)
    ctx = ctx + gate_v * rel_v
    return ctx.transpose(0, 2, 1, 3).reshape(bsz, S, H)


if __name__ == "__main__":
    key = jax.random.PRNGKey(0)
    ks = jax.random.split(key, 20)

    hidden = jax.random.normal(ks[0], (B, S, H), jnp.float32)
    graph = jax.random.randint(ks[1], (B, S, S), 0, NUM_DP, jnp.int32)
    mask = jnp.zeros((B, 1, S), jnp.float32).at[1, 0, S - 1].set(-1e9)

    # Parameters (deterministic synthetic init; Linear weights stored [in, out]).
    wq = 0.05 * jax.random.normal(ks[2], (H, H), jnp.float32)
    bq = 0.05 * jax.random.normal(ks[3], (1, H), jnp.float32)
    wk = 0.05 * jax.random.normal(ks[4], (H, H), jnp.float32)
    bk = 0.05 * jax.random.normal(ks[5], (1, H), jnp.float32)
    wv = 0.05 * jax.random.normal(ks[6], (H, H), jnp.float32)
    bv = 0.05 * jax.random.normal(ks[7], (1, H), jnp.float32)
    lnkg = 1.0 + 0.1 * jax.random.normal(ks[8], (1, HD), jnp.float32)
    lnkb = 0.1 * jax.random.normal(ks[9], (1, HD), jnp.float32)
    lnvg = 1.0 + 0.1 * jax.random.normal(ks[10], (1, HD), jnp.float32)
    lnvb = 0.1 * jax.random.normal(ks[11], (1, HD), jnp.float32)
    gkw = 0.2 * jax.random.normal(ks[12], (HD, NH), jnp.float32)
    gkb = 0.2 * jax.random.normal(ks[13], (1, NH), jnp.float32)
    gvw = 0.2 * jax.random.normal(ks[14], (S, NH), jnp.float32)
    gvb = 0.2 * jax.random.normal(ks[15], (1, NH), jnp.float32)
    emb_k = 0.2 * jax.random.normal(ks[16], (NUM_DP, HD), jnp.float32)
    emb_v = 0.2 * jax.random.normal(ks[17], (NUM_DP, HD), jnp.float32)

    params = (wq, bq, wk, bk, wv, bv, lnkg, lnkb, lnvg, lnvb,
              gkw, gkb, gvw, gvb)

    out = bert_graph_self_attention(hidden, mask, graph, emb_k, emb_v, *params)
    out = jax.block_until_ready(out)

    ref = reference(hidden, mask, graph, emb_k, emb_v, *params)
    assert out.shape == (B, S, H)
    assert jnp.allclose(out, ref, rtol=1e-4, atol=1e-4), "mismatch vs reference"

    print("KERNEL_OK")
</pallas_src>

<mosaic_0001>
module attributes {stable_mosaic.version = 11 : i64} {
  func.func @attention_kernel(%arg0: i32, %arg1: memref<2x8x32xf32, #tpu.memory_space<vmem>>, %arg2: memref<2x1x8xf32, #tpu.memory_space<vmem>>, %arg3: memref<2x8x8xi32, #tpu.memory_space<vmem>>, %arg4: memref<2x8x8xi32, #tpu.memory_space<vmem>>, %arg5: memref<32x128xf32, #tpu.memory_space<vmem>>, %arg6: memref<1x128xf32, #tpu.memory_space<vmem>>, %arg7: memref<4x1x1x4xf32, #tpu.memory_space<vmem>>, %arg8: memref<4x1x1x8xf32, #tpu.memory_space<vmem>>, %arg9: memref<4x1x1x1xf32, #tpu.memory_space<vmem>>, %arg10: memref<4x8xf32, #tpu.memory_space<vmem>>, %arg11: memref<2x8x32xf32, #tpu.memory_space<vmem>>) attributes {dimension_semantics = [#tpu.dimension_semantics<arbitrary>], iteration_bounds = array<i64: 1>, scalar_prefetch = 0 : i64, scratch_operands = 0 : i64, tpu.core_type = #tpu.core_type<tc>, window_params = [{transform_indices = @transform_0, window_bounds = array<i64: 2, 8, 32>}, {transform_indices = @transform_1, window_bounds = array<i64: 2, 1, 8>}, {transform_indices = @transform_2, window_bounds = array<i64: 2, 8, 8>}, {transform_indices = @transform_3, window_bounds = array<i64: 2, 8, 8>}, {pipeline_mode = #tpu.pipeline_mode<synchronous>, transform_indices = @transform_4, window_bounds = array<i64: 32, 128>}, {pipeline_mode = #tpu.pipeline_mode<synchronous>, transform_indices = @transform_5, window_bounds = array<i64: 1, 128>}, {pipeline_mode = #tpu.pipeline_mode<synchronous>, transform_indices = @transform_6, window_bounds = array<i64: 4, 1, 1, 4>}, {pipeline_mode = #tpu.pipeline_mode<synchronous>, transform_indices = @transform_7, window_bounds = array<i64: 4, 1, 1, 8>}, {pipeline_mode = #tpu.pipeline_mode<synchronous>, transform_indices = @transform_8, window_bounds = array<i64: 4, 1, 1, 1>}, {pipeline_mode = #tpu.pipeline_mode<synchronous>, transform_indices = @transform_9, window_bounds = array<i64: 4, 8>}, {transform_indices = @transform_10, window_bounds = array<i64: 2, 8, 32>}]} {
    %c0 = arith.constant 0 : index
    %c0_0 = arith.constant 0 : index
    %c0_1 = arith.constant 0 : index
    %0 = vector.load %arg1[%c0, %c0_0, %c0_1] : memref<2x8x32xf32, #tpu.memory_space<vmem>>, vector<2x8x32xf32>
    %1 = vector.shape_cast %0 : vector<2x8x32xf32> to vector<16x32xf32>
    %c0_2 = arith.constant 0 : index
    %c0_3 = arith.constant 0 : index
    %2 = vector.load %arg5[%c0_2, %c0_3] : memref<32x128xf32, #tpu.memory_space<vmem>>, vector<32x128xf32>
    %cst = arith.constant dense<0.000000e+00> : vector<16x128xf32>
    %3 = tpu.matmul %1, %2, %cst {dimension_numbers = #tpu.dot_dimension_numbers<[1], [0], [0], [1], [0, 0, 1, 1], [], []>} : vector<16x32xf32>, vector<32x128xf32>, vector<16x128xf32> -> vector<16x128xf32>
    %c0_4 = arith.constant 0 : index
    %c0_5 = arith.constant 0 : index
    %4 = vector.load %arg6[%c0_4, %c0_5] : memref<1x128xf32, #tpu.memory_space<vmem>>, vector<1x128xf32>
    %5 = vector.broadcast %4 : vector<1x128xf32> to vector<16x128xf32>
    %6 = arith.addf %3, %5 : vector<16x128xf32>
    %7 = vector.shape_cast %6 : vector<16x128xf32> to vector<2x8x128xf32>
    %8 = vector.extract_strided_slice %7 {offsets = [0, 0, 0], sizes = [2, 8, 32], strides = [1, 1, 1]} : vector<2x8x128xf32> to vector<2x8x32xf32>
    %9 = vector.extract_strided_slice %7 {offsets = [0, 0, 32], sizes = [2, 8, 32], strides = [1, 1, 1]} : vector<2x8x128xf32> to vector<2x8x32xf32>
    %10 = vector.extract_strided_slice %7 {offsets = [0, 0, 64], sizes = [2, 8, 32], strides = [1, 1, 1]} : vector<2x8x128xf32> to vector<2x8x32xf32>
    %11 = vector.extract_strided_slice %7 {offsets = [0, 0, 96], sizes = [2, 8, 32], strides = [1, 1, 1]} : vector<2x8x128xf32> to vector<2x8x32xf32>
    %12 = tpu.concatenate %8, %9, %10, %11 in 0 : vector<2x8x32xf32>, vector<2x8x32xf32>, vector<2x8x32xf32>, vector<2x8x32xf32> -> vector<8x8x32xf32>
    %13 = vector.extract_strided_slice %12 {offsets = [0, 0, 0], sizes = [8, 8, 8], strides = [1, 1, 1]} : vector<8x8x32xf32> to vector<8x8x8xf32>
    %14 = vector.extract_strided_slice %12 {offsets = [0, 0, 8], sizes = [8, 8, 8], strides = [1, 1, 1]} : vector<8x8x32xf32> to vector<8x8x8xf32>
    %15 = vector.extract_strided_slice %12 {offsets = [0, 0, 16], sizes = [8, 8, 8], strides = [1, 1, 1]} : vector<8x8x32xf32> to vector<8x8x8xf32>
    %16 = vector.extract_strided_slice %12 {offsets = [0, 0, 24], sizes = [8, 8, 4], strides = [1, 1, 1]} : vector<8x8x32xf32> to vector<8x8x4xf32>
    %17 = vector.shape_cast %16 : vector<8x8x4xf32> to vector<4x2x8x4xf32>
    "tpu.trace_start"() <{level = 10 : i32, message = "nqd,nkd->nqk"}> : () -> ()
    %cst_6 = arith.constant dense<0.000000e+00> : vector<8x8x8xf32>
    %18 = tpu.matmul %13, %14, %cst_6 {dimension_numbers = #tpu.dot_dimension_numbers<[2], [2], [1], [1], [0, 0, 0, 1, 1, 1], [0], [0]>} : vector<8x8x8xf32>, vector<8x8x8xf32>, vector<8x8x8xf32> -> vector<8x8x8xf32>
    "tpu.trace_stop"() : () -> ()
    %19 = vector.shape_cast %18 : vector<8x8x8xf32> to vector<4x2x8x8xf32>
    %c0_7 = arith.constant 0 : index
    %c0_8 = arith.constant 0 : index
    %c0_9 = arith.constant 0 : index
    %20 = vector.load %arg3[%c0_7, %c0_8, %c0_9] : memref<2x8x8xi32, #tpu.memory_space<vmem>>, vector<2x8x8xi32>
    %21 = vector.shape_cast %20 : vector<2x8x8xi32> to vector<1x2x8x8xi32>
    %c0_10 = arith.constant 0 : index
    %c0_11 = arith.constant 0 : index
    %c0_12 = arith.constant 0 : index
    %22 = vector.load %arg4[%c0_10, %c0_11, %c0_12] : memref<2x8x8xi32, #tpu.memory_space<vmem>>, vector<2x8x8xi32>
    %23 = vector.shape_cast %22 : vector<2x8x8xi32> to vector<1x2x8x8xi32>
    %c0_13 = arith.constant 0 : index
    %c0_14 = arith.constant 0 : index
    %c0_15 = arith.constant 0 : index
    %c0_16 = arith.constant 0 : index
    %24 = vector.load %arg7[%c0_13, %c0_14, %c0_15, %c0_16] : memref<4x1x1x4xf32, #tpu.memory_space<vmem>>, vector<4x1x1x4xf32>
    %c0_i32 = arith.constant 0 : i32
    %25 = vector.broadcast %c0_i32 : i32 to vector<1x2x8x8xi32>
    %26 = arith.cmpi eq, %21, %25 : vector<1x2x8x8xi32>
    %c1_i32 = arith.constant 1 : i32
    %27 = vector.broadcast %c1_i32 : i32 to vector<1x2x8x8xi32>
    %28 = arith.cmpi eq, %21, %27 : vector<1x2x8x8xi32>
    %c2_i32 = arith.constant 2 : i32
    %29 = vector.broadcast %c2_i32 : i32 to vector<1x2x8x8xi32>
    %30 = arith.cmpi eq, %21, %29 : vector<1x2x8x8xi32>
    %c3_i32 = arith.constant 3 : i32
    %31 = vector.broadcast %c3_i32 : i32 to vector<1x2x8x8xi32>
    %32 = arith.cmpi eq, %21, %31 : vector<1x2x8x8xi32>
    %c0_i32_17 = arith.constant 0 : i32
    %33 = vector.broadcast %c0_i32_17 : i32 to vector<1x2x8x8xi32>
    %34 = arith.cmpi eq, %23, %33 : vector<1x2x8x8xi32>
    %35 = vector.extract_strided_slice %24 {offsets = [0, 0, 0, 0], sizes = [4, 1, 1, 1], strides = [1, 1, 1, 1]} : vector<4x1x1x4xf32> to vector<4x1x1x1xf32>
    %cst_18 = arith.constant 0.000000e+00 : f32
    %36 = vector.shape_cast %34 : vector<1x2x8x8xi1> to vector<1x2x8x8xi1>
    %37 = vector.broadcast %36 : vector<1x2x8x8xi1> to vector<4x2x8x8xi1>
    %38 = vector.shape_cast %35 : vector<4x1x1x1xf32> to vector<4x1x1x1xf32>
    %39 = vector.broadcast %38 : vector<4x1x1x1xf32> to vector<4x2x8x8xf32>
    %40 = vector.broadcast %cst_18 : f32 to vector<4x2x8x8xf32>
    %41 = arith.select %37, %39, %40 : vector<4x2x8x8xi1>, vector<4x2x8x8xf32>
    %cst_19 = arith.constant 0.000000e+00 : f32
    %42 = vector.broadcast %cst_19 : f32 to vector<4x2x8x8xf32>
    %43 = arith.addf %42, %41 : vector<4x2x8x8xf32>
    %c1_i32_20 = arith.constant 1 : i32
    %44 = vector.broadcast %c1_i32_20 : i32 to vector<1x2x8x8xi32>
    %45 = arith.cmpi eq, %23, %44 : vector<1x2x8x8xi32>
    %46 = vector.extract_strided_slice %24 {offsets = [0, 0, 0, 1], sizes = [4, 1, 1, 1], strides = [1, 1, 1, 1]} : vector<4x1x1x4xf32> to vector<4x1x1x1xf32>
    %cst_21 = arith.constant 0.000000e+00 : f32
    %47 = vector.shape_cast %45 : vector<1x2x8x8xi1> to vector<1x2x8x8xi1>
    %48 = vector.broadcast %47 : vector<1x2x8x8xi1> to vector<4x2x8x8xi1>
    %49 = vector.shape_cast %46 : vector<4x1x1x1xf32> to vector<4x1x1x1xf32>
    %50 = vector.broadcast %49 : vector<4x1x1x1xf32> to vector<4x2x8x8xf32>
    %51 = vector.broadcast %cst_21 : f32 to vector<4x2x8x8xf32>
    %52 = arith.select %48, %50, %51 : vector<4x2x8x8xi1>, vector<4x2x8x8xf32>
    %53 = arith.addf %43, %52 : vector<4x2x8x8xf32>
    %c2_i32_22 = arith.constant 2 : i32
    %54 = vector.broadcast %c2_i32_22 : i32 to vector<1x2x8x8xi32>
    %55 = arith.cmpi eq, %23, %54 : vector<1x2x8x8xi32>
    %56 = vector.extract_strided_slice %24 {offsets = [0, 0, 0, 2], sizes = [4, 1, 1, 1], strides = [1, 1, 1, 1]} : vector<4x1x1x4xf32> to vector<4x1x1x1xf32>
    %cst_23 = arith.constant 0.000000e+00 : f32
    %57 = vector.shape_cast %55 : vector<1x2x8x8xi1> to vector<1x2x8x8xi1>
    %58 = vector.broadcast %57 : vector<1x2x8x8xi1> to vector<4x2x8x8xi1>
    %59 = vector.shape_cast %56 : vector<4x1x1x1xf32> to vector<4x1x1x1xf32>
    %60 = vector.broadcast %59 : vector<4x1x1x1xf32> to vector<4x2x8x8xf32>
    %61 = vector.broadcast %cst_23 : f32 to vector<4x2x8x8xf32>
    %62 = arith.select %58, %60, %61 : vector<4x2x8x8xi1>, vector<4x2x8x8xf32>
    %63 = arith.addf %53, %62 : vector<4x2x8x8xf32>
    %c3_i32_24 = arith.constant 3 : i32
    %64 = vector.broadcast %c3_i32_24 : i32 to vector<1x2x8x8xi32>
    %65 = arith.cmpi eq, %23, %64 : vector<1x2x8x8xi32>
    %66 = vector.extract_strided_slice %24 {offsets = [0, 0, 0, 3], sizes = [4, 1, 1, 1], strides = [1, 1, 1, 1]} : vector<4x1x1x4xf32> to vector<4x1x1x1xf32>
    %cst_25 = arith.constant 0.000000e+00 : f32
    %67 = vector.shape_cast %65 : vector<1x2x8x8xi1> to vector<1x2x8x8xi1>
    %68 = vector.broadcast %67 : vector<1x2x8x8xi1> to vector<4x2x8x8xi1>
    %69 = vector.shape_cast %66 : vector<4x1x1x1xf32> to vector<4x1x1x1xf32>
    %70 = vector.broadcast %69 : vector<4x1x1x1xf32> to vector<4x2x8x8xf32>
    %71 = vector.broadcast %cst_25 : f32 to vector<4x2x8x8xf32>
    %72 = arith.select %68, %70, %71 : vector<4x2x8x8xi1>, vector<4x2x8x8xf32>
    %73 = arith.addf %63, %72 : vector<4x2x8x8xf32>
    %74 = vector.extract_strided_slice %17 {offsets = [0, 0, 0, 0], sizes = [4, 2, 8, 1], strides = [1, 1, 1, 1]} : vector<4x2x8x4xf32> to vector<4x2x8x1xf32>
    %cst_26 = arith.constant 0.000000e+00 : f32
    %75 = vector.shape_cast %26 : vector<1x2x8x8xi1> to vector<1x2x8x8xi1>
    %76 = vector.broadcast %75 : vector<1x2x8x8xi1> to vector<4x2x8x8xi1>
    %77 = vector.shape_cast %74 : vector<4x2x8x1xf32> to vector<4x2x8x1xf32>
    %78 = vector.broadcast %77 : vector<4x2x8x1xf32> to vector<4x2x8x8xf32>
    %79 = vector.broadcast %cst_26 : f32 to vector<4x2x8x8xf32>
    %80 = arith.select %76, %78, %79 : vector<4x2x8x8xi1>, vector<4x2x8x8xf32>
    %cst_27 = arith.constant 0.000000e+00 : f32
    %81 = vector.broadcast %cst_27 : f32 to vector<4x2x8x8xf32>
    %82 = arith.addf %81, %80 : vector<4x2x8x8xf32>
    %83 = vector.extract_strided_slice %17 {offsets = [0, 0, 0, 1], sizes = [4, 2, 8, 1], strides = [1, 1, 1, 1]} : vector<4x2x8x4xf32> to vector<4x2x8x1xf32>
    %cst_28 = arith.constant 0.000000e+00 : f32
    %84 = vector.shape_cast %28 : vector<1x2x8x8xi1> to vector<1x2x8x8xi1>
    %85 = vector.broadcast %84 : vector<1x2x8x8xi1> to vector<4x2x8x8xi1>
    %86 = vector.shape_cast %83 : vector<4x2x8x1xf32> to vector<4x2x8x1xf32>
    %87 = vector.broadcast %86 : vector<4x2x8x1xf32> to vector<4x2x8x8xf32>
    %88 = vector.broadcast %cst_28 : f32 to vector<4x2x8x8xf32>
    %89 = arith.select %85, %87, %88 : vector<4x2x8x8xi1>, vector<4x2x8x8xf32>
    %90 = arith.addf %82, %89 : vector<4x2x8x8xf32>
    %91 = vector.extract_strided_slice %17 {offsets = [0, 0, 0, 2], sizes = [4, 2, 8, 1], strides = [1, 1, 1, 1]} : vector<4x2x8x4xf32> to vector<4x2x8x1xf32>
    %cst_29 = arith.constant 0.000000e+00 : f32
    %92 = vector.shape_cast %30 : vector<1x2x8x8xi1> to vector<1x2x8x8xi1>
    %93 = vector.broadcast %92 : vector<1x2x8x8xi1> to vector<4x2x8x8xi1>
    %94 = vector.shape_cast %91 : vector<4x2x8x1xf32> to vector<4x2x8x1xf32>
    %95 = vector.broadcast %94 : vector<4x2x8x1xf32> to vector<4x2x8x8xf32>
    %96 = vector.broadcast %cst_29 : f32 to vector<4x2x8x8xf32>
    %97 = arith.select %93, %95, %96 : vector<4x2x8x8xi1>, vector<4x2x8x8xf32>
    %98 = arith.addf %90, %97 : vector<4x2x8x8xf32>
    %99 = vector.extract_strided_slice %17 {offsets = [0, 0, 0, 3], sizes = [4, 2, 8, 1], strides = [1, 1, 1, 1]} : vector<4x2x8x4xf32> to vector<4x2x8x1xf32>
    %cst_30 = arith.constant 0.000000e+00 : f32
    %100 = vector.shape_cast %32 : vector<1x2x8x8xi1> to vector<1x2x8x8xi1>
    %101 = vector.broadcast %100 : vector<1x2x8x8xi1> to vector<4x2x8x8xi1>
    %102 = vector.shape_cast %99 : vector<4x2x8x1xf32> to vector<4x2x8x1xf32>
    %103 = vector.broadcast %102 : vector<4x2x8x1xf32> to vector<4x2x8x8xf32>
    %104 = vector.broadcast %cst_30 : f32 to vector<4x2x8x8xf32>
    %105 = arith.select %101, %103, %104 : vector<4x2x8x8xi1>, vector<4x2x8x8xf32>
    %106 = arith.addf %98, %105 : vector<4x2x8x8xf32>
    %107 = arith.mulf %73, %106 : vector<4x2x8x8xf32>
    %108 = arith.addf %19, %107 : vector<4x2x8x8xf32>
    %c0_31 = arith.constant 0 : index
    %c0_32 = arith.constant 0 : index
    %c0_33 = arith.constant 0 : index
    %109 = vector.load %arg2[%c0_31, %c0_32, %c0_33] : memref<2x1x8xf32, #tpu.memory_space<vmem>>, vector<2x1x8xf32>
    %110 = vector.shape_cast %109 : vector<2x1x8xf32> to vector<1x2x1x8xf32>
    %111 = vector.broadcast %110 : vector<1x2x1x8xf32> to vector<4x2x8x8xf32>
    %112 = arith.addf %108, %111 : vector<4x2x8x8xf32>
    %cst_34 = arith.constant dense<0xFF800000> : vector<4x2x8xf32>
    %113 = vector.multi_reduction <maximumf>, %112, %cst_34 [3] : vector<4x2x8x8xf32> to vector<4x2x8xf32>
    %114 = vector.shape_cast %113 : vector<4x2x8xf32> to vector<4x2x8x1xf32>
    %115 = vector.broadcast %114 : vector<4x2x8x1xf32> to vector<4x2x8x8xf32>
    %116 = arith.subf %112, %115 : vector<4x2x8x8xf32>
    %117 = math.exp %116 : vector<4x2x8x8xf32>
    %cst_35 = arith.constant dense<0.000000e+00> : vector<4x2x8xf32>
    %118 = vector.multi_reduction <add>, %117, %cst_35 [3] : vector<4x2x8x8xf32> to vector<4x2x8xf32>
    %119 = vector.shape_cast %118 : vector<4x2x8xf32> to vector<4x2x8x1xf32>
    %120 = tpu.reciprocal %119 {approx = true} : vector<4x2x8x1xf32> -> vector<4x2x8x1xf32>
    %121 = arith.mulf %119, %120 : vector<4x2x8x1xf32>
    %cst_36 = arith.constant 2.000000e+00 : f32
    %122 = vector.broadcast %cst_36 : f32 to vector<4x2x8x1xf32>
    %123 = arith.subf %122, %121 : vector<4x2x8x1xf32>
    %124 = arith.mulf %120, %123 : vector<4x2x8x1xf32>
    %125 = vector.broadcast %124 : vector<4x2x8x1xf32> to vector<4x2x8x8xf32>
    %126 = arith.mulf %117, %125 : vector<4x2x8x8xf32>
    %127 = vector.shape_cast %126 : vector<4x2x8x8xf32> to vector<8x8x8xf32>
    "tpu.trace_start"() <{level = 10 : i32, message = "nqk,nkd->nqd"}> : () -> ()
    %cst_37 = arith.constant dense<0.000000e+00> : vector<8x8x8xf32>
    %128 = tpu.matmul %127, %15, %cst_37 {dimension_numbers = #tpu.dot_dimension_numbers<[2], [1], [1], [2], [0, 0, 0, 1, 1, 2], [0], [0]>} : vector<8x8x8xf32>, vector<8x8x8xf32>, vector<8x8x8xf32> -> vector<8x8x8xf32>
    "tpu.trace_stop"() : () -> ()
    %129 = vector.shape_cast %128 : vector<8x8x8xf32> to vector<4x2x8x8xf32>
    %c0_38 = arith.constant 0 : index
    %c0_39 = arith.constant 0 : index
    %c0_40 = arith.constant 0 : index
    %c0_41 = arith.constant 0 : index
    %130 = vector.load %arg8[%c0_38, %c0_39, %c0_40, %c0_41] : memref<4x1x1x8xf32, #tpu.memory_space<vmem>>, vector<4x1x1x8xf32>
    %cst_42 = arith.constant 0.000000e+00 : f32
    %131 = vector.shape_cast %26 : vector<1x2x8x8xi1> to vector<1x2x8x8xi1>
    %132 = vector.broadcast %131 : vector<1x2x8x8xi1> to vector<4x2x8x8xi1>
    %133 = vector.broadcast %cst_42 : f32 to vector<4x2x8x8xf32>
    %134 = arith.select %132, %126, %133 : vector<4x2x8x8xi1>, vector<4x2x8x8xf32>
    %cst_43 = arith.constant dense<0.000000e+00> : vector<4x2x8xf32>
    %135 = vector.multi_reduction <add>, %134, %cst_43 [3] : vector<4x2x8x8xf32> to vector<4x2x8xf32>
    %136 = vector.shape_cast %135 : vector<4x2x8xf32> to vector<4x2x8x1xf32>
    %cst_44 = arith.constant 0.000000e+00 : f32
    %137 = vector.shape_cast %28 : vector<1x2x8x8xi1> to vector<1x2x8x8xi1>
    %138 = vector.broadcast %137 : vector<1x2x8x8xi1> to vector<4x2x8x8xi1>
    %139 = vector.broadcast %cst_44 : f32 to vector<4x2x8x8xf32>
    %140 = arith.select %138, %126, %139 : vector<4x2x8x8xi1>, vector<4x2x8x8xf32>
    %cst_45 = arith.constant dense<0.000000e+00> : vector<4x2x8xf32>
    %141 = vector.multi_reduction <add>, %140, %cst_45 [3] : vector<4x2x8x8xf32> to vector<4x2x8xf32>
    %142 = vector.shape_cast %141 : vector<4x2x8xf32> to vector<4x2x8x1xf32>
    %cst_46 = arith.constant 0.000000e+00 : f32
    %143 = vector.shape_cast %30 : vector<1x2x8x8xi1> to vector<1x2x8x8xi1>
    %144 = vector.broadcast %143 : vector<1x2x8x8xi1> to vector<4x2x8x8xi1>
    %145 = vector.broadcast %cst_46 : f32 to vector<4x2x8x8xf32>
    %146 = arith.select %144, %126, %145 : vector<4x2x8x8xi1>, vector<4x2x8x8xf32>
    %cst_47 = arith.constant dense<0.000000e+00> : vector<4x2x8xf32>
    %147 = vector.multi_reduction <add>, %146, %cst_47 [3] : vector<4x2x8x8xf32> to vector<4x2x8xf32>
    %148 = vector.shape_cast %147 : vector<4x2x8xf32> to vector<4x2x8x1xf32>
    %cst_48 = arith.constant 0.000000e+00 : f32
    %149 = vector.shape_cast %32 : vector<1x2x8x8xi1> to vector<1x2x8x8xi1>
    %150 = vector.broadcast %149 : vector<1x2x8x8xi1> to vector<4x2x8x8xi1>
    %151 = vector.broadcast %cst_48 : f32 to vector<4x2x8x8xf32>
    %152 = arith.select %150, %126, %151 : vector<4x2x8x8xi1>, vector<4x2x8x8xf32>
    %cst_49 = arith.constant dense<0.000000e+00> : vector<4x2x8xf32>
    %153 = vector.multi_reduction <add>, %152, %cst_49 [3] : vector<4x2x8x8xf32> to vector<4x2x8xf32>
    %154 = vector.shape_cast %153 : vector<4x2x8xf32> to vector<4x2x8x1xf32>
    %cst_50 = arith.constant 0.000000e+00 : f32
    %155 = vector.shape_cast %26 : vector<1x2x8x8xi1> to vector<1x2x8x8xi1>
    %156 = vector.broadcast %155 : vector<1x2x8x8xi1> to vector<4x2x8x8xi1>
    %157 = vector.shape_cast %130 : vector<4x1x1x8xf32> to vector<4x1x1x8xf32>
    %158 = vector.broadcast %157 : vector<4x1x1x8xf32> to vector<4x2x8x8xf32>
    %159 = vector.broadcast %cst_50 : f32 to vector<4x2x8x8xf32>
    %160 = arith.select %156, %158, %159 : vector<4x2x8x8xi1>, vector<4x2x8x8xf32>
    %cst_51 = arith.constant dense<0.000000e+00> : vector<4x2x8xf32>
    %161 = vector.multi_reduction <add>, %160, %cst_51 [3] : vector<4x2x8x8xf32> to vector<4x2x8xf32>
    %162 = vector.shape_cast %161 : vector<4x2x8xf32> to vector<4x2x8x1xf32>
    %cst_52 = arith.constant 0.000000e+00 : f32
    %163 = vector.shape_cast %28 : vector<1x2x8x8xi1> to vector<1x2x8x8xi1>
    %164 = vector.broadcast %163 : vector<1x2x8x8xi1> to vector<4x2x8x8xi1>
    %165 = vector.shape_cast %130 : vector<4x1x1x8xf32> to vector<4x1x1x8xf32>
    %166 = vector.broadcast %165 : vector<4x1x1x8xf32> to vector<4x2x8x8xf32>
    %167 = vector.broadcast %cst_52 : f32 to vector<4x2x8x8xf32>
    %168 = arith.select %164, %166, %167 : vector<4x2x8x8xi1>, vector<4x2x8x8xf32>
    %cst_53 = arith.constant dense<0.000000e+00> : vector<4x2x8xf32>
    %169 = vector.multi_reduction <add>, %168, %cst_53 [3] : vector<4x2x8x8xf32> to vector<4x2x8xf32>
    %170 = vector.shape_cast %169 : vector<4x2x8xf32> to vector<4x2x8x1xf32>
    %cst_54 = arith.constant 0.000000e+00 : f32
    %171 = vector.shape_cast %30 : vector<1x2x8x8xi1> to vector<1x2x8x8xi1>
    %172 = vector.broadcast %171 : vector<1x2x8x8xi1> to vector<4x2x8x8xi1>
    %173 = vector.shape_cast %130 : vector<4x1x1x8xf32> to vector<4x1x1x8xf32>
    %174 = vector.broadcast %173 : vector<4x1x1x8xf32> to vector<4x2x8x8xf32>
    %175 = vector.broadcast %cst_54 : f32 to vector<4x2x8x8xf32>
    %176 = arith.select %172, %174, %175 : vector<4x2x8x8xi1>, vector<4x2x8x8xf32>
    %cst_55 = arith.constant dense<0.000000e+00> : vector<4x2x8xf32>
    %177 = vector.multi_reduction <add>, %176, %cst_55 [3] : vector<4x2x8x8xf32> to vector<4x2x8xf32>
    %178 = vector.shape_cast %177 : vector<4x2x8xf32> to vector<4x2x8x1xf32>
    %cst_56 = arith.constant 0.000000e+00 : f32
    %179 = vector.shape_cast %32 : vector<1x2x8x8xi1> to vector<1x2x8x8xi1>
    %180 = vector.broadcast %179 : vector<1x2x8x8xi1> to vector<4x2x8x8xi1>
    %181 = vector.shape_cast %130 : vector<4x1x1x8xf32> to vector<4x1x1x8xf32>
    %182 = vector.broadcast %181 : vector<4x1x1x8xf32> to vector<4x2x8x8xf32>
    %183 = vector.broadcast %cst_56 : f32 to vector<4x2x8x8xf32>
    %184 = arith.select %180, %182, %183 : vector<4x2x8x8xi1>, vector<4x2x8x8xf32>
    %cst_57 = arith.constant dense<0.000000e+00> : vector<4x2x8xf32>
    %185 = vector.multi_reduction <add>, %184, %cst_57 [3] : vector<4x2x8x8xf32> to vector<4x2x8xf32>
    %186 = vector.shape_cast %185 : vector<4x2x8xf32> to vector<4x2x8x1xf32>
    %187 = tpu.concatenate %136, %142, %148, %154 in 3 : vector<4x2x8x1xf32>, vector<4x2x8x1xf32>, vector<4x2x8x1xf32>, vector<4x2x8x1xf32> -> vector<4x2x8x4xf32>
    %188 = tpu.concatenate %162, %170, %178, %186 in 3 : vector<4x2x8x1xf32>, vector<4x2x8x1xf32>, vector<4x2x8x1xf32>, vector<4x2x8x1xf32> -> vector<4x2x8x4xf32>
    %189 = tpu.concatenate %187, %188 in 0 : vector<4x2x8x4xf32>, vector<4x2x8x4xf32> -> vector<8x2x8x4xf32>
    %190 = vector.shape_cast %189 : vector<8x2x8x4xf32> to vector<128x4xf32>
    %c0_58 = arith.constant 0 : index
    %c0_59 = arith.constant 0 : index
    %191 = vector.load %arg10[%c0_58, %c0_59] : memref<4x8xf32, #tpu.memory_space<vmem>>, vector<4x8xf32>
    %cst_60 = arith.constant dense<0.000000e+00> : vector<128x8xf32>
    %192 = tpu.matmul %190, %191, %cst_60 {dimension_numbers = #tpu.dot_dimension_numbers<[1], [0], [0], [1], [0, 0, 1, 1], [], []>} : vector<128x4xf32>, vector<4x8xf32>, vector<128x8xf32> -> vector<128x8xf32>
    %193 = vector.shape_cast %192 : vector<128x8xf32> to vector<8x2x8x8xf32>
    %194 = vector.extract_strided_slice %193 {offsets = [0, 0, 0, 0], sizes = [4, 2, 8, 8], strides = [1, 1, 1, 1]} : vector<8x2x8x8xf32> to vector<4x2x8x8xf32>
    %195 = vector.extract_strided_slice %193 {offsets = [4, 0, 0, 0], sizes = [4, 2, 8, 8], strides = [1, 1, 1, 1]} : vector<8x2x8x8xf32> to vector<4x2x8x8xf32>
    %c0_61 = arith.constant 0 : index
    %c0_62 = arith.constant 0 : index
    %c0_63 = arith.constant 0 : index
    %c0_64 = arith.constant 0 : index
    %196 = vector.load %arg9[%c0_61, %c0_62, %c0_63, %c0_64] : memref<4x1x1x1xf32, #tpu.memory_space<vmem>>, vector<4x1x1x1xf32>
    %197 = vector.broadcast %196 : vector<4x1x1x1xf32> to vector<4x2x8x8xf32>
    %198 = arith.addf %195, %197 : vector<4x2x8x8xf32>
    %199 = arith.negf %198 : vector<4x2x8x8xf32>
    %200 = math.exp %199 : vector<4x2x8x8xf32>
    %cst_65 = arith.constant 1.000000e+00 : f32
    %201 = vector.broadcast %cst_65 : f32 to vector<4x2x8x8xf32>
    %202 = arith.addf %201, %200 : vector<4x2x8x8xf32>
    %203 = arith.divf %201, %202 : vector<4x2x8x8xf32>
    %204 = arith.mulf %203, %194 : vector<4x2x8x8xf32>
    %205 = arith.addf %129, %204 : vector<4x2x8x8xf32>
    %206 = vector.extract_strided_slice %205 {offsets = [0, 0, 0, 0], sizes = [1, 2, 8, 8], strides = [1, 1, 1, 1]} : vector<4x2x8x8xf32> to vector<1x2x8x8xf32>
    %207 = vector.shape_cast %206 : vector<1x2x8x8xf32> to vector<2x8x8xf32>
    %208 = vector.extract_strided_slice %205 {offsets = [1, 0, 0, 0], sizes = [1, 2, 8, 8], strides = [1, 1, 1, 1]} : vector<4x2x8x8xf32> to vector<1x2x8x8xf32>
    %209 = vector.shape_cast %208 : vector<1x2x8x8xf32> to vector<2x8x8xf32>
    %210 = vector.extract_strided_slice %205 {offsets = [2, 0, 0, 0], sizes = [1, 2, 8, 8], strides = [1, 1, 1, 1]} : vector<4x2x8x8xf32> to vector<1x2x8x8xf32>
    %211 = vector.shape_cast %210 : vector<1x2x8x8xf32> to vector<2x8x8xf32>
    %212 = vector.extract_strided_slice %205 {offsets = [3, 0, 0, 0], sizes = [1, 2, 8, 8], strides = [1, 1, 1, 1]} : vector<4x2x8x8xf32> to vector<1x2x8x8xf32>
    %213 = vector.shape_cast %212 : vector<1x2x8x8xf32> to vector<2x8x8xf32>
    %214 = tpu.concatenate %207, %209, %211, %213 in 2 : vector<2x8x8xf32>, vector<2x8x8xf32>, vector<2x8x8xf32>, vector<2x8x8xf32> -> vector<2x8x32xf32>
    %c0_66 = arith.constant 0 : index
    %c0_67 = arith.constant 0 : index
    %c0_68 = arith.constant 0 : index
    %215 = vector.load %arg11[%c0_66, %c0_67, %c0_68] : memref<2x8x32xf32, #tpu.memory_space<vmem>>, vector<2x8x32xf32>
    tpu.vector_store %arg11[%c0_66, %c0_67, %c0_68], %214 {strides = array<i32>} : memref<2x8x32xf32, #tpu.memory_space<vmem>>, vector<2x8x32xf32>,
    return
  }
  func.func @transform_0(%arg0: i32) -> (i32, i32, i32) {
    %c0_i32 = arith.constant 0 : i32
    %c0_i32_0 = arith.constant 0 : i32
    %c0_i32_1 = arith.constant 0 : i32
    return %arg0, %c0_i32, %c0_i32_0 : i32, i32, i32
  }
  func.func @transform_1(%arg0: i32) -> (i32, i32, i32) {
    %c0_i32 = arith.constant 0 : i32
    %c0_i32_0 = arith.constant 0 : i32
    %c0_i32_1 = arith.constant 0 : i32
    return %arg0, %c0_i32, %c0_i32_0 : i32, i32, i32
  }
  func.func @transform_2(%arg0: i32) -> (i32, i32, i32) {
    %c0_i32 = arith.constant 0 : i32
    %c0_i32_0 = arith.constant 0 : i32
    %c0_i32_1 = arith.constant 0 : i32
    return %arg0, %c0_i32, %c0_i32_0 : i32, i32, i32
  }
  func.func @transform_3(%arg0: i32) -> (i32, i32, i32) {
    %c0_i32 = arith.constant 0 : i32
    %c0_i32_0 = arith.constant 0 : i32
    %c0_i32_1 = arith.constant 0 : i32
    return %arg0, %c0_i32, %c0_i32_0 : i32, i32, i32
  }
  func.func @transform_4(%arg0: i32) -> (i32, i32) {
    %c0_i32 = arith.constant 0 : i32
    %c0_i32_0 = arith.constant 0 : i32
    %c0_i32_1 = arith.constant 0 : i32
    return %c0_i32, %c0_i32_0 : i32, i32
  }
  func.func @transform_5(%arg0: i32) -> (i32, i32) {
    %c0_i32 = arith.constant 0 : i32
    %c0_i32_0 = arith.constant 0 : i32
    %c0_i32_1 = arith.constant 0 : i32
    return %c0_i32, %c0_i32_0 : i32, i32
  }
  func.func @transform_6(%arg0: i32) -> (i32, i32, i32, i32) {
    %c0_i32 = arith.constant 0 : i32
    %c0_i32_0 = arith.constant 0 : i32
    %c0_i32_1 = arith.constant 0 : i32
    %c0_i32_2 = arith.constant 0 : i32
    %c0_i32_3 = arith.constant 0 : i32
    return %c0_i32, %c0_i32_0, %c0_i32_1, %c0_i32_2 : i32, i32, i32, i32
  }
  func.func @transform_7(%arg0: i32) -> (i32, i32, i32, i32) {
    %c0_i32 = arith.constant 0 : i32
    %c0_i32_0 = arith.constant 0 : i32
    %c0_i32_1 = arith.constant 0 : i32
    %c0_i32_2 = arith.constant 0 : i32
    %c0_i32_3 = arith.constant 0 : i32
    return %c0_i32, %c0_i32_0, %c0_i32_1, %c0_i32_2 : i32, i32, i32, i32
  }
  func.func @transform_8(%arg0: i32) -> (i32, i32, i32, i32) {
    %c0_i32 = arith.constant 0 : i32
    %c0_i32_0 = arith.constant 0 : i32
    %c0_i32_1 = arith.constant 0 : i32
    %c0_i32_2 = arith.constant 0 : i32
    %c0_i32_3 = arith.constant 0 : i32
    return %c0_i32, %c0_i32_0, %c0_i32_1, %c0_i32_2 : i32, i32, i32, i32
  }
  func.func @transform_9(%arg0: i32) -> (i32, i32) {
    %c0_i32 = arith.constant 0 : i32
    %c0_i32_0 = arith.constant 0 : i32
    %c0_i32_1 = arith.constant 0 : i32
    return %c0_i32, %c0_i32_0 : i32, i32
  }
  func.func @transform_10(%arg0: i32) -> (i32, i32, i32) {
    %c0_i32 = arith.constant 0 : i32
    %c0_i32_0 = arith.constant 0 : i32
    %c0_i32_1 = arith.constant 0 : i32
    return %arg0, %c0_i32, %c0_i32_0 : i32, i32, i32
  }
}

</mosaic_0001>

<llo_original>
// kernel: tpu_custom_call.1
$region0: #{tpu_custom_call.1}
  #allocation0 [shape = 'u32[]', space=smem, size = 0x4, offset = 0x4, fixed_abs, tag = 'smem constant byte address 0x4 - core index']
  #allocation1 [shape = 'u32[144,128]{1,0:T(1,128)}', space=vmem, size = 0x12000, scoped, tag = 'internal scratch']
  %s0 = inlined_call_operand.hbm [shape: f32[2,8,32], index: 0, kind: input, shape index: {}]
  %s1 = inlined_call_operand.hbm [shape: f32[2,1,8], index: 1, kind: input, shape index: {}]
  %s2 = inlined_call_operand.hbm [shape: s32[2,8,8], index: 2, kind: input, shape index: {}]
  %s3 = inlined_call_operand.hbm [shape: s32[2,8,8], index: 3, kind: input, shape index: {}]
  %s4 = inlined_call_operand.hbm [shape: f32[32,128], index: 4, kind: input, shape index: {}]
  %s5 = inlined_call_operand.vmem [shape: f32[1,128], index: 5, kind: input, shape index: {}]
  %s6 = inlined_call_operand.vmem [shape: f32[4,1,1,4], index: 6, kind: input, shape index: {}]
  %s7 = inlined_call_operand.vmem [shape: f32[4,1,1,8], index: 7, kind: input, shape index: {}]
  %s8 = inlined_call_operand.vmem [shape: f32[4,1,1,1], index: 8, kind: input, shape index: {}]
  %s9 = inlined_call_operand.vmem [shape: f32[4,8], index: 9, kind: input, shape index: {}]
  %s10 = inlined_call_operand.hbm [shape: f32[2,8,32], index: 10, kind: output, shape index: {}]
  %s11 = sld [smem:[#allocation0]]
  $region70: #{tpu_custom_call.1} parent=0
    _
  %s13 = ssub.s32 1, %s11
  %s14 = scalar_select 0, %s13, %s11
  $region1: #{tpu_custom_call.1} parent=0
    #allocation2 [shape = 'u8[8192]{0}', space=vmem, size = 0x2000, scoped, tag = 'input window, operand 0, single buffered']
    #allocation3 [shape = 's32[1]{0}', space=sflag, size = 0x4, scoped, tag = 'scoped memory for tpu_custom_call.1']
    #allocation4 [shape = 's32[1]{0}', space=sflag, size = 0x4, scoped, tag = 'scoped memory for tpu_custom_call.1']
    #allocation5 [shape = 'u8[1024]{0}', space=vmem, size = 0x400, scoped, tag = 'input window, operand 1, single buffered']
    #allocation6 [shape = 's32[1]{0}', space=sflag, size = 0x4, scoped, tag = 'scoped memory for tpu_custom_call.1']
    #allocation7 [shape = 'u8[8192]{0}', space=vmem, size = 0x2000, scoped, tag = 'input window, operand 2, single buffered']
    #allocation8 [shape = 'u8[8192]{0}', space=vmem, size = 0x2000, scoped, tag = 'input window, operand 3, single buffered']
    #allocation9 [shape = 's32[1]{0}', space=sflag, size = 0x4, scoped, tag = 'scoped memory for tpu_custom_call.1']
    #allocation10 [shape = 'u8[16384]{0}', space=vmem, size = 0x4000, scoped, tag = 'input window, operand 4, single buffered']
    #allocation11 [shape = 'u8[8192]{0}', space=vmem, size = 0x2000, scoped, tag = 'output window, operand 0, single buffered']
    %15 = vsyncpa [#allocation3], 0
    %16 = vsyncpa [#allocation6], 0
    %17 = vsyncpa [#allocation9], 0
    %18 = vsyncpa [#allocation4], 0
    // Predicated region
    $region2: #{tpu_custom_call.1} parent=1 // pred_check
      _
    $region3: #{tpu_custom_call.1} parent=1 // pred_check_branch
      %20 = sbr.rel (0) target = $region5
    $region4: #{tpu_custom_call.1} parent=1 // pred_region
      %s22 = ssub.s32 256, 256
      %23 = vsyncadd [#allocation3], %s22
      %s24 = sshll.u32 [#allocation2], 4
      %s25 = int_to_ptr.vmem [resolvable:$true] %s24
      %30 = dma.hbm_to_vmem [thread:$0]  %s0, 256, %s25, [#allocation3], 128, 128, 8
    $region5: #{tpu_custom_call.1} parent=1 // pred_fallthru
      _
    // Predicated region
    $region6: #{tpu_custom_call.1} parent=1 // pred_check
      _
    $region7: #{tpu_custom_call.1} parent=1 // pred_check_branch
      %32 = sbr.rel (0) target = $region9
    $region8: #{tpu_custom_call.1} parent=1 // pred_region
      %s34 = ssub.s32 32, 32
      %35 = vsyncadd [#allocation6], %s34
      %s36 = sshll.u32 [#allocation5], 4
      %s37 = int_to_ptr.vmem [resolvable:$true] %s36
      %42 = dma.hbm_to_vmem [thread:$0]  %s1, 32, %s37, [#allocation6], 16, 16, 1
    $region9: #{tpu_custom_call.1} parent=1 // pred_fallthru
      _
    // Predicated region
    $region10: #{tpu_custom_call.1} parent=1 // pred_check
      _
    $region11: #{tpu_custom_call.1} parent=1 // pred_check_branch
      %44 = sbr.rel (0) target = $region13
    $region12: #{tpu_custom_call.1} parent=1 // pred_region
      %s46 = ssub.s32 256, 256
      %47 = vsyncadd [#allocation6], %s46
      %s48 = sshll.u32 [#allocation7], 4
      %s49 = int_to_ptr.vmem [resolvable:$true] %s48
      %54 = dma.hbm_to_vmem [thread:$0]  %s2, 256, %s49, [#allocation6], 128, 128, 8
    $region13: #{tpu_custom_call.1} parent=1 // pred_fallthru
      _
    // Predicated region
    $region14: #{tpu_custom_call.1} parent=1 // pred_check
      _
    $region15: #{tpu_custom_call.1} parent=1 // pred_check_branch
      %56 = sbr.rel (0) target = $region17
    $region16: #{tpu_custom_call.1} parent=1 // pred_region
      %s58 = ssub.s32 256, 256
      %59 = vsyncadd [#allocation9], %s58
      %s60 = sshll.u32 [#allocation8], 4
      %s61 = int_to_ptr.vmem [resolvable:$true] %s60
      %66 = dma.hbm_to_vmem [thread:$0]  %s3, 256, %s61, [#allocation9], 128, 128, 8
    $region17: #{tpu_custom_call.1} parent=1 // pred_fallthru
      _
    // Predicated region
    $region18: #{tpu_custom_call.1} parent=1 // pred_check
      _
    $region19: #{tpu_custom_call.1} parent=1 // pred_check_branch
      %68 = sbr.rel (0) target = $region21
    $region20: #{tpu_custom_call.1} parent=1 // pred_region
      %s70 = ssub.s32 512, 512
      %71 = vsyncadd [#allocation9], %s70
      %s72 = sshll.u32 [#allocation10], 4
      %s73 = int_to_ptr.vmem [resolvable:$true] %s72
      %78 = dma.hbm_to_vmem [thread:$0]  %s4, 512, %s73, [#allocation9], 128, 128, 8
    $region21: #{tpu_custom_call.1} parent=1 // pred_fallthru
      _
    // Predicated region
    $region22: #{tpu_custom_call.1} parent=1 // pred_check
      _
    $region23: #{tpu_custom_call.1} parent=1 // pred_check_branch
      %80 = sbr.rel (0) target = $region25
    $region24: #{tpu_custom_call.1} parent=1 // pred_region
      _
    $region25: #{tpu_custom_call.1} parent=1 // pred_fallthru
      _
    // Predicated region
    $region26: #{tpu_custom_call.1} parent=1 // pred_check
      _
    $region27: #{tpu_custom_call.1} parent=1 // pred_check_branch
      %82 = sbr.rel (0) target = $region29
    $region28: #{tpu_custom_call.1} parent=1 // pred_region
      _
    $region29: #{tpu_custom_call.1} parent=1 // pred_fallthru
      _
    // Predicated region
    $region30: #{tpu_custom_call.1} parent=1 // pred_check
      _
    $region31: #{tpu_custom_call.1} parent=1 // pred_check_branch
      %84 = sbr.rel (0) target = $region33
    $region32: #{tpu_custom_call.1} parent=1 // pred_region
      _
    $region33: #{tpu_custom_call.1} parent=1 // pred_fallthru
      _
    // Predicated region
    $region34: #{tpu_custom_call.1} parent=1 // pred_check
      _
    $region35: #{tpu_custom_call.1} parent=1 // pred_check_branch
      %86 = sbr.rel (0) target = $region37
    $region36: #{tpu_custom_call.1} parent=1 // pred_region
      _
    $region37: #{tpu_custom_call.1} parent=1 // pred_fallthru
      _
    // Predicated region
    $region38: #{tpu_custom_call.1} parent=1 // pred_check
      _
    $region39: #{tpu_custom_call.1} parent=1 // pred_check_branch
      %88 = sbr.rel (0) target = $region41
    $region40: #{tpu_custom_call.1} parent=1 // pred_region
      _
    $region41: #{tpu_custom_call.1} parent=1 // pred_fallthru
      _
    // Predicated region
    $region42: #{tpu_custom_call.1} parent=1 // pred_check
      _
    $region43: #{tpu_custom_call.1} parent=1 // pred_check_branch
      %90 = sbr.rel (0) target = $region45
    $region44: #{tpu_custom_call.1} parent=1 // pred_region
      %91 = dma.done [#allocation3], 256
    $region45: #{tpu_custom_call.1} parent=1 // pred_fallthru
      _
    // Predicated region
    $region46: #{tpu_custom_call.1} parent=1 // pred_check
      _
    $region47: #{tpu_custom_call.1} parent=1 // pred_check_branch
      %93 = sbr.rel (0) target = $region49
    $region48: #{tpu_custom_call.1} parent=1 // pred_region
      %94 = dma.done [#allocation6], 32
    $region49: #{tpu_custom_call.1} parent=1 // pred_fallthru
      _
    // Predicated region
    $region50: #{tpu_custom_call.1} parent=1 // pred_check
      _
    $region51: #{tpu_custom_call.1} parent=1 // pred_check_branch
      %96 = sbr.rel (0) target = $region53
    $region52: #{tpu_custom_call.1} parent=1 // pred_region
      %97 = dma.done [#allocation6], 256
    $region53: #{tpu_custom_call.1} parent=1 // pred_fallthru
      _
    // Predicated region
    $region54: #{tpu_custom_call.1} parent=1 // pred_check
      _
    $region55: #{tpu_custom_call.1} parent=1 // pred_check_branch
      %99 = sbr.rel (0) target = $region57
    $region56: #{tpu_custom_call.1} parent=1 // pred_region
      %100 = dma.done [#allocation9], 256
    $region57: #{tpu_custom_call.1} parent=1 // pred_fallthru
      _
    // Predicated region
    $region58: #{tpu_custom_call.1} parent=1 // pred_check
      _
    $region59: #{tpu_custom_call.1} parent=1 // pred_check_branch
      %102 = sbr.rel (0) target = $region61
    $region60: #{tpu_custom_call.1} parent=1 // pred_region
      %103 = dma.done [#allocation9], 512
    $region61: #{tpu_custom_call.1} parent=1 // pred_fallthru
      _
    %v104 = vld [vmem:[#allocation2] sm:$0xff]
    %v105 = vld [vmem:[#allocation2 + $0x8] sm:$0xff]
    %v106 = vld [vmem:[#allocation10] sm:$0xff]
    %v107 = vld [vmem:[#allocation10 + $0x8] sm:$0xff]
    %v108 = vld [vmem:[#allocation10 + $0x10] sm:$0xff]
    %v109 = vld [vmem:[#allocation10 + $0x18] sm:$0xff]
    %v110 = vld [vmem:[%s5] sm:$0x1]
    %v112 = vlaneseq
    %v113 = vshrl.u32 %v112, 7
    %v114 = vsub.s32 0, %v113
    %v115 = vrot.slane %v110, %v114
    %vm117 = vcmask 261120
    %v119 = vsel %vm117, %v104, 0
    %v122 = vsel %vm117, %v105, 0
    %124 = vmatprep.subr.mxu0 0.0
    %125 = vmatpush1.msra.mxu0 0.0
    %126 = vmatprep.subr.mxu0 0.0
    %127 = vmatpush1.msra.mxu0 0.0
    %128 = vmatprep.subr.mxu0 0.0
    %129 = vmatpush1.msra.mxu0 0.0
    %130 = vmatprep.subr.mxu0 0.0
    %131 = vmatpush1.msra.mxu0 0.0
    %132 = vmatprep.subr.mxu0 0.0
    %133 = vmatpush1.msra.mxu0 0.0
    %134 = vmatprep.subr.mxu0 0.0
    %135 = vmatpush1.msra.mxu0 0.0
    %136 = vmatprep.subr.mxu0 0.0
    %137 = vmatpush1.msra.mxu0 0.0
    %138 = vmatprep.subr.mxu0 0.0
    %139 = vmatpush1.msra.mxu0 0.0
    %140 = vmatprep.subr.mxu0 0.0
    %141 = vmatpush1.msra.mxu0 0.0
    %142 = vmatprep.subr.mxu0 0.0
    %143 = vmatpush1.msra.mxu0 0.0
    %144 = vmatprep.subr.mxu0 0.0
    %145 = vmatpush1.msra.mxu0 0.0
    %146 = vmatprep.subr.mxu0 0.0
    %147 = vmatpush1.msra.mxu0 0.0
    %148 = vmatprep.subr.mxu0 0.0
    %149 = vmatpush1.msra.mxu0 %v109
    %150 = vmatprep.subr.mxu0 0.0
    %151 = vmatpush1.msra.mxu0 %v108
    %152 = vmatprep.subr.mxu0 0.0
    %153 = vmatpush1.msra.mxu0 %v107
    %154 = vmatprep.subr.mxu0 0.0
    %155 = vmatpush1.msra.mxu0 %v106
    %156 = vmatprep.subr.mxu0 0.0
    %157 = vmatpush2.msra.mxu0 0.0
    %158 = vmatprep.subr.mxu0 0.0
    %159 = vmatpush2.msra.mxu0 0.0
    %160 = vmatprep.subr.mxu0 0.0
    %161 = vmatpush2.msra.mxu0 0.0
    %162 = vmatprep.subr.mxu0 0.0
    %163 = vmatpush2.msra.mxu0 0.0
    %164 = vmatprep.subr.mxu0 0.0
    %165 = vmatpush2.msra.mxu0 0.0
    %166 = vmatprep.subr.mxu0 0.0
    %167 = vmatpush2.msra.mxu0 0.0
    %168 = vmatprep.subr.mxu0 0.0
    %169 = vmatpush2.msra.mxu0 0.0
    %170 = vmatprep.subr.mxu0 0.0
    %171 = vmatpush2.msra.mxu0 0.0
    %172 = vmatprep.subr.mxu0 0.0
    %173 = vmatpush2.msra.mxu0 0.0
    %174 = vmatprep.subr.mxu0 0.0
    %175 = vmatpush2.msra.mxu0 0.0
    %176 = vmatprep.subr.mxu0 0.0
    %177 = vmatpush2.msra.mxu0 0.0
    %178 = vmatprep.subr.mxu0 0.0
    %179 = vmatpush2.msra.mxu0 0.0
    %180 = vmatprep.subr.mxu0 0.0
    %181 = vmatpush2.msra.mxu0 0.0
    %182 = vmatprep.subr.mxu0 0.0
    %183 = vmatpush2.msra.mxu0 0.0
    %184 = vmatprep.subr.mxu0 0.0
    %185 = vmatpush2.msra.mxu0 0.0
    %186 = vmatprep.subr.mxu0 0.0
    %187 = vmatpush2.msra.mxu0 0.0
    %188 = vmatprep.mubr.f32.mxu0 0.0
    %189 = vmatmul.mubr.f32.gmra.mxu0 %v119
    %v190 = vpop.f32.mrf.mxu0
    %v191 = vadd.f32 %v115, %v190
    %v192 = vpop.f32.mrf.mxu0
    %193 = vmatprep.mubr.f32.mxu0 0.0
    %194 = vmatmul.mubr.f32.gmra.mxu0 %v122
    %v195 = vpop.f32.mrf.mxu0
    %v196 = vadd.f32 %v115, %v195
    %v197 = vpop.f32.mrf.mxu0
    %198 = vdwg.mxu0
    %201 = vrot.lane.b32.xlu0 %v191, 96
    %v202 = vpop.permute.xlu0 %201
    %203 = vrot.lane.b32.xlu0 %v196, 96
    %v204 = vpop.permute.xlu0 %203
    %205 = vrot.lane.b32.xlu0 %v191, 64
    %v206 = vpop.permute.xlu0 %205
    %207 = vrot.lane.b32.xlu0 %v196, 64
    %v208 = vpop.permute.xlu0 %207
    %209 = vrot.lane.b32.xlu0 %v191, 32
    %v210 = vpop.permute.xlu0 %209
    %211 = vrot.lane.b32.xlu0 %v196, 32
    %v212 = vpop.permute.xlu0 %211
    %213 = vrot.lane.b32.xlu0 %v191, 120
    %v214 = vpop.permute.xlu0 %213
    %vm215 = vcmask 64512
    %v216 = vsel %vm215, %v191, 0
    %v218 = vsel %vm215, %v214, 0
    %220 = vmatprep.subr.mxu0 0.0
    %221 = vmatpush1.xpose.msra.mxu0 0.0
    %222 = vmatprep.subr.mxu0 0.0
    %223 = vmatpush1.xpose.msra.mxu0 0.0
    %224 = vmatprep.subr.mxu0 0.0
    %225 = vmatpush1.xpose.msra.mxu0 0.0
    %226 = vmatprep.subr.mxu0 0.0
    %227 = vmatpush1.xpose.msra.mxu0 0.0
    %228 = vmatprep.subr.mxu0 0.0
    %229 = vmatpush1.xpose.msra.mxu0 0.0
    %230 = vmatprep.subr.mxu0 0.0
    %231 = vmatpush1.xpose.msra.mxu0 0.0
    %232 = vmatprep.subr.mxu0 0.0
    %233 = vmatpush1.xpose.msra.mxu0 0.0
    %234 = vmatprep.subr.mxu0 0.0
    %235 = vmatpush1.xpose.msra.mxu0 0.0
    %236 = vmatprep.subr.mxu0 0.0
    %237 = vmatpush1.xpose.msra.mxu0 0.0
    %238 = vmatprep.subr.mxu0 0.0
    %239 = vmatpush1.xpose.msra.mxu0 0.0
    %240 = vmatprep.subr.mxu0 0.0
    %241 = vmatpush1.xpose.msra.mxu0 0.0
    %242 = vmatprep.subr.mxu0 0.0
    %243 = vmatpush1.xpose.msra.mxu0 0.0
    %244 = vmatprep.subr.mxu0 0.0
    %245 = vmatpush1.xpose.msra.mxu0 0.0
    %246 = vmatprep.subr.mxu0 0.0
    %247 = vmatpush1.xpose.msra.mxu0 0.0
    %248 = vmatprep.subr.mxu0 0.0
    %249 = vmatpush1.xpose.msra.mxu0 0.0
    %250 = vmatprep.subr.mxu0 0.0
    %251 = vmatpush1.xpose.msra.mxu0 %v218
    %252 = vmatprep.subr.mxu0 0.0
    %253 = vmatpush2.xpose.msra.mxu0 0.0
    %254 = vmatprep.subr.mxu0 0.0
    %255 = vmatpush2.xpose.msra.mxu0 0.0
    %256 = vmatprep.subr.mxu0 0.0
    %257 = vmatpush2.xpose.msra.mxu0 0.0
    %258 = vmatprep.subr.mxu0 0.0
    %259 = vmatpush2.xpose.msra.mxu0 0.0
    %260 = vmatprep.subr.mxu0 0.0
    %261 = vmatpush2.xpose.msra.mxu0 0.0
    %262 = vmatprep.subr.mxu0 0.0
    %263 = vmatpush2.xpose.msra.mxu0 0.0
    %264 = vmatprep.subr.mxu0 0.0
    %265 = vmatpush2.xpose.msra.mxu0 0.0
    %266 = vmatprep.subr.mxu0 0.0
    %267 = vmatpush2.xpose.msra.mxu0 0.0
    %268 = vmatprep.subr.mxu0 0.0
    %269 = vmatpush2.xpose.msra.mxu0 0.0
    %270 = vmatprep.subr.mxu0 0.0
    %271 = vmatpush2.xpose.msra.mxu0 0.0
    %272 = vmatprep.subr.mxu0 0.0
    %273 = vmatpush2.xpose.msra.mxu0 0.0
    %274 = vmatprep.subr.mxu0 0.0
    %275 = vmatpush2.xpose.msra.mxu0 0.0
    %276 = vmatprep.subr.mxu0 0.0
    %277 = vmatpush2.xpose.msra.mxu0 0.0
    %278 = vmatprep.subr.mxu0 0.0
    %279 = vmatpush2.xpose.msra.mxu0 0.0
    %280 = vmatprep.subr.mxu0 0.0
    %281 = vmatpush2.xpose.msra.mxu0 0.0
    %282 = vmatprep.subr.mxu0 0.0
    %283 = vmatpush2.xpose.msra.mxu0 0.0
    %284 = vmatprep.mubr.f32.mxu0 0.0
    %285 = vmatmul.mubr.f32.gmra.mxu0 %v216
    %v286 = vpop.f32.mrf.mxu0
    %v287 = vadd.f32 0.0, %v286
    %v288 = vpop.f32.mrf.mxu0
    %289 = vdwg.mxu0
    %290 = vrot.lane.b32.xlu0 %v196, 120
    %v291 = vpop.permute.xlu0 %290
    %v292 = vsel %vm215, %v196, 0
    %v294 = vsel %vm215, %v291, 0
    %296 = vmatprep.subr.mxu0 0.0
    %297 = vmatpush1.xpose.msra.mxu0 0.0
    %298 = vmatprep.subr.mxu0 0.0
    %299 = vmatpush1.xpose.msra.mxu0 0.0
    %300 = vmatprep.subr.mxu0 0.0
    %301 = vmatpush1.xpose.msra.mxu0 0.0
    %302 = vmatprep.subr.mxu0 0.0
    %303 = vmatpush1.xpose.msra.mxu0 0.0
    %304 = vmatprep.subr.mxu0 0.0
    %305 = vmatpush1.xpose.msra.mxu0 0.0
    %306 = vmatprep.subr.mxu0 0.0
    %307 = vmatpush1.xpose.msra.mxu0 0.0
    %308 = vmatprep.subr.mxu0 0.0
    %309 = vmatpush1.xpose.msra.mxu0 0.0
    %310 = vmatprep.subr.mxu0 0.0
    %311 = vmatpush1.xpose.msra.mxu0 0.0
    %312 = vmatprep.subr.mxu0 0.0
    %313 = vmatpush1.xpose.msra.mxu0 0.0
    %314 = vmatprep.subr.mxu0 0.0
    %315 = vmatpush1.xpose.msra.mxu0 0.0
    %316 = vmatprep.subr.mxu0 0.0
    %317 = vmatpush1.xpose.msra.mxu0 0.0
    %318 = vmatprep.subr.mxu0 0.0
    %319 = vmatpush1.xpose.msra.mxu0 0.0
    %320 = vmatprep.subr.mxu0 0.0
    %321 = vmatpush1.xpose.msra.mxu0 0.0
    %322 = vmatprep.subr.mxu0 0.0
    %323 = vmatpush1.xpose.msra.mxu0 0.0
    %324 = vmatprep.subr.mxu0 0.0
    %325 = vmatpush1.xpose.msra.mxu0 0.0
    %326 = vmatprep.subr.mxu0 0.0
    %327 = vmatpush1.xpose.msra.mxu0 %v294
    %328 = vmatprep.subr.mxu0 0.0
    %329 = vmatpush2.xpose.msra.mxu0 0.0
    %330 = vmatprep.subr.mxu0 0.0
    %331 = vmatpush2.xpose.msra.mxu0 0.0
    %332 = vmatprep.subr.mxu0 0.0
    %333 = vmatpush2.xpose.msra.mxu0 0.0
    %334 = vmatprep.subr.mxu0 0.0
    %335 = vmatpush2.xpose.msra.mxu0 0.0
    %336 = vmatprep.subr.mxu0 0.0
    %337 = vmatpush2.xpose.msra.mxu0 0.0
    %338 = vmatprep.subr.mxu0 0.0
    %339 = vmatpush2.xpose.msra.mxu0 0.0
    %340 = vmatprep.subr.mxu0 0.0
    %341 = vmatpush2.xpose.msra.mxu0 0.0
    %342 = vmatprep.subr.mxu0 0.0
    %343 = vmatpush2.xpose.msra.mxu0 0.0
    %344 = vmatprep.subr.mxu0 0.0
    %345 = vmatpush2.xpose.msra.mxu0 0.0
    %346 = vmatprep.subr.mxu0 0.0
    %347 = vmatpush2.xpose.msra.mxu0 0.0
    %348 = vmatprep.subr.mxu0 0.0
    %349 = vmatpush2.xpose.msra.mxu0 0.0
    %350 = vmatprep.subr.mxu0 0.0
    %351 = vmatpush2.xpose.msra.mxu0 0.0
    %352 = vmatprep.subr.mxu0 0.0
    %353 = vmatpush2.xpose.msra.mxu0 0.0
    %354 = vmatprep.subr.mxu0 0.0
    %355 = vmatpush2.xpose.msra.mxu0 0.0
    %356 = vmatprep.subr.mxu0 0.0
    %357 = vmatpush2.xpose.msra.mxu0 0.0
    %358 = vmatprep.subr.mxu0 0.0
    %359 = vmatpush2.xpose.msra.mxu0 0.0
    %360 = vmatprep.mubr.f32.mxu0 0.0
    %361 = vmatmul.mubr.f32.gmra.mxu0 %v292
    %v362 = vpop.f32.mrf.mxu0
    %v363 = vadd.f32 0.0, %v362
    %v364 = vpop.f32.mrf.mxu0
    %365 = vdwg.mxu0
    %366 = vrot.lane.b32.xlu0 %v202, 120
    %v367 = vpop.permute.xlu0 %366
    %v368 = vsel %vm215, %v202, 0
    %v370 = vsel %vm215, %v367, 0
    %372 = vmatprep.subr.mxu0 0.0
    %373 = vmatpush1.xpose.msra.mxu0 0.0
    %374 = vmatprep.subr.mxu0 0.0
    %375 = vmatpush1.xpose.msra.mxu0 0.0
    %376 = vmatprep.subr.mxu0 0.0
    %377 = vmatpush1.xpose.msra.mxu0 0.0
    %378 = vmatprep.subr.mxu0 0.0
    %379 = vmatpush1.xpose.msra.mxu0 0.0
    %380 = vmatprep.subr.mxu0 0.0
    %381 = vmatpush1.xpose.msra.mxu0 0.0
    %382 = vmatprep.subr.mxu0 0.0
    %383 = vmatpush1.xpose.msra.mxu0 0.0
    %384 = vmatprep.subr.mxu0 0.0
    %385 = vmatpush1.xpose.msra.mxu0 0.0
    %386 = vmatprep.subr.mxu0 0.0
    %387 = vmatpush1.xpose.msra.mxu0 0.0
    %388 = vmatprep.subr.mxu0 0.0
    %389 = vmatpush1.xpose.msra.mxu0 0.0
    %390 = vmatprep.subr.mxu0 0.0
    %391 = vmatpush1.xpose.msra.mxu0 0.0
    %392 = vmatprep.subr.mxu0 0.0
    %393 = vmatpush1.xpose.msra.mxu0 0.0
    %394 = vmatprep.subr.mxu0 0.0
    %395 = vmatpush1.xpose.msra.mxu0 0.0
    %396 = vmatprep.subr.mxu0 0.0
    %397 = vmatpush1.xpose.msra.mxu0 0.0
    %398 = vmatprep.subr.mxu0 0.0
    %399 = vmatpush1.xpose.msra.mxu0 0.0
    %400 = vmatprep.subr.mxu0 0.0
    %401 = vmatpush1.xpose.msra.mxu0 0.0
    %402 = vmatprep.subr.mxu0 0.0
    %403 = vmatpush1.xpose.msra.mxu0 %v370
    %404 = vmatprep.subr.mxu0 0.0
    %405 = vmatpush2.xpose.msra.mxu0 0.0
    %406 = vmatprep.subr.mxu0 0.0
    %407 = vmatpush2.xpose.msra.mxu0 0.0
    %408 = vmatprep.subr.mxu0 0.0
    %409 = vmatpush2.xpose.msra.mxu0 0.0
    %410 = vmatprep.subr.mxu0 0.0
    %411 = vmatpush2.xpose.msra.mxu0 0.0
    %412 = vmatprep.subr.mxu0 0.0
    %413 = vmatpush2.xpose.msra.mxu0 0.0
    %414 = vmatprep.subr.mxu0 0.0
    %415 = vmatpush2.xpose.msra.mxu0 0.0
    %416 = vmatprep.subr.mxu0 0.0
    %417 = vmatpush2.xpose.msra.mxu0 0.0
    %418 = vmatprep.subr.mxu0 0.0
    %419 = vmatpush2.xpose.msra.mxu0 0.0
    %420 = vmatprep.subr.mxu0 0.0
    %421 = vmatpush2.xpose.msra.mxu0 0.0
    %422 = vmatprep.subr.mxu0 0.0
    %423 = vmatpush2.xpose.msra.mxu0 0.0
    %424 = vmatprep.subr.mxu0 0.0
    %425 = vmatpush2.xpose.msra.mxu0 0.0
    %426 = vmatprep.subr.mxu0 0.0
    %427 = vmatpush2.xpose.msra.mxu0 0.0
    %428 = vmatprep.subr.mxu0 0.0
    %429 = vmatpush2.xpose.msra.mxu0 0.0
    %430 = vmatprep.subr.mxu0 0.0
    %431 = vmatpush2.xpose.msra.mxu0 0.0
    %432 = vmatprep.subr.mxu0 0.0
    %433 = vmatpush2.xpose.msra.mxu0 0.0
    %434 = vmatprep.subr.mxu0 0.0
    %435 = vmatpush2.xpose.msra.mxu0 0.0
    %436 = vmatprep.mubr.f32.mxu0 0.0
    %437 = vmatmul.mubr.f32.gmra.mxu0 %v368
    %v438 = vpop.f32.mrf.mxu0
    %v439 = vadd.f32 0.0, %v438
    %v440 = vpop.f32.mrf.mxu0
    %441 = vdwg.mxu0
    %442 = vrot.lane.b32.xlu0 %v204, 120
    %v443 = vpop.permute.xlu0 %442
    %v444 = vsel %vm215, %v204, 0
    %v446 = vsel %vm215, %v443, 0
    %448 = vmatprep.subr.mxu0 0.0
    %449 = vmatpush1.xpose.msra.mxu0 0.0
    %450 = vmatprep.subr.mxu0 0.0
    %451 = vmatpush1.xpose.msra.mxu0 0.0
    %452 = vmatprep.subr.mxu0 0.0
    %453 = vmatpush1.xpose.msra.mxu0 0.0
    %454 = vmatprep.subr.mxu0 0.0
    %455 = vmatpush1.xpose.msra.mxu0 0.0
    %456 = vmatprep.subr.mxu0 0.0
    %457 = vmatpush1.xpose.msra.mxu0 0.0
    %458 = vmatprep.subr.mxu0 0.0
    %459 = vmatpush1.xpose.msra.mxu0 0.0
    %460 = vmatprep.subr.mxu0 0.0
    %461 = vmatpush1.xpose.msra.mxu0 0.0
    %462 = vmatprep.subr.mxu0 0.0
    %463 = vmatpush1.xpose.msra.mxu0 0.0
    %464 = vmatprep.subr.mxu0 0.0
    %465 = vmatpush1.xpose.msra.mxu0 0.0
    %466 = vmatprep.subr.mxu0 0.0
    %467 = vmatpush1.xpose.msra.mxu0 0.0
    %468 = vmatprep.subr.mxu0 0.0
    %469 = vmatpush1.xpose.msra.mxu0 0.0
    %470 = vmatprep.subr.mxu0 0.0
    %471 = vmatpush1.xpose.msra.mxu0 0.0
    %472 = vmatprep.subr.mxu0 0.0
    %473 = vmatpush1.xpose.msra.mxu0 0.0
    %474 = vmatprep.subr.mxu0 0.0
    %475 = vmatpush1.xpose.msra.mxu0 0.0
    %476 = vmatprep.subr.mxu0 0.0
    %477 = vmatpush1.xpose.msra.mxu0 0.0
    %478 = vmatprep.subr.mxu0 0.0
    %479 = vmatpush1.xpose.msra.mxu0 %v446
    %480 = vmatprep.subr.mxu0 0.0
    %481 = vmatpush2.xpose.msra.mxu0 0.0
    %482 = vmatprep.subr.mxu0 0.0
    %483 = vmatpush2.xpose.msra.mxu0 0.0
    %484 = vmatprep.subr.mxu0 0.0
    %485 = vmatpush2.xpose.msra.mxu0 0.0
    %486 = vmatprep.subr.mxu0 0.0
    %487 = vmatpush2.xpose.msra.mxu0 0.0
    %488 = vmatprep.subr.mxu0 0.0
    %489 = vmatpush2.xpose.msra.mxu0 0.0
    %490 = vmatprep.subr.mxu0 0.0
    %491 = vmatpush2.xpose.msra.mxu0 0.0
    %492 = vmatprep.subr.mxu0 0.0
    %493 = vmatpush2.xpose.msra.mxu0 0.0
    %494 = vmatprep.subr.mxu0 0.0
    %495 = vmatpush2.xpose.msra.mxu0 0.0
    %496 = vmatprep.subr.mxu0 0.0
    %497 = vmatpush2.xpose.msra.mxu0 0.0
    %498 = vmatprep.subr.mxu0 0.0
    %499 = vmatpush2.xpose.msra.mxu0 0.0
    %500 = vmatprep.subr.mxu0 0.0
    %501 = vmatpush2.xpose.msra.mxu0 0.0
    %502 = vmatprep.subr.mxu0 0.0
    %503 = vmatpush2.xpose.msra.mxu0 0.0
    %504 = vmatprep.subr.mxu0 0.0
    %505 = vmatpush2.xpose.msra.mxu0 0.0
    %506 = vmatprep.subr.mxu0 0.0
    %507 = vmatpush2.xpose.msra.mxu0 0.0
    %508 = vmatprep.subr.mxu0 0.0
    %509 = vmatpush2.xpose.msra.mxu0 0.0
    %510 = vmatprep.subr.mxu0 0.0
    %511 = vmatpush2.xpose.msra.mxu0 0.0
    %512 = vmatprep.mubr.f32.mxu0 0.0
    %513 = vmatmul.mubr.f32.gmra.mxu0 %v444
    %v514 = vpop.f32.mrf.mxu0
    %v515 = vadd.f32 0.0, %v514
    %v516 = vpop.f32.mrf.mxu0
    %517 = vdwg.mxu0
    %518 = vrot.lane.b32.xlu0 %v206, 120
    %v519 = vpop.permute.xlu0 %518
    %v520 = vsel %vm215, %v206, 0
    %v522 = vsel %vm215, %v519, 0
    %524 = vmatprep.subr.mxu0 0.0
    %525 = vmatpush1.xpose.msra.mxu0 0.0
    %526 = vmatprep.subr.mxu0 0.0
    %527 = vmatpush1.xpose.msra.mxu0 0.0
    %528 = vmatprep.subr.mxu0 0.0
    %529 = vmatpush1.xpose.msra.mxu0 0.0
    %530 = vmatprep.subr.mxu0 0.0
    %531 = vmatpush1.xpose.msra.mxu0 0.0
    %532 = vmatprep.subr.mxu0 0.0
    %533 = vmatpush1.xpose.msra.mxu0 0.0
    %534 = vmatprep.subr.mxu0 0.0
    %535 = vmatpush1.xpose.msra.mxu0 0.0
    %536 = vmatprep.subr.mxu0 0.0
    %537 = vmatpush1.xpose.msra.mxu0 0.0
    %538 = vmatprep.subr.mxu0 0.0
    %539 = vmatpush1.xpose.msra.mxu0 0.0
    %540 = vmatprep.subr.mxu0 0.0
    %541 = vmatpush1.xpose.msra.mxu0 0.0
    %542 = vmatprep.subr.mxu0 0.0
    %543 = vmatpush1.xpose.msra.mxu0 0.0
    %544 = vmatprep.subr.mxu0 0.0
    %545 = vmatpush1.xpose.msra.mxu0 0.0
    %546 = vmatprep.subr.mxu0 0.0
    %547 = vmatpush1.xpose.msra.mxu0 0.0
    %548 = vmatprep.subr.mxu0 0.0
    %549 = vmatpush1.xpose.msra.mxu0 0.0
    %550 = vmatprep.subr.mxu0 0.0
    %551 = vmatpush1.xpose.msra.mxu0 0.0
    %552 = vmatprep.subr.mxu0 0.0
    %553 = vmatpush1.xpose.msra.mxu0 0.0
    %554 = vmatprep.subr.mxu0 0.0
    %555 = vmatpush1.xpose.msra.mxu0 %v522
    %556 = vmatprep.subr.mxu0 0.0
    %557 = vmatpush2.xpose.msra.mxu0 0.0
    %558 = vmatprep.subr.mxu0 0.0
    %559 = vmatpush2.xpose.msra.mxu0 0.0
    %560 = vmatprep.subr.mxu0 0.0
    %561 = vmatpush2.xpose.msra.mxu0 0.0
    %562 = vmatprep.subr.mxu0 0.0
    %563 = vmatpush2.xpose.msra.mxu0 0.0
    %564 = vmatprep.subr.mxu0 0.0
    %565 = vmatpush2.xpose.msra.mxu0 0.0
    %566 = vmatprep.subr.mxu0 0.0
    %567 = vmatpush2.xpose.msra.mxu0 0.0
    %568 = vmatprep.subr.mxu0 0.0
    %569 = vmatpush2.xpose.msra.mxu0 0.0
    %570 = vmatprep.subr.mxu0 0.0
    %571 = vmatpush2.xpose.msra.mxu0 0.0
    %572 = vmatprep.subr.mxu0 0.0
    %573 = vmatpush2.xpose.msra.mxu0 0.0
    %574 = vmatprep.subr.mxu0 0.0
    %575 = vmatpush2.xpose.msra.mxu0 0.0
    %576 = vmatprep.subr.mxu0 0.0
    %577 = vmatpush2.xpose.msra.mxu0 0.0
    %578 = vmatprep.subr.mxu0 0.0
    %579 = vmatpush2.xpose.msra.mxu0 0.0
    %580 = vmatprep.subr.mxu0 0.0
    %581 = vmatpush2.xpose.msra.mxu0 0.0
    %582 = vmatprep.subr.mxu0 0.0
    %583 = vmatpush2.xpose.msra.mxu0 0.0
    %584 = vmatprep.subr.mxu0 0.0
    %585 = vmatpush2.xpose.msra.mxu0 0.0
    %586 = vmatprep.subr.mxu0 0.0
    %587 = vmatpush2.xpose.msra.mxu0 0.0
    %588 = vmatprep.mubr.f32.mxu0 0.0
    %589 = vmatmul.mubr.f32.gmra.mxu0 %v520
    %v590 = vpop.f32.mrf.mxu0
    %v591 = vadd.f32 0.0, %v590
    %v592 = vpop.f32.mrf.mxu0
    %593 = vdwg.mxu0
    %594 = vrot.lane.b32.xlu0 %v208, 120
    %v595 = vpop.permute.xlu0 %594
    %v596 = vsel %vm215, %v208, 0
    %v598 = vsel %vm215, %v595, 0
    %600 = vmatprep.subr.mxu0 0.0
    %601 = vmatpush1.xpose.msra.mxu0 0.0
    %602 = vmatprep.subr.mxu0 0.0
    %603 = vmatpush1.xpose.msra.mxu0 0.0
    %604 = vmatprep.subr.mxu0 0.0
    %605 = vmatpush1.xpose.msra.mxu0 0.0
    %606 = vmatprep.subr.mxu0 0.0
    %607 = vmatpush1.xpose.msra.mxu0 0.0
    %608 = vmatprep.subr.mxu0 0.0
    %609 = vmatpush1.xpose.msra.mxu0 0.0
    %610 = vmatprep.subr.mxu0 0.0
    %611 = vmatpush1.xpose.msra.mxu0 0.0
    %612 = vmatprep.subr.mxu0 0.0
    %613 = vmatpush1.xpose.msra.mxu0 0.0
    %614 = vmatprep.subr.mxu0 0.0
    %615 = vmatpush1.xpose.msra.mxu0 0.0
    %616 = vmatprep.subr.mxu0 0.0
    %617 = vmatpush1.xpose.msra.mxu0 0.0
    %618 = vmatprep.subr.mxu0 0.0
    %619 = vmatpush1.xpose.msra.mxu0 0.0
    %620 = vmatprep.subr.mxu0 0.0
    %621 = vmatpush1.xpose.msra.mxu0 0.0
    %622 = vmatprep.subr.mxu0 0.0
    %623 = vmatpush1.xpose.msra.mxu0 0.0
    %624 = vmatprep.subr.mxu0 0.0
    %625 = vmatpush1.xpose.msra.mxu0 0.0
    %626 = vmatprep.subr.mxu0 0.0
    %627 = vmatpush1.xpose.msra.mxu0 0.0
    %628 = vmatprep.subr.mxu0 0.0
    %629 = vmatpush1.xpose.msra.mxu0 0.0
    %630 = vmatprep.subr.mxu0 0.0
    %631 = vmatpush1.xpose.msra.mxu0 %v598
    %632 = vmatprep.subr.mxu0 0.0
    %633 = vmatpush2.xpose.msra.mxu0 0.0
    %634 = vmatprep.subr.mxu0 0.0
    %635 = vmatpush2.xpose.msra.mxu0 0.0
    %636 = vmatprep.subr.mxu0 0.0
    %637 = vmatpush2.xpose.msra.mxu0 0.0
    %638 = vmatprep.subr.mxu0 0.0
    %639 = vmatpush2.xpose.msra.mxu0 0.0
    %640 = vmatprep.subr.mxu0 0.0
    %641 = vmatpush2.xpose.msra.mxu0 0.0
    %642 = vmatprep.subr.mxu0 0.0
    %643 = vmatpush2.xpose.msra.mxu0 0.0
    %644 = vmatprep.subr.mxu0 0.0
    %645 = vmatpush2.xpose.msra.mxu0 0.0
    %646 = vmatprep.subr.mxu0 0.0
    %647 = vmatpush2.xpose.msra.mxu0 0.0
    %648 = vmatprep.subr.mxu0 0.0
    %649 = vmatpush2.xpose.msra.mxu0 0.0
    %650 = vmatprep.subr.mxu0 0.0
    %651 = vmatpush2.xpose.msra.mxu0 0.0
    %652 = vmatprep.subr.mxu0 0.0
    %653 = vmatpush2.xpose.msra.mxu0 0.0
    %654 = vmatprep.subr.mxu0 0.0
    %655 = vmatpush2.xpose.msra.mxu0 0.0
    %656 = vmatprep.subr.mxu0 0.0
    %657 = vmatpush2.xpose.msra.mxu0 0.0
    %658 = vmatprep.subr.mxu0 0.0
    %659 = vmatpush2.xpose.msra.mxu0 0.0
    %660 = vmatprep.subr.mxu0 0.0
    %661 = vmatpush2.xpose.msra.mxu0 0.0
    %662 = vmatprep.subr.mxu0 0.0
    %663 = vmatpush2.xpose.msra.mxu0 0.0
    %664 = vmatprep.mubr.f32.mxu0 0.0
    %665 = vmatmul.mubr.f32.gmra.mxu0 %v596
    %v666 = vpop.f32.mrf.mxu0
    %v667 = vadd.f32 0.0, %v666
    %v668 = vpop.f32.mrf.mxu0
    %669 = vdwg.mxu0
    %670 = vrot.lane.b32.xlu0 %v210, 120
    %v671 = vpop.permute.xlu0 %670
    %v672 = vsel %vm215, %v210, 0
    %v674 = vsel %vm215, %v671, 0
    %676 = vmatprep.subr.mxu0 0.0
    %677 = vmatpush1.xpose.msra.mxu0 0.0
    %678 = vmatprep.subr.mxu0 0.0
    %679 = vmatpush1.xpose.msra.mxu0 0.0
    %680 = vmatprep.subr.mxu0 0.0
    %681 = vmatpush1.xpose.msra.mxu0 0.0
    %682 = vmatprep.subr.mxu0 0.0
    %683 = vmatpush1.xpose.msra.mxu0 0.0
    %684 = vmatprep.subr.mxu0 0.0
    %685 = vmatpush1.xpose.msra.mxu0 0.0
    %686 = vmatprep.subr.mxu0 0.0
    %687 = vmatpush1.xpose.msra.mxu0 0.0
    %688 = vmatprep.subr.mxu0 0.0
    %689 = vmatpush1.xpose.msra.mxu0 0.0
    %690 = vmatprep.subr.mxu0 0.0
    %691 = vmatpush1.xpose.msra.mxu0 0.0
    %692 = vmatprep.subr.mxu0 0.0
    %693 = vmatpush1.xpose.msra.mxu0 0.0
    %694 = vmatprep.subr.mxu0 0.0
    %695 = vmatpush1.xpose.msra.mxu0 0.0
    %696 = vmatprep.subr.mxu0 0.0
    %697 = vmatpush1.xpose.msra.mxu0 0.0
    %698 = vmatprep.subr.mxu0 0.0
    %699 = vmatpush1.xpose.msra.mxu0 0.0
    %700 = vmatprep.subr.mxu0 0.0
    %701 = vmatpush1.xpose.msra.mxu0 0.0
    %702 = vmatprep.subr.mxu0 0.0
    %703 = vmatpush1.xpose.msra.mxu0 0.0
    %704 = vmatprep.subr.mxu0 0.0
    %705 = vmatpush1.xpose.msra.mxu0 0.0
    %706 = vmatprep.subr.mxu0 0.0
    %707 = vmatpush1.xpose.msra.mxu0 %v674
    %708 = vmatprep.subr.mxu0 0.0
    %709 = vmatpush2.xpose.msra.mxu0 0.0
    %710 = vmatprep.subr.mxu0 0.0
    %711 = vmatpush2.xpose.msra.mxu0 0.0
    %712 = vmatprep.subr.mxu0 0.0
    %713 = vmatpush2.xpose.msra.mxu0 0.0
    %714 = vmatprep.subr.mxu0 0.0
    %715 = vmatpush2.xpose.msra.mxu0 0.0
    %716 = vmatprep.subr.mxu0 0.0
    %717 = vmatpush2.xpose.msra.mxu0 0.0
    %718 = vmatprep.subr.mxu0 0.0
    %719 = vmatpush2.xpose.msra.mxu0 0.0
    %720 = vmatprep.subr.mxu0 0.0
    %721 = vmatpush2.xpose.msra.mxu0 0.0
    %722 = vmatprep.subr.mxu0 0.0
    %723 = vmatpush2.xpose.msra.mxu0 0.0
    %724 = vmatprep.subr.mxu0 0.0
    %725 = vmatpush2.xpose.msra.mxu0 0.0
    %726 = vmatprep.subr.mxu0 0.0
    %727 = vmatpush2.xpose.msra.mxu0 0.0
    %728 = vmatprep.subr.mxu0 0.0
    %729 = vmatpush2.xpose.msra.mxu0 0.0
    %730 = vmatprep.subr.mxu0 0.0
    %731 = vmatpush2.xpose.msra.mxu0 0.0
    %732 = vmatprep.subr.mxu0 0.0
    %733 = vmatpush2.xpose.msra.mxu0 0.0
    %734 = vmatprep.subr.mxu0 0.0
    %735 = vmatpush2.xpose.msra.mxu0 0.0
    %736 = vmatprep.subr.mxu0 0.0
    %737 = vmatpush2.xpose.msra.mxu0 0.0
    %738 = vmatprep.subr.mxu0 0.0
    %739 = vmatpush2.xpose.msra.mxu0 0.0
    %740 = vmatprep.mubr.f32.mxu0 0.0
    %741 = vmatmul.mubr.f32.gmra.mxu0 %v672
    %v742 = vpop.f32.mrf.mxu0
    %v743 = vadd.f32 0.0, %v742
    %v744 = vpop.f32.mrf.mxu0
    %745 = vdwg.mxu0
    %746 = vrot.lane.b32.xlu0 %v212, 120
    %v747 = vpop.permute.xlu0 %746
    %v748 = vsel %vm215, %v212, 0
    %v750 = vsel %vm215, %v747, 0
    %752 = vmatprep.subr.mxu0 0.0
    %753 = vmatpush1.xpose.msra.mxu0 0.0
    %754 = vmatprep.subr.mxu0 0.0
    %755 = vmatpush1.xpose.msra.mxu0 0.0
    %756 = vmatprep.subr.mxu0 0.0
    %757 = vmatpush1.xpose.msra.mxu0 0.0
    %758 = vmatprep.subr.mxu0 0.0
    %759 = vmatpush1.xpose.msra.mxu0 0.0
    %760 = vmatprep.subr.mxu0 0.0
    %761 = vmatpush1.xpose.msra.mxu0 0.0
    %762 = vmatprep.subr.mxu0 0.0
    %763 = vmatpush1.xpose.msra.mxu0 0.0
    %764 = vmatprep.subr.mxu0 0.0
    %765 = vmatpush1.xpose.msra.mxu0 0.0
    %766 = vmatprep.subr.mxu0 0.0
    %767 = vmatpush1.xpose.msra.mxu0 0.0
    %768 = vmatprep.subr.mxu0 0.0
    %769 = vmatpush1.xpose.msra.mxu0 0.0
    %770 = vmatprep.subr.mxu0 0.0
    %771 = vmatpush1.xpose.msra.mxu0 0.0
    %772 = vmatprep.subr.mxu0 0.0
    %773 = vmatpush1.xpose.msra.mxu0 0.0
    %774 = vmatprep.subr.mxu0 0.0
    %775 = vmatpush1.xpose.msra.mxu0 0.0
    %776 = vmatprep.subr.mxu0 0.0
    %777 = vmatpush1.xpose.msra.mxu0 0.0
    %778 = vmatprep.subr.mxu0 0.0
    %779 = vmatpush1.xpose.msra.mxu0 0.0
    %780 = vmatprep.subr.mxu0 0.0
    %781 = vmatpush1.xpose.msra.mxu0 0.0
    %782 = vmatprep.subr.mxu0 0.0
    %783 = vmatpush1.xpose.msra.mxu0 %v750
    %784 = vmatprep.subr.mxu0 0.0
    %785 = vmatpush2.xpose.msra.mxu0 0.0
    %786 = vmatprep.subr.mxu0 0.0
    %787 = vmatpush2.xpose.msra.mxu0 0.0
    %788 = vmatprep.subr.mxu0 0.0
    %789 = vmatpush2.xpose.msra.mxu0 0.0
    %790 = vmatprep.subr.mxu0 0.0
    %791 = vmatpush2.xpose.msra.mxu0 0.0
    %792 = vmatprep.subr.mxu0 0.0
    %793 = vmatpush2.xpose.msra.mxu0 0.0
    %794 = vmatprep.subr.mxu0 0.0
    %795 = vmatpush2.xpose.msra.mxu0 0.0
    %796 = vmatprep.subr.mxu0 0.0
    %797 = vmatpush2.xpose.msra.mxu0 0.0
    %798 = vmatprep.subr.mxu0 0.0
    %799 = vmatpush2.xpose.msra.mxu0 0.0
    %800 = vmatprep.subr.mxu0 0.0
    %801 = vmatpush2.xpose.msra.mxu0 0.0
    %802 = vmatprep.subr.mxu0 0.0
    %803 = vmatpush2.xpose.msra.mxu0 0.0
    %804 = vmatprep.subr.mxu0 0.0
    %805 = vmatpush2.xpose.msra.mxu0 0.0
    %806 = vmatprep.subr.mxu0 0.0
    %807 = vmatpush2.xpose.msra.mxu0 0.0
    %808 = vmatprep.subr.mxu0 0.0
    %809 = vmatpush2.xpose.msra.mxu0 0.0
    %810 = vmatprep.subr.mxu0 0.0
    %811 = vmatpush2.xpose.msra.mxu0 0.0
    %812 = vmatprep.subr.mxu0 0.0
    %813 = vmatpush2.xpose.msra.mxu0 0.0
    %814 = vmatprep.subr.mxu0 0.0
    %815 = vmatpush2.xpose.msra.mxu0 0.0
    %816 = vmatprep.mubr.f32.mxu0 0.0
    %817 = vmatmul.mubr.f32.gmra.mxu0 %v748
    %v818 = vpop.f32.mrf.mxu0
    %v819 = vadd.f32 0.0, %v818
    %v820 = vpop.f32.mrf.mxu0
    %821 = vdwg.mxu0
    %v822 = vld [vmem:[#allocation7] sm:$0xff]
    %v823 = vld [vmem:[#allocation7 + $0x8] sm:$0xff]
    %v824 = vld [vmem:[#allocation8] sm:$0xff]
    %v825 = vld [vmem:[#allocation8 + $0x8] sm:$0xff]
    %v826 = vld [vmem:[%s6] sm:$0x1]
    %v827 = vld [vmem:[%s6 + $0x1] sm:$0x1]
    %v828 = vld [vmem:[%s6 + $0x2] sm:$0x1]
    %v829 = vld [vmem:[%s6 + $0x3] sm:$0x1]
    %vm830 = vcmp.eq.s32.totalorder %v822, 0
    %vm831 = vcmp.eq.s32.totalorder %v823, 0
    %vm832 = vcmp.eq.s32.totalorder %v822, 1
    %vm833 = vcmp.eq.s32.totalorder %v823, 1
    %vm834 = vcmp.eq.s32.totalorder %v822, 2
    %vm835 = vcmp.eq.s32.totalorder %v823, 2
    %vm836 = vcmp.eq.s32.totalorder %v822, 3
    %vm837 = vcmp.eq.s32.totalorder %v823, 3
    %vm838 = vcmp.eq.s32.totalorder %v824, 0
    %vm839 = vcmp.eq.s32.totalorder %v825, 0
    %v840 = vsel %vm838, 1, 0
    %v841 = vsel %vm839, 1, 0
    %vm842 = vcmp.eq.s32.totalorder %v840, 1
    %vm843 = vcmp.eq.s32.totalorder %v841, 1
    %v848 = vlaneseq
    %v849 = vshrl.u32 %v848, 7
    %v850 = vsub.s32 0, %v849
    %v851 = vrot.slane %v826, %v850
    %v852 = vlaneseq
    %v853 = vshrl.u32 %v852, 7
    %v854 = vsub.s32 0, %v853
    %v855 = vrot.slane %v827, %v854
    %v856 = vlaneseq
    %v857 = vshrl.u32 %v856, 7
    %v858 = vsub.s32 0, %v857
    %v859 = vrot.slane %v828, %v858
    %v860 = vlaneseq
    %v861 = vshrl.u32 %v860, 7
    %v862 = vsub.s32 0, %v861
    %v863 = vrot.slane %v829, %v862
    %864 = vset.pattern.permute.xlu0 0
    %865 = vperm.xlu0 %864, %v851
    %v866 = vpop.permute.xlu0 %865
    %868 = vset.pattern.permute.xlu0 0
    %869 = vperm.xlu0 %868, %v855
    %v870 = vpop.permute.xlu0 %869
    %872 = vset.pattern.permute.xlu0 0
    %873 = vperm.xlu0 %872, %v859
    %v874 = vpop.permute.xlu0 %873
    %876 = vset.pattern.permute.xlu0 0
    %877 = vperm.xlu0 %876, %v863
    %v878 = vpop.permute.xlu0 %877
    %v880 = vsel %vm842, %v866, 0.0
    %v881 = vsel %vm843, %v866, 0.0
    %v882 = vsel %vm842, %v870, 0.0
    %v883 = vsel %vm843, %v870, 0.0
    %v884 = vsel %vm842, %v874, 0.0
    %v885 = vsel %vm843, %v874, 0.0
    %v886 = vsel %vm842, %v878, 0.0
    %v887 = vsel %vm843, %v878, 0.0
    %v888 = vadd.f32 %v880, 0.0
    %v889 = vadd.f32 %v881, 0.0
    %v890 = vadd.f32 %v882, 0.0
    %v891 = vadd.f32 %v883, 0.0
    %v892 = vadd.f32 %v884, 0.0
    %v893 = vadd.f32 %v885, 0.0
    %v894 = vadd.f32 %v886, 0.0
    %v895 = vadd.f32 %v887, 0.0
    %vm896 = vcmp.eq.s32.totalorder %v824, 1
    %vm897 = vcmp.eq.s32.totalorder %v825, 1
    %v898 = vsel %vm896, 1, 0
    %v899 = vsel %vm897, 1, 0
    %vm900 = vcmp.eq.s32.totalorder %v898, 1
    %vm901 = vcmp.eq.s32.totalorder %v899, 1
    %902 = vset.pattern.permute.xlu0 1
    %903 = vperm.xlu0 %902, %v851
    %v904 = vpop.permute.xlu0 %903
    %906 = vset.pattern.permute.xlu0 1
    %907 = vperm.xlu0 %906, %v855
    %v908 = vpop.permute.xlu0 %907
    %910 = vset.pattern.permute.xlu0 1
    %911 = vperm.xlu0 %910, %v859
    %v912 = vpop.permute.xlu0 %911
    %914 = vset.pattern.permute.xlu0 1
    %915 = vperm.xlu0 %914, %v863
    %v916 = vpop.permute.xlu0 %915
    %v918 = vsel %vm900, %v904, 0.0
    %v919 = vsel %vm901, %v904, 0.0
    %v920 = vsel %vm900, %v908, 0.0
    %v921 = vsel %vm901, %v908, 0.0
    %v922 = vsel %vm900, %v912, 0.0
    %v923 = vsel %vm901, %v912, 0.0
    %v924 = vsel %vm900, %v916, 0.0
    %v925 = vsel %vm901, %v916, 0.0
    %v926 = vadd.f32 %v888, %v918
    %v927 = vadd.f32 %v889, %v919
    %v928 = vadd.f32 %v890, %v920
    %v929 = vadd.f32 %v891, %v921
    %v930 = vadd.f32 %v892, %v922
    %v931 = vadd.f32 %v893, %v923
    %v932 = vadd.f32 %v894, %v924
    %v933 = vadd.f32 %v895, %v925
    %vm934 = vcmp.eq.s32.totalorder %v824, 2
    %vm935 = vcmp.eq.s32.totalorder %v825, 2
    %v936 = vsel %vm934, 1, 0
    %v937 = vsel %vm935, 1, 0
    %vm938 = vcmp.eq.s32.totalorder %v936, 1
    %vm939 = vcmp.eq.s32.totalorder %v937, 1
    %940 = vset.pattern.permute.xlu0 2
    %941 = vperm.xlu0 %940, %v851
    %v942 = vpop.permute.xlu0 %941
    %944 = vset.pattern.permute.xlu0 2
    %945 = vperm.xlu0 %944, %v855
    %v946 = vpop.permute.xlu0 %945
    %948 = vset.pattern.permute.xlu0 2
    %949 = vperm.xlu0 %948, %v859
    %v950 = vpop.permute.xlu0 %949
    %952 = vset.pattern.permute.xlu0 2
    %953 = vperm.xlu0 %952, %v863
    %v954 = vpop.permute.xlu0 %953
    %v956 = vsel %vm938, %v942, 0.0
    %v957 = vsel %vm939, %v942, 0.0
    %v958 = vsel %vm938, %v946, 0.0
    %v959 = vsel %vm939, %v946, 0.0
    %v960 = vsel %vm938, %v950, 0.0
    %v961 = vsel %vm939, %v950, 0.0
    %v962 = vsel %vm938, %v954, 0.0
    %v963 = vsel %vm939, %v954, 0.0
    %v964 = vadd.f32 %v926, %v956
    %v965 = vadd.f32 %v927, %v957
    %v966 = vadd.f32 %v928, %v958
    %v967 = vadd.f32 %v929, %v959
    %v968 = vadd.f32 %v930, %v960
    %v969 = vadd.f32 %v931, %v961
    %v970 = vadd.f32 %v932, %v962
    %v971 = vadd.f32 %v933, %v963
    %vm972 = vcmp.eq.s32.totalorder %v824, 3
    %vm973 = vcmp.eq.s32.totalorder %v825, 3
    %v974 = vsel %vm972, 1, 0
    %v975 = vsel %vm973, 1, 0
    %vm976 = vcmp.eq.s32.totalorder %v974, 1
    %vm977 = vcmp.eq.s32.totalorder %v975, 1
    %978 = vset.pattern.permute.xlu0 3
    %979 = vperm.xlu0 %978, %v851
    %v980 = vpop.permute.xlu0 %979
    %982 = vset.pattern.permute.xlu0 3
    %983 = vperm.xlu0 %982, %v855
    %v984 = vpop.permute.xlu0 %983
    %986 = vset.pattern.permute.xlu0 3
    %987 = vperm.xlu0 %986, %v859
    %v988 = vpop.permute.xlu0 %987
    %990 = vset.pattern.permute.xlu0 3
    %991 = vperm.xlu0 %990, %v863
    %v992 = vpop.permute.xlu0 %991
    %v994 = vsel %vm976, %v980, 0.0
    %v995 = vsel %vm977, %v980, 0.0
    %v996 = vsel %vm976, %v984, 0.0
    %v997 = vsel %vm977, %v984, 0.0
    %v998 = vsel %vm976, %v988, 0.0
    %v999 = vsel %vm977, %v988, 0.0
    %v1000 = vsel %vm976, %v992, 0.0
    %v1001 = vsel %vm977, %v992, 0.0
    %v1002 = vadd.f32 %v964, %v994
    %v1003 = vadd.f32 %v965, %v995
    %v1004 = vadd.f32 %v966, %v996
    %v1005 = vadd.f32 %v967, %v997
    %v1006 = vadd.f32 %v968, %v998
    %v1007 = vadd.f32 %v969, %v999
    %v1008 = vadd.f32 %v970, %v1000
    %v1009 = vadd.f32 %v971, %v1001
    %v1010 = vsel %vm830, 1, 0
    %v1011 = vsel %vm831, 1, 0
    %vm1012 = vcmp.eq.s32.totalorder %v1010, 1
    %vm1013 = vcmp.eq.s32.totalorder %v1011, 1
    %1014 = vset.pattern.permute.xlu0 24
    %1015 = vperm.xlu0 %1014, %v191
    %v1016 = vpop.permute.xlu0 %1015
    %1018 = vset.pattern.permute.xlu0 24
    %1019 = vperm.xlu0 %1018, %v196
    %v1020 = vpop.permute.xlu0 %1019
    %1022 = vset.pattern.permute.xlu0 24
    %1023 = vperm.xlu0 %1022, %v202
    %v1024 = vpop.permute.xlu0 %1023
    %1026 = vset.pattern.permute.xlu0 24
    %1027 = vperm.xlu0 %1026, %v204
    %v1028 = vpop.permute.xlu0 %1027
    %1030 = vset.pattern.permute.xlu0 24
    %1031 = vperm.xlu0 %1030, %v206
    %v1032 = vpop.permute.xlu0 %1031
    %1034 = vset.pattern.permute.xlu0 24
    %1035 = vperm.xlu0 %1034, %v208
    %v1036 = vpop.permute.xlu0 %1035
    %1038 = vset.pattern.permute.xlu0 24
    %1039 = vperm.xlu0 %1038, %v210
    %v1040 = vpop.permute.xlu0 %1039
    %1042 = vset.pattern.permute.xlu0 24
    %1043 = vperm.xlu0 %1042, %v212
    %v1044 = vpop.permute.xlu0 %1043
    %v1046 = vsel %vm1012, %v1016, 0.0
    %v1047 = vsel %vm1013, %v1020, 0.0
    %v1048 = vsel %vm1012, %v1024, 0.0
    %v1049 = vsel %vm1013, %v1028, 0.0
    %v1050 = vsel %vm1012, %v1032, 0.0
    %v1051 = vsel %vm1013, %v1036, 0.0
    %v1052 = vsel %vm1012, %v1040, 0.0
    %v1053 = vsel %vm1013, %v1044, 0.0
    %v1054 = vadd.f32 %v1046, 0.0
    %v1055 = vadd.f32 %v1047, 0.0
    %v1056 = vadd.f32 %v1048, 0.0
    %v1057 = vadd.f32 %v1049, 0.0
    %v1058 = vadd.f32 %v1050, 0.0
    %v1059 = vadd.f32 %v1051, 0.0
    %v1060 = vadd.f32 %v1052, 0.0
    %v1061 = vadd.f32 %v1053, 0.0
    %v1062 = vsel %vm832, 1, 0
    %v1063 = vsel %vm833, 1, 0
    %vm1064 = vcmp.eq.s32.totalorder %v1062, 1
    %vm1065 = vcmp.eq.s32.totalorder %v1063, 1
    %1066 = vset.pattern.permute.xlu0 25
    %1067 = vperm.xlu0 %1066, %v191
    %v1068 = vpop.permute.xlu0 %1067
    %1070 = vset.pattern.permute.xlu0 25
    %1071 = vperm.xlu0 %1070, %v196
    %v1072 = vpop.permute.xlu0 %1071
    %1074 = vset.pattern.permute.xlu0 25
    %1075 = vperm.xlu0 %1074, %v202
    %v1076 = vpop.permute.xlu0 %1075
    %1078 = vset.pattern.permute.xlu0 25
    %1079 = vperm.xlu0 %1078, %v204
    %v1080 = vpop.permute.xlu0 %1079
    %1082 = vset.pattern.permute.xlu0 25
    %1083 = vperm.xlu0 %1082, %v206
    %v1084 = vpop.permute.xlu0 %1083
    %1086 = vset.pattern.permute.xlu0 25
    %1087 = vperm.xlu0 %1086, %v208
    %v1088 = vpop.permute.xlu0 %1087
    %1090 = vset.pattern.permute.xlu0 25
    %1091 = vperm.xlu0 %1090, %v210
    %v1092 = vpop.permute.xlu0 %1091
    %1094 = vset.pattern.permute.xlu0 25
    %1095 = vperm.xlu0 %1094, %v212
    %v1096 = vpop.permute.xlu0 %1095
    %v1098 = vsel %vm1064, %v1068, 0.0
    %v1099 = vsel %vm1065, %v1072, 0.0
    %v1100 = vsel %vm1064, %v1076, 0.0
    %v1101 = vsel %vm1065, %v1080, 0.0
    %v1102 = vsel %vm1064, %v1084, 0.0
    %v1103 = vsel %vm1065, %v1088, 0.0
    %v1104 = vsel %vm1064, %v1092, 0.0
    %v1105 = vsel %vm1065, %v1096, 0.0
    %v1106 = vadd.f32 %v1054, %v1098
    %v1107 = vadd.f32 %v1055, %v1099
    %v1108 = vadd.f32 %v1056, %v1100
    %v1109 = vadd.f32 %v1057, %v1101
    %v1110 = vadd.f32 %v1058, %v1102
    %v1111 = vadd.f32 %v1059, %v1103
    %v1112 = vadd.f32 %v1060, %v1104
    %v1113 = vadd.f32 %v1061, %v1105
    %v1114 = vsel %vm834, 1, 0
    %v1115 = vsel %vm835, 1, 0
    %vm1116 = vcmp.eq.s32.totalorder %v1114, 1
    %vm1117 = vcmp.eq.s32.totalorder %v1115, 1
    %1118 = vset.pattern.permute.xlu0 26
    %1119 = vperm.xlu0 %1118, %v191
    %v1120 = vpop.permute.xlu0 %1119
    %1122 = vset.pattern.permute.xlu0 26
    %1123 = vperm.xlu0 %1122, %v196
    %v1124 = vpop.permute.xlu0 %1123
    %1126 = vset.pattern.permute.xlu0 26
    %1127 = vperm.xlu0 %1126, %v202
    %v1128 = vpop.permute.xlu0 %1127
    %1130 = vset.pattern.permute.xlu0 26
    %1131 = vperm.xlu0 %1130, %v204
    %v1132 = vpop.permute.xlu0 %1131
    %1134 = vset.pattern.permute.xlu0 26
    %1135 = vperm.xlu0 %1134, %v206
    %v1136 = vpop.permute.xlu0 %1135
    %1138 = vset.pattern.permute.xlu0 26
    %1139 = vperm.xlu0 %1138, %v208
    %v1140 = vpop.permute.xlu0 %1139
    %1142 = vset.pattern.permute.xlu0 26
    %1143 = vperm.xlu0 %1142, %v210
    %v1144 = vpop.permute.xlu0 %1143
    %1146 = vset.pattern.permute.xlu0 26
    %1147 = vperm.xlu0 %1146, %v212
    %v1148 = vpop.permute.xlu0 %1147
    %v1150 = vsel %vm1116, %v1120, 0.0
    %v1151 = vsel %vm1117, %v1124, 0.0
    %v1152 = vsel %vm1116, %v1128, 0.0
    %v1153 = vsel %vm1117, %v1132, 0.0
    %v1154 = vsel %vm1116, %v1136, 0.0
    %v1155 = vsel %vm1117, %v1140, 0.0
    %v1156 = vsel %vm1116, %v1144, 0.0
    %v1157 = vsel %vm1117, %v1148, 0.0
    %v1158 = vadd.f32 %v1106, %v1150
    %v1159 = vadd.f32 %v1107, %v1151
    %v1160 = vadd.f32 %v1108, %v1152
    %v1161 = vadd.f32 %v1109, %v1153
    %v1162 = vadd.f32 %v1110, %v1154
    %v1163 = vadd.f32 %v1111, %v1155
    %v1164 = vadd.f32 %v1112, %v1156
    %v1165 = vadd.f32 %v1113, %v1157
    %v1166 = vsel %vm836, 1, 0
    %v1167 = vsel %vm837, 1, 0
    %vm1168 = vcmp.eq.s32.totalorder %v1166, 1
    %vm1169 = vcmp.eq.s32.totalorder %v1167, 1
    %1170 = vset.pattern.permute.xlu0 27
    %1171 = vperm.xlu0 %1170, %v191
    %v1172 = vpop.permute.xlu0 %1171
    %1174 = vset.pattern.permute.xlu0 27
    %1175 = vperm.xlu0 %1174, %v196
    %v1176 = vpop.permute.xlu0 %1175
    %1178 = vset.pattern.permute.xlu0 27
    %1179 = vperm.xlu0 %1178, %v202
    %v1180 = vpop.permute.xlu0 %1179
    %1182 = vset.pattern.permute.xlu0 27
    %1183 = vperm.xlu0 %1182, %v204
    %v1184 = vpop.permute.xlu0 %1183
    %1186 = vset.pattern.permute.xlu0 27
    %1187 = vperm.xlu0 %1186, %v206
    %v1188 = vpop.permute.xlu0 %1187
    %1190 = vset.pattern.permute.xlu0 27
    %1191 = vperm.xlu0 %1190, %v208
    %v1192 = vpop.permute.xlu0 %1191
    %1194 = vset.pattern.permute.xlu0 27
    %1195 = vperm.xlu0 %1194, %v210
    %v1196 = vpop.permute.xlu0 %1195
    %1198 = vset.pattern.permute.xlu0 27
    %1199 = vperm.xlu0 %1198, %v212
    %v1200 = vpop.permute.xlu0 %1199
    %v1202 = vsel %vm1168, %v1172, 0.0
    %v1203 = vsel %vm1169, %v1176, 0.0
    %v1204 = vsel %vm1168, %v1180, 0.0
    %v1205 = vsel %vm1169, %v1184, 0.0
    %v1206 = vsel %vm1168, %v1188, 0.0
    %v1207 = vsel %vm1169, %v1192, 0.0
    %v1208 = vsel %vm1168, %v1196, 0.0
    %v1209 = vsel %vm1169, %v1200, 0.0
    %v1210 = vadd.f32 %v1158, %v1202
    %v1211 = vadd.f32 %v1159, %v1203
    %v1212 = vadd.f32 %v1160, %v1204
    %v1213 = vadd.f32 %v1161, %v1205
    %v1214 = vadd.f32 %v1162, %v1206
    %v1215 = vadd.f32 %v1163, %v1207
    %v1216 = vadd.f32 %v1164, %v1208
    %v1217 = vadd.f32 %v1165, %v1209
    %v1218 = vmul.f32 %v1002, %v1210
    %v1219 = vmul.f32 %v1003, %v1211
    %v1220 = vmul.f32 %v1004, %v1212
    %v1221 = vmul.f32 %v1005, %v1213
    %v1222 = vmul.f32 %v1006, %v1214
    %v1223 = vmul.f32 %v1007, %v1215
    %v1224 = vmul.f32 %v1008, %v1216
    %v1225 = vmul.f32 %v1009, %v1217
    %v1226 = vadd.f32 %v287, %v1218
    %v1227 = vadd.f32 %v363, %v1219
    %v1228 = vadd.f32 %v439, %v1220
    %v1229 = vadd.f32 %v515, %v1221
    %v1230 = vadd.f32 %v591, %v1222
    %v1231 = vadd.f32 %v667, %v1223
    %v1232 = vadd.f32 %v743, %v1224
    %v1233 = vadd.f32 %v819, %v1225
    %v1234 = vld [vmem:[#allocation5] sm:$0x1]
    %v1235 = vld [vmem:[#allocation5 + $0x1] sm:$0x1]
    %v1238 = vlaneseq
    %v1239 = vshrl.u32 %v1238, 7
    %v1240 = vsub.s32 0, %v1239
    %v1241 = vrot.slane %v1234, %v1240
    %v1242 = vlaneseq
    %v1243 = vshrl.u32 %v1242, 7
    %v1244 = vsub.s32 0, %v1243
    %v1245 = vrot.slane %v1235, %v1244
    %v1248 = vadd.f32 %v1226, %v1241
    %v1249 = vadd.f32 %v1227, %v1245
    %v1250 = vadd.f32 %v1228, %v1241
    %v1251 = vadd.f32 %v1229, %v1245
    %v1252 = vadd.f32 %v1230, %v1241
    %v1253 = vadd.f32 %v1231, %v1245
    %v1254 = vadd.f32 %v1232, %v1241
    %v1255 = vadd.f32 %v1233, %v1245
    %v1256 = vsel %vm215, %v1248, -inf
    %1257 = vmax.xlane.f32.xlu0 %v1256
    %v1258 = vpop.xlane.xlu0 %1257
    %v1259 = vsel %vm215, %v1249, -inf
    %1260 = vmax.xlane.f32.xlu0 %v1259
    %v1261 = vpop.xlane.xlu0 %1260
    %v1262 = vsel %vm215, %v1250, -inf
    %1263 = vmax.xlane.f32.xlu0 %v1262
    %v1264 = vpop.xlane.xlu0 %1263
    %v1265 = vsel %vm215, %v1251, -inf
    %1266 = vmax.xlane.f32.xlu0 %v1265
    %v1267 = vpop.xlane.xlu0 %1266
    %v1268 = vsel %vm215, %v1252, -inf
    %1269 = vmax.xlane.f32.xlu0 %v1268
    %v1270 = vpop.xlane.xlu0 %1269
    %v1271 = vsel %vm215, %v1253, -inf
    %1272 = vmax.xlane.f32.xlu0 %v1271
    %v1273 = vpop.xlane.xlu0 %1272
    %v1274 = vsel %vm215, %v1254, -inf
    %1275 = vmax.xlane.f32.xlu0 %v1274
    %v1276 = vpop.xlane.xlu0 %1275
    %v1277 = vsel %vm215, %v1255, -inf
    %1278 = vmax.xlane.f32.xlu0 %v1277
    %v1279 = vpop.xlane.xlu0 %1278
    %v1280 = vsub.f32 %v1248, %v1258
    %v1281 = vsub.f32 %v1249, %v1261
    %v1282 = vsub.f32 %v1250, %v1264
    %v1283 = vsub.f32 %v1251, %v1267
    %v1284 = vsub.f32 %v1252, %v1270
    %v1285 = vsub.f32 %v1253, %v1273
    %v1286 = vsub.f32 %v1254, %v1276
    %v1287 = vsub.f32 %v1255, %v1279
    %v1288 = vmul.f32 %v1280, 1.442695
    %v1289 = vpow.pop %v1288
    %v1290 = vmul.f32 %v1281, 1.442695
    %v1291 = vpow.pop %v1290
    %v1292 = vmul.f32 %v1282, 1.442695
    %v1293 = vpow.pop %v1292
    %v1294 = vmul.f32 %v1283, 1.442695
    %v1295 = vpow.pop %v1294
    %v1296 = vmul.f32 %v1284, 1.442695
    %v1297 = vpow.pop %v1296
    %v1298 = vmul.f32 %v1285, 1.442695
    %v1299 = vpow.pop %v1298
    %v1300 = vmul.f32 %v1286, 1.442695
    %v1301 = vpow.pop %v1300
    %v1302 = vmul.f32 %v1287, 1.442695
    %v1303 = vpow.pop %v1302
    %v1304 = vsel %vm215, %v1289, 0.0
    %1305 = vadd.xlane.f32.xlu0 %v1304
    %v1306 = vpop.xlane.xlu0 %1305
    %v1307 = vsel %vm215, %v1291, 0.0
    %1308 = vadd.xlane.f32.xlu0 %v1307
    %v1309 = vpop.xlane.xlu0 %1308
    %v1310 = vsel %vm215, %v1293, 0.0
    %1311 = vadd.xlane.f32.xlu0 %v1310
    %v1312 = vpop.xlane.xlu0 %1311
    %v1313 = vsel %vm215, %v1295, 0.0
    %1314 = vadd.xlane.f32.xlu0 %v1313
    %v1315 = vpop.xlane.xlu0 %1314
    %v1316 = vsel %vm215, %v1297, 0.0
    %1317 = vadd.xlane.f32.xlu0 %v1316
    %v1318 = vpop.xlane.xlu0 %1317
    %v1319 = vsel %vm215, %v1299, 0.0
    %1320 = vadd.xlane.f32.xlu0 %v1319
    %v1321 = vpop.xlane.xlu0 %1320
    %v1322 = vsel %vm215, %v1301, 0.0
    %1323 = vadd.xlane.f32.xlu0 %v1322
    %v1324 = vpop.xlane.xlu0 %1323
    %v1325 = vsel %vm215, %v1303, 0.0
    %1326 = vadd.xlane.f32.xlu0 %v1325
    %v1327 = vpop.xlane.xlu0 %1326
    %v1328 = vrcp.pop %v1306
    %v1329 = vrcp.pop %v1309
    %v1330 = vrcp.pop %v1312
    %v1331 = vrcp.pop %v1315
    %v1332 = vrcp.pop %v1318
    %v1333 = vrcp.pop %v1321
    %v1334 = vrcp.pop %v1324
    %v1335 = vrcp.pop %v1327
    %v1336 = vmul.f32 %v1306, %v1328
    %v1337 = vmul.f32 %v1309, %v1329
    %v1338 = vmul.f32 %v1312, %v1330
    %v1339 = vmul.f32 %v1315, %v1331
    %v1340 = vmul.f32 %v1318, %v1332
    %v1341 = vmul.f32 %v1321, %v1333
    %v1342 = vmul.f32 %v1324, %v1334
    %v1343 = vmul.f32 %v1327, %v1335
    %v1344 = vsub.f32 2.0, %v1336
    %v1345 = vsub.f32 2.0, %v1337
    %v1346 = vsub.f32 2.0, %v1338
    %v1347 = vsub.f32 2.0, %v1339
    %v1348 = vsub.f32 2.0, %v1340
    %v1349 = vsub.f32 2.0, %v1341
    %v1350 = vsub.f32 2.0, %v1342
    %v1351 = vsub.f32 2.0, %v1343
    %v1352 = vmul.f32 %v1328, %v1344
    %v1353 = vmul.f32 %v1329, %v1345
    %v1354 = vmul.f32 %v1330, %v1346
    %v1355 = vmul.f32 %v1331, %v1347
    %v1356 = vmul.f32 %v1332, %v1348
    %v1357 = vmul.f32 %v1333, %v1349
    %v1358 = vmul.f32 %v1334, %v1350
    %v1359 = vmul.f32 %v1335, %v1351
    %v1360 = vmul.f32 %v1289, %v1352
    %v1361 = vmul.f32 %v1291, %v1353
    %v1362 = vmul.f32 %v1293, %v1354
    %v1363 = vmul.f32 %v1295, %v1355
    %v1364 = vmul.f32 %v1297, %v1356
    %v1365 = vmul.f32 %v1299, %v1357
    %v1366 = vmul.f32 %v1301, %v1358
    %v1367 = vmul.f32 %v1303, %v1359
    %1368 = vrot.lane.b32.xlu0 %v191, 112
    %v1369 = vpop.permute.xlu0 %1368
    %v1372 = vsel %vm215, %v1360, 0
    %1374 = vmatprep.subr.mxu0 0.0
    %1375 = vmatpush1.msra.mxu0 0.0
    %1376 = vmatprep.subr.mxu0 0.0
    %1377 = vmatpush1.msra.mxu0 0.0
    %1378 = vmatprep.subr.mxu0 0.0
    %1379 = vmatpush1.msra.mxu0 0.0
    %1380 = vmatprep.subr.mxu0 0.0
    %1381 = vmatpush1.msra.mxu0 0.0
    %1382 = vmatprep.subr.mxu0 0.0
    %1383 = vmatpush1.msra.mxu0 0.0
    %1384 = vmatprep.subr.mxu0 0.0
    %1385 = vmatpush1.msra.mxu0 0.0
    %1386 = vmatprep.subr.mxu0 0.0
    %1387 = vmatpush1.msra.mxu0 0.0
    %1388 = vmatprep.subr.mxu0 0.0
    %1389 = vmatpush1.msra.mxu0 0.0
    %1390 = vmatprep.subr.mxu0 0.0
    %1391 = vmatpush1.msra.mxu0 0.0
    %1392 = vmatprep.subr.mxu0 0.0
    %1393 = vmatpush1.msra.mxu0 0.0
    %1394 = vmatprep.subr.mxu0 0.0
    %1395 = vmatpush1.msra.mxu0 0.0
    %1396 = vmatprep.subr.mxu0 0.0
    %1397 = vmatpush1.msra.mxu0 0.0
    %1398 = vmatprep.subr.mxu0 0.0
    %1399 = vmatpush1.msra.mxu0 0.0
    %1400 = vmatprep.subr.mxu0 0.0
    %1401 = vmatpush1.msra.mxu0 0.0
    %1402 = vmatprep.subr.mxu0 0.0
    %1403 = vmatpush1.msra.mxu0 0.0
    %1404 = vmatprep.subr.mxu0 0.0
    %1405 = vmatpush1.msra.mxu0 %v1369
    %1406 = vmatprep.subr.mxu0 0.0
    %1407 = vmatpush2.msra.mxu0 0.0
    %1408 = vmatprep.subr.mxu0 0.0
    %1409 = vmatpush2.msra.mxu0 0.0
    %1410 = vmatprep.subr.mxu0 0.0
    %1411 = vmatpush2.msra.mxu0 0.0
    %1412 = vmatprep.subr.mxu0 0.0
    %1413 = vmatpush2.msra.mxu0 0.0
    %1414 = vmatprep.subr.mxu0 0.0
    %1415 = vmatpush2.msra.mxu0 0.0
    %1416 = vmatprep.subr.mxu0 0.0
    %1417 = vmatpush2.msra.mxu0 0.0
    %1418 = vmatprep.subr.mxu0 0.0
    %1419 = vmatpush2.msra.mxu0 0.0
    %1420 = vmatprep.subr.mxu0 0.0
    %1421 = vmatpush2.msra.mxu0 0.0
    %1422 = vmatprep.subr.mxu0 0.0
    %1423 = vmatpush2.msra.mxu0 0.0
    %1424 = vmatprep.subr.mxu0 0.0
    %1425 = vmatpush2.msra.mxu0 0.0
    %1426 = vmatprep.subr.mxu0 0.0
    %1427 = vmatpush2.msra.mxu0 0.0
    %1428 = vmatprep.subr.mxu0 0.0
    %1429 = vmatpush2.msra.mxu0 0.0
    %1430 = vmatprep.subr.mxu0 0.0
    %1431 = vmatpush2.msra.mxu0 0.0
    %1432 = vmatprep.subr.mxu0 0.0
    %1433 = vmatpush2.msra.mxu0 0.0
    %1434 = vmatprep.subr.mxu0 0.0
    %1435 = vmatpush2.msra.mxu0 0.0
    %1436 = vmatprep.subr.mxu0 0.0
    %1437 = vmatpush2.msra.mxu0 0.0
    %1438 = vmatprep.mubr.f32.mxu0 0.0
    %1439 = vmatmul.mubr.f32.gmra.mxu0 %v1372
    %v1440 = vpop.f32.mrf.mxu0
    %v1441 = vadd.f32 0.0, %v1440
    %v1442 = vpop.f32.mrf.mxu0
    %1443 = vdwg.mxu0
    %1444 = vrot.lane.b32.xlu0 %v196, 112
    %v1445 = vpop.permute.xlu0 %1444
    %v1448 = vsel %vm215, %v1361, 0
    %1450 = vmatprep.subr.mxu0 0.0
    %1451 = vmatpush1.msra.mxu0 0.0
    %1452 = vmatprep.subr.mxu0 0.0
    %1453 = vmatpush1.msra.mxu0 0.0
    %1454 = vmatprep.subr.mxu0 0.0
    %1455 = vmatpush1.msra.mxu0 0.0
    %1456 = vmatprep.subr.mxu0 0.0
    %1457 = vmatpush1.msra.mxu0 0.0
    %1458 = vmatprep.subr.mxu0 0.0
    %1459 = vmatpush1.msra.mxu0 0.0
    %1460 = vmatprep.subr.mxu0 0.0
    %1461 = vmatpush1.msra.mxu0 0.0
    %1462 = vmatprep.subr.mxu0 0.0
    %1463 = vmatpush1.msra.mxu0 0.0
    %1464 = vmatprep.subr.mxu0 0.0
    %1465 = vmatpush1.msra.mxu0 0.0
    %1466 = vmatprep.subr.mxu0 0.0
    %1467 = vmatpush1.msra.mxu0 0.0
    %1468 = vmatprep.subr.mxu0 0.0
    %1469 = vmatpush1.msra.mxu0 0.0
    %1470 = vmatprep.subr.mxu0 0.0
    %1471 = vmatpush1.msra.mxu0 0.0
    %1472 = vmatprep.subr.mxu0 0.0
    %1473 = vmatpush1.msra.mxu0 0.0
    %1474 = vmatprep.subr.mxu0 0.0
    %1475 = vmatpush1.msra.mxu0 0.0
    %1476 = vmatprep.subr.mxu0 0.0
    %1477 = vmatpush1.msra.mxu0 0.0
    %1478 = vmatprep.subr.mxu0 0.0
    %1479 = vmatpush1.msra.mxu0 0.0
    %1480 = vmatprep.subr.mxu0 0.0
    %1481 = vmatpush1.msra.mxu0 %v1445
    %1482 = vmatprep.subr.mxu0 0.0
    %1483 = vmatpush2.msra.mxu0 0.0
    %1484 = vmatprep.subr.mxu0 0.0
    %1485 = vmatpush2.msra.mxu0 0.0
    %1486 = vmatprep.subr.mxu0 0.0
    %1487 = vmatpush2.msra.mxu0 0.0
    %1488 = vmatprep.subr.mxu0 0.0
    %1489 = vmatpush2.msra.mxu0 0.0
    %1490 = vmatprep.subr.mxu0 0.0
    %1491 = vmatpush2.msra.mxu0 0.0
    %1492 = vmatprep.subr.mxu0 0.0
    %1493 = vmatpush2.msra.mxu0 0.0
    %1494 = vmatprep.subr.mxu0 0.0
    %1495 = vmatpush2.msra.mxu0 0.0
    %1496 = vmatprep.subr.mxu0 0.0
    %1497 = vmatpush2.msra.mxu0 0.0
    %1498 = vmatprep.subr.mxu0 0.0
    %1499 = vmatpush2.msra.mxu0 0.0
    %1500 = vmatprep.subr.mxu0 0.0
    %1501 = vmatpush2.msra.mxu0 0.0
    %1502 = vmatprep.subr.mxu0 0.0
    %1503 = vmatpush2.msra.mxu0 0.0
    %1504 = vmatprep.subr.mxu0 0.0
    %1505 = vmatpush2.msra.mxu0 0.0
    %1506 = vmatprep.subr.mxu0 0.0
    %1507 = vmatpush2.msra.mxu0 0.0
    %1508 = vmatprep.subr.mxu0 0.0
    %1509 = vmatpush2.msra.mxu0 0.0
    %1510 = vmatprep.subr.mxu0 0.0
    %1511 = vmatpush2.msra.mxu0 0.0
    %1512 = vmatprep.subr.mxu0 0.0
    %1513 = vmatpush2.msra.mxu0 0.0
    %1514 = vmatprep.mubr.f32.mxu0 0.0
    %1515 = vmatmul.mubr.f32.gmra.mxu0 %v1448
    %v1516 = vpop.f32.mrf.mxu0
    %v1517 = vadd.f32 0.0, %v1516
    %v1518 = vpop.f32.mrf.mxu0
    %1519 = vdwg.mxu0
    %1520 = vrot.lane.b32.xlu0 %v202, 112
    %v1521 = vpop.permute.xlu0 %1520
    %v1524 = vsel %vm215, %v1362, 0
    %1526 = vmatprep.subr.mxu0 0.0
    %1527 = vmatpush1.msra.mxu0 0.0
    %1528 = vmatprep.subr.mxu0 0.0
    %1529 = vmatpush1.msra.mxu0 0.0
    %1530 = vmatprep.subr.mxu0 0.0
    %1531 = vmatpush1.msra.mxu0 0.0
    %1532 = vmatprep.subr.mxu0 0.0
    %1533 = vmatpush1.msra.mxu0 0.0
    %1534 = vmatprep.subr.mxu0 0.0
    %1535 = vmatpush1.msra.mxu0 0.0
    %1536 = vmatprep.subr.mxu0 0.0
    %1537 = vmatpush1.msra.mxu0 0.0
    %1538 = vmatprep.subr.mxu0 0.0
    %1539 = vmatpush1.msra.mxu0 0.0
    %1540 = vmatprep.subr.mxu0 0.0
    %1541 = vmatpush1.msra.mxu0 0.0
    %1542 = vmatprep.subr.mxu0 0.0
    %1543 = vmatpush1.msra.mxu0 0.0
    %1544 = vmatprep.subr.mxu0 0.0
    %1545 = vmatpush1.msra.mxu0 0.0
    %1546 = vmatprep.subr.mxu0 0.0
    %1547 = vmatpush1.msra.mxu0 0.0
    %1548 = vmatprep.subr.mxu0 0.0
    %1549 = vmatpush1.msra.mxu0 0.0
    %1550 = vmatprep.subr.mxu0 0.0
    %1551 = vmatpush1.msra.mxu0 0.0
    %1552 = vmatprep.subr.mxu0 0.0
    %1553 = vmatpush1.msra.mxu0 0.0
    %1554 = vmatprep.subr.mxu0 0.0
    %1555 = vmatpush1.msra.mxu0 0.0
    %1556 = vmatprep.subr.mxu0 0.0
    %1557 = vmatpush1.msra.mxu0 %v1521
    %1558 = vmatprep.subr.mxu0 0.0
    %1559 = vmatpush2.msra.mxu0 0.0
    %1560 = vmatprep.subr.mxu0 0.0
    %1561 = vmatpush2.msra.mxu0 0.0
    %1562 = vmatprep.subr.mxu0 0.0
    %1563 = vmatpush2.msra.mxu0 0.0
    %1564 = vmatprep.subr.mxu0 0.0
    %1565 = vmatpush2.msra.mxu0 0.0
    %1566 = vmatprep.subr.mxu0 0.0
    %1567 = vmatpush2.msra.mxu0 0.0
    %1568 = vmatprep.subr.mxu0 0.0
    %1569 = vmatpush2.msra.mxu0 0.0
    %1570 = vmatprep.subr.mxu0 0.0
    %1571 = vmatpush2.msra.mxu0 0.0
    %1572 = vmatprep.subr.mxu0 0.0
    %1573 = vmatpush2.msra.mxu0 0.0
    %1574 = vmatprep.subr.mxu0 0.0
    %1575 = vmatpush2.msra.mxu0 0.0
    %1576 = vmatprep.subr.mxu0 0.0
    %1577 = vmatpush2.msra.mxu0 0.0
    %1578 = vmatprep.subr.mxu0 0.0
    %1579 = vmatpush2.msra.mxu0 0.0
    %1580 = vmatprep.subr.mxu0 0.0
    %1581 = vmatpush2.msra.mxu0 0.0
    %1582 = vmatprep.subr.mxu0 0.0
    %1583 = vmatpush2.msra.mxu0 0.0
    %1584 = vmatprep.subr.mxu0 0.0
    %1585 = vmatpush2.msra.mxu0 0.0
    %1586 = vmatprep.subr.mxu0 0.0
    %1587 = vmatpush2.msra.mxu0 0.0
    %1588 = vmatprep.subr.mxu0 0.0
    %1589 = vmatpush2.msra.mxu0 0.0
    %1590 = vmatprep.mubr.f32.mxu0 0.0
    %1591 = vmatmul.mubr.f32.gmra.mxu0 %v1524
    %v1592 = vpop.f32.mrf.mxu0
    %v1593 = vadd.f32 0.0, %v1592
    %v1594 = vpop.f32.mrf.mxu0
    %1595 = vdwg.mxu0
    %1596 = vrot.lane.b32.xlu0 %v204, 112
    %v1597 = vpop.permute.xlu0 %1596
    %v1600 = vsel %vm215, %v1363, 0
    %1602 = vmatprep.subr.mxu0 0.0
    %1603 = vmatpush1.msra.mxu0 0.0
    %1604 = vmatprep.subr.mxu0 0.0
    %1605 = vmatpush1.msra.mxu0 0.0
    %1606 = vmatprep.subr.mxu0 0.0
    %1607 = vmatpush1.msra.mxu0 0.0
    %1608 = vmatprep.subr.mxu0 0.0
    %1609 = vmatpush1.msra.mxu0 0.0
    %1610 = vmatprep.subr.mxu0 0.0
    %1611 = vmatpush1.msra.mxu0 0.0
    %1612 = vmatprep.subr.mxu0 0.0
    %1613 = vmatpush1.msra.mxu0 0.0
    %1614 = vmatprep.subr.mxu0 0.0
    %1615 = vmatpush1.msra.mxu0 0.0
    %1616 = vmatprep.subr.mxu0 0.0
    %1617 = vmatpush1.msra.mxu0 0.0
    %1618 = vmatprep.subr.mxu0 0.0
    %1619 = vmatpush1.msra.mxu0 0.0
    %1620 = vmatprep.subr.mxu0 0.0
    %1621 = vmatpush1.msra.mxu0 0.0
    %1622 = vmatprep.subr.mxu0 0.0
    %1623 = vmatpush1.msra.mxu0 0.0
    %1624 = vmatprep.subr.mxu0 0.0
    %1625 = vmatpush1.msra.mxu0 0.0
    %1626 = vmatprep.subr.mxu0 0.0
    %1627 = vmatpush1.msra.mxu0 0.0
    %1628 = vmatprep.subr.mxu0 0.0
    %1629 = vmatpush1.msra.mxu0 0.0
    %1630 = vmatprep.subr.mxu0 0.0
    %1631 = vmatpush1.msra.mxu0 0.0
    %1632 = vmatprep.subr.mxu0 0.0
    %1633 = vmatpush1.msra.mxu0 %v1597
    %1634 = vmatprep.subr.mxu0 0.0
    %1635 = vmatpush2.msra.mxu0 0.0
    %1636 = vmatprep.subr.mxu0 0.0
    %1637 = vmatpush2.msra.mxu0 0.0
    %1638 = vmatprep.subr.mxu0 0.0
    %1639 = vmatpush2.msra.mxu0 0.0
    %1640 = vmatprep.subr.mxu0 0.0
    %1641 = vmatpush2.msra.mxu0 0.0
    %1642 = vmatprep.subr.mxu0 0.0
    %1643 = vmatpush2.msra.mxu0 0.0
    %1644 = vmatprep.subr.mxu0 0.0
    %1645 = vmatpush2.msra.mxu0 0.0
    %1646 = vmatprep.subr.mxu0 0.0
    %1647 = vmatpush2.msra.mxu0 0.0
    %1648 = vmatprep.subr.mxu0 0.0
    %1649 = vmatpush2.msra.mxu0 0.0
    %1650 = vmatprep.subr.mxu0 0.0
    %1651 = vmatpush2.msra.mxu0 0.0
    %1652 = vmatprep.subr.mxu0 0.0
    %1653 = vmatpush2.msra.mxu0 0.0
    %1654 = vmatprep.subr.mxu0 0.0
    %1655 = vmatpush2.msra.mxu0 0.0
    %1656 = vmatprep.subr.mxu0 0.0
    %1657 = vmatpush2.msra.mxu0 0.0
    %1658 = vmatprep.subr.mxu0 0.0
    %1659 = vmatpush2.msra.mxu0 0.0
    %1660 = vmatprep.subr.mxu0 0.0
    %1661 = vmatpush2.msra.mxu0 0.0
    %1662 = vmatprep.subr.mxu0 0.0
    %1663 = vmatpush2.msra.mxu0 0.0
    %1664 = vmatprep.subr.mxu0 0.0
    %1665 = vmatpush2.msra.mxu0 0.0
    %1666 = vmatprep.mubr.f32.mxu0 0.0
    %1667 = vmatmul.mubr.f32.gmra.mxu0 %v1600
    %v1668 = vpop.f32.mrf.mxu0
    %v1669 = vadd.f32 0.0, %v1668
    %v1670 = vpop.f32.mrf.mxu0
    %1671 = vdwg.mxu0
    %1672 = vrot.lane.b32.xlu0 %v206, 112
    %v1673 = vpop.permute.xlu0 %1672
    %v1676 = vsel %vm215, %v1364, 0
    %1678 = vmatprep.subr.mxu0 0.0
    %1679 = vmatpush1.msra.mxu0 0.0
    %1680 = vmatprep.subr.mxu0 0.0
    %1681 = vmatpush1.msra.mxu0 0.0
    %1682 = vmatprep.subr.mxu0 0.0
    %1683 = vmatpush1.msra.mxu0 0.0
    %1684 = vmatprep.subr.mxu0 0.0
    %1685 = vmatpush1.msra.mxu0 0.0
    %1686 = vmatprep.subr.mxu0 0.0
    %1687 = vmatpush1.msra.mxu0 0.0
    %1688 = vmatprep.subr.mxu0 0.0
    %1689 = vmatpush1.msra.mxu0 0.0
    %1690 = vmatprep.subr.mxu0 0.0
    %1691 = vmatpush1.msra.mxu0 0.0
    %1692 = vmatprep.subr.mxu0 0.0
    %1693 = vmatpush1.msra.mxu0 0.0
    %1694 = vmatprep.subr.mxu0 0.0
    %1695 = vmatpush1.msra.mxu0 0.0
    %1696 = vmatprep.subr.mxu0 0.0
    %1697 = vmatpush1.msra.mxu0 0.0
    %1698 = vmatprep.subr.mxu0 0.0
    %1699 = vmatpush1.msra.mxu0 0.0
    %1700 = vmatprep.subr.mxu0 0.0
    %1701 = vmatpush1.msra.mxu0 0.0
    %1702 = vmatprep.subr.mxu0 0.0
    %1703 = vmatpush1.msra.mxu0 0.0
    %1704 = vmatprep.subr.mxu0 0.0
    %1705 = vmatpush1.msra.mxu0 0.0
    %1706 = vmatprep.subr.mxu0 0.0
    %1707 = vmatpush1.msra.mxu0 0.0
    %1708 = vmatprep.subr.mxu0 0.0
    %1709 = vmatpush1.msra.mxu0 %v1673
    %1710 = vmatprep.subr.mxu0 0.0
    %1711 = vmatpush2.msra.mxu0 0.0
    %1712 = vmatprep.subr.mxu0 0.0
    %1713 = vmatpush2.msra.mxu0 0.0
    %1714 = vmatprep.subr.mxu0 0.0
    %1715 = vmatpush2.msra.mxu0 0.0
    %1716 = vmatprep.subr.mxu0 0.0
    %1717 = vmatpush2.msra.mxu0 0.0
    %1718 = vmatprep.subr.mxu0 0.0
    %1719 = vmatpush2.msra.mxu0 0.0
    %1720 = vmatprep.subr.mxu0 0.0
    %1721 = vmatpush2.msra.mxu0 0.0
    %1722 = vmatprep.subr.mxu0 0.0
    %1723 = vmatpush2.msra.mxu0 0.0
    %1724 = vmatprep.subr.mxu0 0.0
    %1725 = vmatpush2.msra.mxu0 0.0
    %1726 = vmatprep.subr.mxu0 0.0
    %1727 = vmatpush2.msra.mxu0 0.0
    %1728 = vmatprep.subr.mxu0 0.0
    %1729 = vmatpush2.msra.mxu0 0.0
    %1730 = vmatprep.subr.mxu0 0.0
    %1731 = vmatpush2.msra.mxu0 0.0
    %1732 = vmatprep.subr.mxu0 0.0
    %1733 = vmatpush2.msra.mxu0 0.0
    %1734 = vmatprep.subr.mxu0 0.0
    %1735 = vmatpush2.msra.mxu0 0.0
    %1736 = vmatprep.subr.mxu0 0.0
    %1737 = vmatpush2.msra.mxu0 0.0
    %1738 = vmatprep.subr.mxu0 0.0
    %1739 = vmatpush2.msra.mxu0 0.0
    %1740 = vmatprep.subr.mxu0 0.0
    %1741 = vmatpush2.msra.mxu0 0.0
    %1742 = vmatprep.mubr.f32.mxu0 0.0
    %1743 = vmatmul.mubr.f32.gmra.mxu0 %v1676
    %v1744 = vpop.f32.mrf.mxu0
    %v1745 = vadd.f32 0.0, %v1744
    %v1746 = vpop.f32.mrf.mxu0
    %1747 = vdwg.mxu0
    %1748 = vrot.lane.b32.xlu0 %v208, 112
    %v1749 = vpop.permute.xlu0 %1748
    %v1752 = vsel %vm215, %v1365, 0
    %1754 = vmatprep.subr.mxu0 0.0
    %1755 = vmatpush1.msra.mxu0 0.0
    %1756 = vmatprep.subr.mxu0 0.0
    %1757 = vmatpush1.msra.mxu0 0.0
    %1758 = vmatprep.subr.mxu0 0.0
    %1759 = vmatpush1.msra.mxu0 0.0
    %1760 = vmatprep.subr.mxu0 0.0
    %1761 = vmatpush1.msra.mxu0 0.0
    %1762 = vmatprep.subr.mxu0 0.0
    %1763 = vmatpush1.msra.mxu0 0.0
    %1764 = vmatprep.subr.mxu0 0.0
    %1765 = vmatpush1.msra.mxu0 0.0
    %1766 = vmatprep.subr.mxu0 0.0
    %1767 = vmatpush1.msra.mxu0 0.0
    %1768 = vmatprep.subr.mxu0 0.0
    %1769 = vmatpush1.msra.mxu0 0.0
    %1770 = vmatprep.subr.mxu0 0.0
    %1771 = vmatpush1.msra.mxu0 0.0
    %1772 = vmatprep.subr.mxu0 0.0
    %1773 = vmatpush1.msra.mxu0 0.0
    %1774 = vmatprep.subr.mxu0 0.0
    %1775 = vmatpush1.msra.mxu0 0.0
    %1776 = vmatprep.subr.mxu0 0.0
    %1777 = vmatpush1.msra.mxu0 0.0
    %1778 = vmatprep.subr.mxu0 0.0
    %1779 = vmatpush1.msra.mxu0 0.0
    %1780 = vmatprep.subr.mxu0 0.0
    %1781 = vmatpush1.msra.mxu0 0.0
    %1782 = vmatprep.subr.mxu0 0.0
    %1783 = vmatpush1.msra.mxu0 0.0
    %1784 = vmatprep.subr.mxu0 0.0
    %1785 = vmatpush1.msra.mxu0 %v1749
    %1786 = vmatprep.subr.mxu0 0.0
    %1787 = vmatpush2.msra.mxu0 0.0
    %1788 = vmatprep.subr.mxu0 0.0
    %1789 = vmatpush2.msra.mxu0 0.0
    %1790 = vmatprep.subr.mxu0 0.0
    %1791 = vmatpush2.msra.mxu0 0.0
    %1792 = vmatprep.subr.mxu0 0.0
    %1793 = vmatpush2.msra.mxu0 0.0
    %1794 = vmatprep.subr.mxu0 0.0
    %1795 = vmatpush2.msra.mxu0 0.0
    %1796 = vmatprep.subr.mxu0 0.0
    %1797 = vmatpush2.msra.mxu0 0.0
    %1798 = vmatprep.subr.mxu0 0.0
    %1799 = vmatpush2.msra.mxu0 0.0
    %1800 = vmatprep.subr.mxu0 0.0
    %1801 = vmatpush2.msra.mxu0 0.0
    %1802 = vmatprep.subr.mxu0 0.0
    %1803 = vmatpush2.msra.mxu0 0.0
    %1804 = vmatprep.subr.mxu0 0.0
    %1805 = vmatpush2.msra.mxu0 0.0
    %1806 = vmatprep.subr.mxu0 0.0
    %1807 = vmatpush2.msra.mxu0 0.0
    %1808 = vmatprep.subr.mxu0 0.0
    %1809 = vmatpush2.msra.mxu0 0.0
    %1810 = vmatprep.subr.mxu0 0.0
    %1811 = vmatpush2.msra.mxu0 0.0
    %1812 = vmatprep.subr.mxu0 0.0
    %1813 = vmatpush2.msra.mxu0 0.0
    %1814 = vmatprep.subr.mxu0 0.0
    %1815 = vmatpush2.msra.mxu0 0.0
    %1816 = vmatprep.subr.mxu0 0.0
    %1817 = vmatpush2.msra.mxu0 0.0
    %1818 = vmatprep.mubr.f32.mxu0 0.0
    %1819 = vmatmul.mubr.f32.gmra.mxu0 %v1752
    %v1820 = vpop.f32.mrf.mxu0
    %v1821 = vadd.f32 0.0, %v1820
    %v1822 = vpop.f32.mrf.mxu0
    %1823 = vdwg.mxu0
    %1824 = vrot.lane.b32.xlu0 %v210, 112
    %v1825 = vpop.permute.xlu0 %1824
    %v1828 = vsel %vm215, %v1366, 0
    %1830 = vmatprep.subr.mxu0 0.0
    %1831 = vmatpush1.msra.mxu0 0.0
    %1832 = vmatprep.subr.mxu0 0.0
    %1833 = vmatpush1.msra.mxu0 0.0
    %1834 = vmatprep.subr.mxu0 0.0
    %1835 = vmatpush1.msra.mxu0 0.0
    %1836 = vmatprep.subr.mxu0 0.0
    %1837 = vmatpush1.msra.mxu0 0.0
    %1838 = vmatprep.subr.mxu0 0.0
    %1839 = vmatpush1.msra.mxu0 0.0
    %1840 = vmatprep.subr.mxu0 0.0
    %1841 = vmatpush1.msra.mxu0 0.0
    %1842 = vmatprep.subr.mxu0 0.0
    %1843 = vmatpush1.msra.mxu0 0.0
    %1844 = vmatprep.subr.mxu0 0.0
    %1845 = vmatpush1.msra.mxu0 0.0
    %1846 = vmatprep.subr.mxu0 0.0
    %1847 = vmatpush1.msra.mxu0 0.0
    %1848 = vmatprep.subr.mxu0 0.0
    %1849 = vmatpush1.msra.mxu0 0.0
    %1850 = vmatprep.subr.mxu0 0.0
    %1851 = vmatpush1.msra.mxu0 0.0
    %1852 = vmatprep.subr.mxu0 0.0
    %1853 = vmatpush1.msra.mxu0 0.0
    %1854 = vmatprep.subr.mxu0 0.0
    %1855 = vmatpush1.msra.mxu0 0.0
    %1856 = vmatprep.subr.mxu0 0.0
    %1857 = vmatpush1.msra.mxu0 0.0
    %1858 = vmatprep.subr.mxu0 0.0
    %1859 = vmatpush1.msra.mxu0 0.0
    %1860 = vmatprep.subr.mxu0 0.0
    %1861 = vmatpush1.msra.mxu0 %v1825
    %1862 = vmatprep.subr.mxu0 0.0
    %1863 = vmatpush2.msra.mxu0 0.0
    %1864 = vmatprep.subr.mxu0 0.0
    %1865 = vmatpush2.msra.mxu0 0.0
    %1866 = vmatprep.subr.mxu0 0.0
    %1867 = vmatpush2.msra.mxu0 0.0
    %1868 = vmatprep.subr.mxu0 0.0
    %1869 = vmatpush2.msra.mxu0 0.0
    %1870 = vmatprep.subr.mxu0 0.0
    %1871 = vmatpush2.msra.mxu0 0.0
    %1872 = vmatprep.subr.mxu0 0.0
    %1873 = vmatpush2.msra.mxu0 0.0
    %1874 = vmatprep.subr.mxu0 0.0
    %1875 = vmatpush2.msra.mxu0 0.0
    %1876 = vmatprep.subr.mxu0 0.0
    %1877 = vmatpush2.msra.mxu0 0.0
    %1878 = vmatprep.subr.mxu0 0.0
    %1879 = vmatpush2.msra.mxu0 0.0
    %1880 = vmatprep.subr.mxu0 0.0
    %1881 = vmatpush2.msra.mxu0 0.0
    %1882 = vmatprep.subr.mxu0 0.0
    %1883 = vmatpush2.msra.mxu0 0.0
    %1884 = vmatprep.subr.mxu0 0.0
    %1885 = vmatpush2.msra.mxu0 0.0
    %1886 = vmatprep.subr.mxu0 0.0
    %1887 = vmatpush2.msra.mxu0 0.0
    %1888 = vmatprep.subr.mxu0 0.0
    %1889 = vmatpush2.msra.mxu0 0.0
    %1890 = vmatprep.subr.mxu0 0.0
    %1891 = vmatpush2.msra.mxu0 0.0
    %1892 = vmatprep.subr.mxu0 0.0
    %1893 = vmatpush2.msra.mxu0 0.0
    %1894 = vmatprep.mubr.f32.mxu0 0.0
    %1895 = vmatmul.mubr.f32.gmra.mxu0 %v1828
    %v1896 = vpop.f32.mrf.mxu0
    %v1897 = vadd.f32 0.0, %v1896
    %v1898 = vpop.f32.mrf.mxu0
    %1899 = vdwg.mxu0
    %1900 = vrot.lane.b32.xlu0 %v212, 112
    %v1901 = vpop.permute.xlu0 %1900
    %v1904 = vsel %vm215, %v1367, 0
    %1906 = vmatprep.subr.mxu0 0.0
    %1907 = vmatpush1.msra.mxu0 0.0
    %1908 = vmatprep.subr.mxu0 0.0
    %1909 = vmatpush1.msra.mxu0 0.0
    %1910 = vmatprep.subr.mxu0 0.0
    %1911 = vmatpush1.msra.mxu0 0.0
    %1912 = vmatprep.subr.mxu0 0.0
    %1913 = vmatpush1.msra.mxu0 0.0
    %1914 = vmatprep.subr.mxu0 0.0
    %1915 = vmatpush1.msra.mxu0 0.0
    %1916 = vmatprep.subr.mxu0 0.0
    %1917 = vmatpush1.msra.mxu0 0.0
    %1918 = vmatprep.subr.mxu0 0.0
    %1919 = vmatpush1.msra.mxu0 0.0
    %1920 = vmatprep.subr.mxu0 0.0
    %1921 = vmatpush1.msra.mxu0 0.0
    %1922 = vmatprep.subr.mxu0 0.0
    %1923 = vmatpush1.msra.mxu0 0.0
    %1924 = vmatprep.subr.mxu0 0.0
    %1925 = vmatpush1.msra.mxu0 0.0
    %1926 = vmatprep.subr.mxu0 0.0
    %1927 = vmatpush1.msra.mxu0 0.0
    %1928 = vmatprep.subr.mxu0 0.0
    %1929 = vmatpush1.msra.mxu0 0.0
    %1930 = vmatprep.subr.mxu0 0.0
    %1931 = vmatpush1.msra.mxu0 0.0
    %1932 = vmatprep.subr.mxu0 0.0
    %1933 = vmatpush1.msra.mxu0 0.0
    %1934 = vmatprep.subr.mxu0 0.0
    %1935 = vmatpush1.msra.mxu0 0.0
    %1936 = vmatprep.subr.mxu0 0.0
    %1937 = vmatpush1.msra.mxu0 %v1901
    %1938 = vmatprep.subr.mxu0 0.0
    %1939 = vmatpush2.msra.mxu0 0.0
    %1940 = vmatprep.subr.mxu0 0.0
    %1941 = vmatpush2.msra.mxu0 0.0
    %1942 = vmatprep.subr.mxu0 0.0
    %1943 = vmatpush2.msra.mxu0 0.0
    %1944 = vmatprep.subr.mxu0 0.0
    %1945 = vmatpush2.msra.mxu0 0.0
    %1946 = vmatprep.subr.mxu0 0.0
    %1947 = vmatpush2.msra.mxu0 0.0
    %1948 = vmatprep.subr.mxu0 0.0
    %1949 = vmatpush2.msra.mxu0 0.0
    %1950 = vmatprep.subr.mxu0 0.0
    %1951 = vmatpush2.msra.mxu0 0.0
    %1952 = vmatprep.subr.mxu0 0.0
    %1953 = vmatpush2.msra.mxu0 0.0
    %1954 = vmatprep.subr.mxu0 0.0
    %1955 = vmatpush2.msra.mxu0 0.0
    %1956 = vmatprep.subr.mxu0 0.0
    %1957 = vmatpush2.msra.mxu0 0.0
    %1958 = vmatprep.subr.mxu0 0.0
    %1959 = vmatpush2.msra.mxu0 0.0
    %1960 = vmatprep.subr.mxu0 0.0
    %1961 = vmatpush2.msra.mxu0 0.0
    %1962 = vmatprep.subr.mxu0 0.0
    %1963 = vmatpush2.msra.mxu0 0.0
    %1964 = vmatprep.subr.mxu0 0.0
    %1965 = vmatpush2.msra.mxu0 0.0
    %1966 = vmatprep.subr.mxu0 0.0
    %1967 = vmatpush2.msra.mxu0 0.0
    %1968 = vmatprep.subr.mxu0 0.0
    %1969 = vmatpush2.msra.mxu0 0.0
    %1970 = vmatprep.mubr.f32.mxu0 0.0
    %1971 = vmatmul.mubr.f32.gmra.mxu0 %v1904
    %v1972 = vpop.f32.mrf.mxu0
    %v1973 = vadd.f32 0.0, %v1972
    %v1974 = vpop.f32.mrf.mxu0
    %1975 = vdwg.mxu0
    %v1976 = vld [vmem:[%s7] sm:$0x1]
    %v1977 = vld [vmem:[%s7 + $0x1] sm:$0x1]
    %v1978 = vld [vmem:[%s7 + $0x2] sm:$0x1]
    %v1979 = vld [vmem:[%s7 + $0x3] sm:$0x1]
    %v1980 = vsel %vm1012, %v1360, 0.0
    %v1981 = vsel %vm1013, %v1361, 0.0
    %v1982 = vsel %vm1012, %v1362, 0.0
    %v1983 = vsel %vm1013, %v1363, 0.0
    %v1984 = vsel %vm1012, %v1364, 0.0
    %v1985 = vsel %vm1013, %v1365, 0.0
    %v1986 = vsel %vm1012, %v1366, 0.0
    %v1987 = vsel %vm1013, %v1367, 0.0
    %v1988 = vsel %vm215, %v1980, 0.0
    %1989 = vadd.xlane.f32.xlu0 %v1988
    %v1990 = vpop.xlane.xlu0 %1989
    %v1991 = vsel %vm215, %v1981, 0.0
    %1992 = vadd.xlane.f32.xlu0 %v1991
    %v1993 = vpop.xlane.xlu0 %1992
    %v1994 = vsel %vm215, %v1982, 0.0
    %1995 = vadd.xlane.f32.xlu0 %v1994
    %v1996 = vpop.xlane.xlu0 %1995
    %v1997 = vsel %vm215, %v1983, 0.0
    %1998 = vadd.xlane.f32.xlu0 %v1997
    %v1999 = vpop.xlane.xlu0 %1998
    %v2000 = vsel %vm215, %v1984, 0.0
    %2001 = vadd.xlane.f32.xlu0 %v2000
    %v2002 = vpop.xlane.xlu0 %2001
    %v2003 = vsel %vm215, %v1985, 0.0
    %2004 = vadd.xlane.f32.xlu0 %v2003
    %v2005 = vpop.xlane.xlu0 %2004
    %v2006 = vsel %vm215, %v1986, 0.0
    %2007 = vadd.xlane.f32.xlu0 %v2006
    %v2008 = vpop.xlane.xlu0 %2007
    %v2009 = vsel %vm215, %v1987, 0.0
    %2010 = vadd.xlane.f32.xlu0 %v2009
    %v2011 = vpop.xlane.xlu0 %2010
    %v2012 = vsel %vm1064, %v1360, 0.0
    %v2013 = vsel %vm1065, %v1361, 0.0
    %v2014 = vsel %vm1064, %v1362, 0.0
    %v2015 = vsel %vm1065, %v1363, 0.0
    %v2016 = vsel %vm1064, %v1364, 0.0
    %v2017 = vsel %vm1065, %v1365, 0.0
    %v2018 = vsel %vm1064, %v1366, 0.0
    %v2019 = vsel %vm1065, %v1367, 0.0
    %v2020 = vsel %vm215, %v2012, 0.0
    %2021 = vadd.xlane.f32.xlu0 %v2020
    %v2022 = vpop.xlane.xlu0 %2021
    %v2023 = vsel %vm215, %v2013, 0.0
    %2024 = vadd.xlane.f32.xlu0 %v2023
    %v2025 = vpop.xlane.xlu0 %2024
    %v2026 = vsel %vm215, %v2014, 0.0
    %2027 = vadd.xlane.f32.xlu0 %v2026
    %v2028 = vpop.xlane.xlu0 %2027
    %v2029 = vsel %vm215, %v2015, 0.0
    %2030 = vadd.xlane.f32.xlu0 %v2029
    %v2031 = vpop.xlane.xlu0 %2030
    %v2032 = vsel %vm215, %v2016, 0.0
    %2033 = vadd.xlane.f32.xlu0 %v2032
    %v2034 = vpop.xlane.xlu0 %2033
    %v2035 = vsel %vm215, %v2017, 0.0
    %2036 = vadd.xlane.f32.xlu0 %v2035
    %v2037 = vpop.xlane.xlu0 %2036
    %v2038 = vsel %vm215, %v2018, 0.0
    %2039 = vadd.xlane.f32.xlu0 %v2038
    %v2040 = vpop.xlane.xlu0 %2039
    %v2041 = vsel %vm215, %v2019, 0.0
    %2042 = vadd.xlane.f32.xlu0 %v2041
    %v2043 = vpop.xlane.xlu0 %2042
    %v2044 = vsel %vm1116, %v1360, 0.0
    %v2045 = vsel %vm1117, %v1361, 0.0
    %v2046 = vsel %vm1116, %v1362, 0.0
    %v2047 = vsel %vm1117, %v1363, 0.0
    %v2048 = vsel %vm1116, %v1364, 0.0
    %v2049 = vsel %vm1117, %v1365, 0.0
    %v2050 = vsel %vm1116, %v1366, 0.0
    %v2051 = vsel %vm1117, %v1367, 0.0
    %v2052 = vsel %vm215, %v2044, 0.0
    %2053 = vadd.xlane.f32.xlu0 %v2052
    %v2054 = vpop.xlane.xlu0 %2053
    %v2055 = vsel %vm215, %v2045, 0.0
    %2056 = vadd.xlane.f32.xlu0 %v2055
    %v2057 = vpop.xlane.xlu0 %2056
    %v2058 = vsel %vm215, %v2046, 0.0
    %2059 = vadd.xlane.f32.xlu0 %v2058
    %v2060 = vpop.xlane.xlu0 %2059
    %v2061 = vsel %vm215, %v2047, 0.0
    %2062 = vadd.xlane.f32.xlu0 %v2061
    %v2063 = vpop.xlane.xlu0 %2062
    %v2064 = vsel %vm215, %v2048, 0.0
    %2065 = vadd.xlane.f32.xlu0 %v2064
    %v2066 = vpop.xlane.xlu0 %2065
    %v2067 = vsel %vm215, %v2049, 0.0
    %2068 = vadd.xlane.f32.xlu0 %v2067
    %v2069 = vpop.xlane.xlu0 %2068
    %v2070 = vsel %vm215, %v2050, 0.0
    %2071 = vadd.xlane.f32.xlu0 %v2070
    %v2072 = vpop.xlane.xlu0 %2071
    %v2073 = vsel %vm215, %v2051, 0.0
    %2074 = vadd.xlane.f32.xlu0 %v2073
    %v2075 = vpop.xlane.xlu0 %2074
    %v2076 = vsel %vm1168, %v1360, 0.0
    %v2077 = vsel %vm1169, %v1361, 0.0
    %v2078 = vsel %vm1168, %v1362, 0.0
    %v2079 = vsel %vm1169, %v1363, 0.0
    %v2080 = vsel %vm1168, %v1364, 0.0
    %v2081 = vsel %vm1169, %v1365, 0.0
    %v2082 = vsel %vm1168, %v1366, 0.0
    %v2083 = vsel %vm1169, %v1367, 0.0
    %v2084 = vsel %vm215, %v2076, 0.0
    %2085 = vadd.xlane.f32.xlu0 %v2084
    %v2086 = vpop.xlane.xlu0 %2085
    %v2087 = vsel %vm215, %v2077, 0.0
    %2088 = vadd.xlane.f32.xlu0 %v2087
    %v2089 = vpop.xlane.xlu0 %2088
    %v2090 = vsel %vm215, %v2078, 0.0
    %2091 = vadd.xlane.f32.xlu0 %v2090
    %v2092 = vpop.xlane.xlu0 %2091
    %v2093 = vsel %vm215, %v2079, 0.0
    %2094 = vadd.xlane.f32.xlu0 %v2093
    %v2095 = vpop.xlane.xlu0 %2094
    %v2096 = vsel %vm215, %v2080, 0.0
    %2097 = vadd.xlane.f32.xlu0 %v2096
    %v2098 = vpop.xlane.xlu0 %2097
    %v2099 = vsel %vm215, %v2081, 0.0
    %2100 = vadd.xlane.f32.xlu0 %v2099
    %v2101 = vpop.xlane.xlu0 %2100
    %v2102 = vsel %vm215, %v2082, 0.0
    %2103 = vadd.xlane.f32.xlu0 %v2102
    %v2104 = vpop.xlane.xlu0 %2103
    %v2105 = vsel %vm215, %v2083, 0.0
    %2106 = vadd.xlane.f32.xlu0 %v2105
    %v2107 = vpop.xlane.xlu0 %2106
    %v2112 = vlaneseq
    %v2113 = vshrl.u32 %v2112, 7
    %v2114 = vsub.s32 0, %v2113
    %v2115 = vrot.slane %v1976, %v2114
    %v2116 = vlaneseq
    %v2117 = vshrl.u32 %v2116, 7
    %v2118 = vsub.s32 0, %v2117
    %v2119 = vrot.slane %v1977, %v2118
    %v2120 = vlaneseq
    %v2121 = vshrl.u32 %v2120, 7
    %v2122 = vsub.s32 0, %v2121
    %v2123 = vrot.slane %v1978, %v2122
    %v2124 = vlaneseq
    %v2125 = vshrl.u32 %v2124, 7
    %v2126 = vsub.s32 0, %v2125
    %v2127 = vrot.slane %v1979, %v2126
    %v2132 = vsel %vm1012, %v2115, 0.0
    %v2133 = vsel %vm1013, %v2115, 0.0
    %v2134 = vsel %vm1012, %v2119, 0.0
    %v2135 = vsel %vm1013, %v2119, 0.0
    %v2136 = vsel %vm1012, %v2123, 0.0
    %v2137 = vsel %vm1013, %v2123, 0.0
    %v2138 = vsel %vm1012, %v2127, 0.0
    %v2139 = vsel %vm1013, %v2127, 0.0
    %v2140 = vsel %vm215, %v2132, 0.0
    %2141 = vadd.xlane.f32.xlu0 %v2140
    %v2142 = vpop.xlane.xlu0 %2141
    %v2143 = vsel %vm215, %v2133, 0.0
    %2144 = vadd.xlane.f32.xlu0 %v2143
    %v2145 = vpop.xlane.xlu0 %2144
    %v2146 = vsel %vm215, %v2134, 0.0
    %2147 = vadd.xlane.f32.xlu0 %v2146
    %v2148 = vpop.xlane.xlu0 %2147
    %v2149 = vsel %vm215, %v2135, 0.0
    %2150 = vadd.xlane.f32.xlu0 %v2149
    %v2151 = vpop.xlane.xlu0 %2150
    %v2152 = vsel %vm215, %v2136, 0.0
    %2153 = vadd.xlane.f32.xlu0 %v2152
    %v2154 = vpop.xlane.xlu0 %2153
    %v2155 = vsel %vm215, %v2137, 0.0
    %2156 = vadd.xlane.f32.xlu0 %v2155
    %v2157 = vpop.xlane.xlu0 %2156
    %v2158 = vsel %vm215, %v2138, 0.0
    %2159 = vadd.xlane.f32.xlu0 %v2158
    %v2160 = vpop.xlane.xlu0 %2159
    %v2161 = vsel %vm215, %v2139, 0.0
    %2162 = vadd.xlane.f32.xlu0 %v2161
    %v2163 = vpop.xlane.xlu0 %2162
    %v2164 = vsel %vm1064, %v2115, 0.0
    %v2165 = vsel %vm1065, %v2115, 0.0
    %v2166 = vsel %vm1064, %v2119, 0.0
    %v2167 = vsel %vm1065, %v2119, 0.0
    %v2168 = vsel %vm1064, %v2123, 0.0
    %v2169 = vsel %vm1065, %v2123, 0.0
    %v2170 = vsel %vm1064, %v2127, 0.0
    %v2171 = vsel %vm1065, %v2127, 0.0
    %v2172 = vsel %vm215, %v2164, 0.0
    %2173 = vadd.xlane.f32.xlu0 %v2172
    %v2174 = vpop.xlane.xlu0 %2173
    %v2175 = vsel %vm215, %v2165, 0.0
    %2176 = vadd.xlane.f32.xlu0 %v2175
    %v2177 = vpop.xlane.xlu0 %2176
    %v2178 = vsel %vm215, %v2166, 0.0
    %2179 = vadd.xlane.f32.xlu0 %v2178
    %v2180 = vpop.xlane.xlu0 %2179
    %v2181 = vsel %vm215, %v2167, 0.0
    %2182 = vadd.xlane.f32.xlu0 %v2181
    %v2183 = vpop.xlane.xlu0 %2182
    %v2184 = vsel %vm215, %v2168, 0.0
    %2185 = vadd.xlane.f32.xlu0 %v2184
    %v2186 = vpop.xlane.xlu0 %2185
    %v2187 = vsel %vm215, %v2169, 0.0
    %2188 = vadd.xlane.f32.xlu0 %v2187
    %v2189 = vpop.xlane.xlu0 %2188
    %v2190 = vsel %vm215, %v2170, 0.0
    %2191 = vadd.xlane.f32.xlu0 %v2190
    %v2192 = vpop.xlane.xlu0 %2191
    %v2193 = vsel %vm215, %v2171, 0.0
    %2194 = vadd.xlane.f32.xlu0 %v2193
    %v2195 = vpop.xlane.xlu0 %2194
    %v2196 = vsel %vm1116, %v2115, 0.0
    %v2197 = vsel %vm1117, %v2115, 0.0
    %v2198 = vsel %vm1116, %v2119, 0.0
    %v2199 = vsel %vm1117, %v2119, 0.0
    %v2200 = vsel %vm1116, %v2123, 0.0
    %v2201 = vsel %vm1117, %v2123, 0.0
    %v2202 = vsel %vm1116, %v2127, 0.0
    %v2203 = vsel %vm1117, %v2127, 0.0
    %v2204 = vsel %vm215, %v2196, 0.0
    %2205 = vadd.xlane.f32.xlu0 %v2204
    %v2206 = vpop.xlane.xlu0 %2205
    %v2207 = vsel %vm215, %v2197, 0.0
    %2208 = vadd.xlane.f32.xlu0 %v2207
    %v2209 = vpop.xlane.xlu0 %2208
    %v2210 = vsel %vm215, %v2198, 0.0
    %2211 = vadd.xlane.f32.xlu0 %v2210
    %v2212 = vpop.xlane.xlu0 %2211
    %v2213 = vsel %vm215, %v2199, 0.0
    %2214 = vadd.xlane.f32.xlu0 %v2213
    %v2215 = vpop.xlane.xlu0 %2214
    %v2216 = vsel %vm215, %v2200, 0.0
    %2217 = vadd.xlane.f32.xlu0 %v2216
    %v2218 = vpop.xlane.xlu0 %2217
    %v2219 = vsel %vm215, %v2201, 0.0
    %2220 = vadd.xlane.f32.xlu0 %v2219
    %v2221 = vpop.xlane.xlu0 %2220
    %v2222 = vsel %vm215, %v2202, 0.0
    %2223 = vadd.xlane.f32.xlu0 %v2222
    %v2224 = vpop.xlane.xlu0 %2223
    %v2225 = vsel %vm215, %v2203, 0.0
    %2226 = vadd.xlane.f32.xlu0 %v2225
    %v2227 = vpop.xlane.xlu0 %2226
    %v2228 = vsel %vm1168, %v2115, 0.0
    %v2229 = vsel %vm1169, %v2115, 0.0
    %v2230 = vsel %vm1168, %v2119, 0.0
    %v2231 = vsel %vm1169, %v2119, 0.0
    %v2232 = vsel %vm1168, %v2123, 0.0
    %v2233 = vsel %vm1169, %v2123, 0.0
    %v2234 = vsel %vm1168, %v2127, 0.0
    %v2235 = vsel %vm1169, %v2127, 0.0
    %v2236 = vsel %vm215, %v2228, 0.0
    %2237 = vadd.xlane.f32.xlu0 %v2236
    %v2238 = vpop.xlane.xlu0 %2237
    %v2239 = vsel %vm215, %v2229, 0.0
    %2240 = vadd.xlane.f32.xlu0 %v2239
    %v2241 = vpop.xlane.xlu0 %2240
    %v2242 = vsel %vm215, %v2230, 0.0
    %2243 = vadd.xlane.f32.xlu0 %v2242
    %v2244 = vpop.xlane.xlu0 %2243
    %v2245 = vsel %vm215, %v2231, 0.0
    %2246 = vadd.xlane.f32.xlu0 %v2245
    %v2247 = vpop.xlane.xlu0 %2246
    %v2248 = vsel %vm215, %v2232, 0.0
    %2249 = vadd.xlane.f32.xlu0 %v2248
    %v2250 = vpop.xlane.xlu0 %2249
    %v2251 = vsel %vm215, %v2233, 0.0
    %2252 = vadd.xlane.f32.xlu0 %v2251
    %v2253 = vpop.xlane.xlu0 %2252
    %v2254 = vsel %vm215, %v2234, 0.0
    %2255 = vadd.xlane.f32.xlu0 %v2254
    %v2256 = vpop.xlane.xlu0 %2255
    %v2257 = vsel %vm215, %v2235, 0.0
    %2258 = vadd.xlane.f32.xlu0 %v2257
    %v2259 = vpop.xlane.xlu0 %2258
    %vm2260 = vcmask 7168
    %v2261 = vsel %vm2260, %v1990, %v2022
    %v2262 = vsel %vm2260, %v1993, %v2025
    %v2263 = vsel %vm2260, %v1996, %v2028
    %v2264 = vsel %vm2260, %v1999, %v2031
    %v2265 = vsel %vm2260, %v2002, %v2034
    %v2266 = vsel %vm2260, %v2005, %v2037
    %v2267 = vsel %vm2260, %v2008, %v2040
    %v2268 = vsel %vm2260, %v2011, %v2043
    %vm2269 = vcmask 15360
    %v2270 = vsel %vm2269, %v2261, %v2054
    %v2271 = vsel %vm2269, %v2262, %v2057
    %v2272 = vsel %vm2269, %v2263, %v2060
    %v2273 = vsel %vm2269, %v2264, %v2063
    %v2274 = vsel %vm2269, %v2265, %v2066
    %v2275 = vsel %vm2269, %v2266, %v2069
    %v2276 = vsel %vm2269, %v2267, %v2072
    %v2277 = vsel %vm2269, %v2268, %v2075
    %vm2278 = vcmask 23552
    %v2279 = vsel %vm2278, %v2270, %v2086
    %v2280 = vsel %vm2278, %v2271, %v2089
    %v2281 = vsel %vm2278, %v2272, %v2092
    %v2282 = vsel %vm2278, %v2273, %v2095
    %v2283 = vsel %vm2278, %v2274, %v2098
    %v2284 = vsel %vm2278, %v2275, %v2101
    %v2285 = vsel %vm2278, %v2276, %v2104
    %v2286 = vsel %vm2278, %v2277, %v2107
    %v2287 = vsel %vm2260, %v2142, %v2174
    %v2288 = vsel %vm2260, %v2145, %v2177
    %v2289 = vsel %vm2260, %v2148, %v2180
    %v2290 = vsel %vm2260, %v2151, %v2183
    %v2291 = vsel %vm2260, %v2154, %v2186
    %v2292 = vsel %vm2260, %v2157, %v2189
    %v2293 = vsel %vm2260, %v2160, %v2192
    %v2294 = vsel %vm2260, %v2163, %v2195
    %v2295 = vsel %vm2269, %v2287, %v2206
    %v2296 = vsel %vm2269, %v2288, %v2209
    %v2297 = vsel %vm2269, %v2289, %v2212
    %v2298 = vsel %vm2269, %v2290, %v2215
    %v2299 = vsel %vm2269, %v2291, %v2218
    %v2300 = vsel %vm2269, %v2292, %v2221
    %v2301 = vsel %vm2269, %v2293, %v2224
    %v2302 = vsel %vm2269, %v2294, %v2227
    %v2303 = vsel %vm2278, %v2295, %v2238
    %v2304 = vsel %vm2278, %v2296, %v2241
    %v2305 = vsel %vm2278, %v2297, %v2244
    %v2306 = vsel %vm2278, %v2298, %v2247
    %v2307 = vsel %vm2278, %v2299, %v2250
    %v2308 = vsel %vm2278, %v2300, %v2253
    %v2309 = vsel %vm2278, %v2301, %v2256
    %v2310 = vsel %vm2278, %v2302, %v2259
    %v2311 = vld [vmem:[%s9] sm:$0xf]
    %vm2312 = vcmask 31744
    %v2314 = vsel %vm2312, %v2279, 0
    %v2317 = vsel %vm2312, %v2280, 0
    %v2320 = vsel %vm2312, %v2281, 0
    %v2323 = vsel %vm2312, %v2282, 0
    %v2326 = vsel %vm2312, %v2283, 0
    %v2329 = vsel %vm2312, %v2284, 0
    %v2332 = vsel %vm2312, %v2285, 0
    %v2335 = vsel %vm2312, %v2286, 0
    %v2338 = vsel %vm2312, %v2303, 0
    %v2341 = vsel %vm2312, %v2304, 0
    %v2344 = vsel %vm2312, %v2305, 0
    %v2347 = vsel %vm2312, %v2306, 0
    %v2350 = vsel %vm2312, %v2307, 0
    %v2353 = vsel %vm2312, %v2308, 0
    %v2356 = vsel %vm2312, %v2309, 0
    %v2359 = vsel %vm2312, %v2310, 0
    %vm2361 = vcmask 1043456
    %v2363 = vsel %vm2361, %v2311, 0
    %2365 = vmatprep.subr.mxu0 0.0
    %2366 = vmatpush1.msra.mxu0 0.0
    %2367 = vmatprep.subr.mxu0 0.0
    %2368 = vmatpush1.msra.mxu0 0.0
    %2369 = vmatprep.subr.mxu0 0.0
    %2370 = vmatpush1.msra.mxu0 0.0
    %2371 = vmatprep.subr.mxu0 0.0
    %2372 = vmatpush1.msra.mxu0 0.0
    %2373 = vmatprep.subr.mxu0 0.0
    %2374 = vmatpush1.msra.mxu0 0.0
    %2375 = vmatprep.subr.mxu0 0.0
    %2376 = vmatpush1.msra.mxu0 0.0
    %2377 = vmatprep.subr.mxu0 0.0
    %2378 = vmatpush1.msra.mxu0 0.0
    %2379 = vmatprep.subr.mxu0 0.0
    %2380 = vmatpush1.msra.mxu0 0.0
    %2381 = vmatprep.subr.mxu0 0.0
    %2382 = vmatpush1.msra.mxu0 0.0
    %2383 = vmatprep.subr.mxu0 0.0
    %2384 = vmatpush1.msra.mxu0 0.0
    %2385 = vmatprep.subr.mxu0 0.0
    %2386 = vmatpush1.msra.mxu0 0.0
    %2387 = vmatprep.subr.mxu0 0.0
    %2388 = vmatpush1.msra.mxu0 0.0
    %2389 = vmatprep.subr.mxu0 0.0
    %2390 = vmatpush1.msra.mxu0 0.0
    %2391 = vmatprep.subr.mxu0 0.0
    %2392 = vmatpush1.msra.mxu0 0.0
    %2393 = vmatprep.subr.mxu0 0.0
    %2394 = vmatpush1.msra.mxu0 0.0
    %2395 = vmatprep.subr.mxu0 0.0
    %2396 = vmatpush1.msra.mxu0 %v2363
    %2397 = vmatprep.subr.mxu0 0.0
    %2398 = vmatpush2.msra.mxu0 0.0
    %2399 = vmatprep.subr.mxu0 0.0
    %2400 = vmatpush2.msra.mxu0 0.0
    %2401 = vmatprep.subr.mxu0 0.0
    %2402 = vmatpush2.msra.mxu0 0.0
    %2403 = vmatprep.subr.mxu0 0.0
    %2404 = vmatpush2.msra.mxu0 0.0
    %2405 = vmatprep.subr.mxu0 0.0
    %2406 = vmatpush2.msra.mxu0 0.0
    %2407 = vmatprep.subr.mxu0 0.0
    %2408 = vmatpush2.msra.mxu0 0.0
    %2409 = vmatprep.subr.mxu0 0.0
    %2410 = vmatpush2.msra.mxu0 0.0
    %2411 = vmatprep.subr.mxu0 0.0
    %2412 = vmatpush2.msra.mxu0 0.0
    %2413 = vmatprep.subr.mxu0 0.0
    %2414 = vmatpush2.msra.mxu0 0.0
    %2415 = vmatprep.subr.mxu0 0.0
    %2416 = vmatpush2.msra.mxu0 0.0
    %2417 = vmatprep.subr.mxu0 0.0
    %2418 = vmatpush2.msra.mxu0 0.0
    %2419 = vmatprep.subr.mxu0 0.0
    %2420 = vmatpush2.msra.mxu0 0.0
    %2421 = vmatprep.subr.mxu0 0.0
    %2422 = vmatpush2.msra.mxu0 0.0
    %2423 = vmatprep.subr.mxu0 0.0
    %2424 = vmatpush2.msra.mxu0 0.0
    %2425 = vmatprep.subr.mxu0 0.0
    %2426 = vmatpush2.msra.mxu0 0.0
    %2427 = vmatprep.subr.mxu0 0.0
    %2428 = vmatpush2.msra.mxu0 0.0
    %2429 = vmatprep.mubr.f32.mxu0 0.0
    %2430 = vmatmul.mubr.f32.gmra.mxu0 %v2314
    %v2431 = vpop.f32.mrf.mxu0
    %v2432 = vadd.f32 0.0, %v2431
    %v2433 = vpop.f32.mrf.mxu0
    %2434 = vmatprep.mubr.f32.mxu0 0.0
    %2435 = vmatmul.mubr.f32.gmra.mxu0 %v2317
    %v2436 = vpop.f32.mrf.mxu0
    %v2437 = vadd.f32 0.0, %v2436
    %v2438 = vpop.f32.mrf.mxu0
    %2439 = vmatprep.mubr.f32.mxu0 0.0
    %2440 = vmatmul.mubr.f32.gmra.mxu0 %v2320
    %v2441 = vpop.f32.mrf.mxu0
    %v2442 = vadd.f32 0.0, %v2441
    %v2443 = vpop.f32.mrf.mxu0
    %2444 = vmatprep.mubr.f32.mxu0 0.0
    %2445 = vmatmul.mubr.f32.gmra.mxu0 %v2323
    %v2446 = vpop.f32.mrf.mxu0
    %v2447 = vadd.f32 0.0, %v2446
    %v2448 = vpop.f32.mrf.mxu0
    %2449 = vmatprep.mubr.f32.mxu0 0.0
    %2450 = vmatmul.mubr.f32.gmra.mxu0 %v2326
    %v2451 = vpop.f32.mrf.mxu0
    %v2452 = vadd.f32 0.0, %v2451
    %v2453 = vpop.f32.mrf.mxu0
    %2454 = vmatprep.mubr.f32.mxu0 0.0
    %2455 = vmatmul.mubr.f32.gmra.mxu0 %v2329
    %v2456 = vpop.f32.mrf.mxu0
    %v2457 = vadd.f32 0.0, %v2456
    %v2458 = vpop.f32.mrf.mxu0
    %2459 = vmatprep.mubr.f32.mxu0 0.0
    %2460 = vmatmul.mubr.f32.gmra.mxu0 %v2332
    %v2461 = vpop.f32.mrf.mxu0
    %v2462 = vadd.f32 0.0, %v2461
    %v2463 = vpop.f32.mrf.mxu0
    %2464 = vmatprep.mubr.f32.mxu0 0.0
    %2465 = vmatmul.mubr.f32.gmra.mxu0 %v2335
    %v2466 = vpop.f32.mrf.mxu0
    %v2467 = vadd.f32 0.0, %v2466
    %v2468 = vpop.f32.mrf.mxu0
    %2469 = vmatprep.mubr.f32.mxu0 0.0
    %2470 = vmatmul.mubr.f32.gmra.mxu0 %v2338
    %v2471 = vpop.f32.mrf.mxu0
    %v2472 = vadd.f32 0.0, %v2471
    %v2473 = vpop.f32.mrf.mxu0
    %2474 = vmatprep.mubr.f32.mxu0 0.0
    %2475 = vmatmul.mubr.f32.gmra.mxu0 %v2341
    %v2476 = vpop.f32.mrf.mxu0
    %v2477 = vadd.f32 0.0, %v2476
    %v2478 = vpop.f32.mrf.mxu0
    %2479 = vmatprep.mubr.f32.mxu0 0.0
    %2480 = vmatmul.mubr.f32.gmra.mxu0 %v2344
    %v2481 = vpop.f32.mrf.mxu0
    %v2482 = vadd.f32 0.0, %v2481
    %v2483 = vpop.f32.mrf.mxu0
    %2484 = vmatprep.mubr.f32.mxu0 0.0
    %2485 = vmatmul.mubr.f32.gmra.mxu0 %v2347
    %v2486 = vpop.f32.mrf.mxu0
    %v2487 = vadd.f32 0.0, %v2486
    %v2488 = vpop.f32.mrf.mxu0
    %2489 = vmatprep.mubr.f32.mxu0 0.0
    %2490 = vmatmul.mubr.f32.gmra.mxu0 %v2350
    %v2491 = vpop.f32.mrf.mxu0
    %v2492 = vadd.f32 0.0, %v2491
    %v2493 = vpop.f32.mrf.mxu0
    %2494 = vmatprep.mubr.f32.mxu0 0.0
    %2495 = vmatmul.mubr.f32.gmra.mxu0 %v2353
    %v2496 = vpop.f32.mrf.mxu0
    %v2497 = vadd.f32 0.0, %v2496
    %v2498 = vpop.f32.mrf.mxu0
    %2499 = vmatprep.mubr.f32.mxu0 0.0
    %2500 = vmatmul.mubr.f32.gmra.mxu0 %v2356
    %v2501 = vpop.f32.mrf.mxu0
    %v2502 = vadd.f32 0.0, %v2501
    %v2503 = vpop.f32.mrf.mxu0
    %2504 = vmatprep.mubr.f32.mxu0 0.0
    %2505 = vmatmul.mubr.f32.gmra.mxu0 %v2359
    %v2506 = vpop.f32.mrf.mxu0
    %v2507 = vadd.f32 0.0, %v2506
    %v2508 = vpop.f32.mrf.mxu0
    %2509 = vdwg.mxu0
    %v2510 = vld [vmem:[%s8] sm:$0x1]
    %v2511 = vld [vmem:[%s8 + $0x1] sm:$0x1]
    %v2512 = vld [vmem:[%s8 + $0x2] sm:$0x1]
    %v2513 = vld [vmem:[%s8 + $0x3] sm:$0x1]
    %v2518 = vlaneseq
    %v2519 = vshrl.u32 %v2518, 7
    %v2520 = vsub.s32 0, %v2519
    %v2521 = vrot.slane %v2510, %v2520
    %v2522 = vlaneseq
    %v2523 = vshrl.u32 %v2522, 7
    %v2524 = vsub.s32 0, %v2523
    %v2525 = vrot.slane %v2511, %v2524
    %v2526 = vlaneseq
    %v2527 = vshrl.u32 %v2526, 7
    %v2528 = vsub.s32 0, %v2527
    %v2529 = vrot.slane %v2512, %v2528
    %v2530 = vlaneseq
    %v2531 = vshrl.u32 %v2530, 7
    %v2532 = vsub.s32 0, %v2531
    %v2533 = vrot.slane %v2513, %v2532
    %2534 = vset.pattern.permute.xlu0 0
    %2535 = vperm.xlu0 %2534, %v2521
    %v2536 = vpop.permute.xlu0 %2535
    %2538 = vset.pattern.permute.xlu0 0
    %2539 = vperm.xlu0 %2538, %v2525
    %v2540 = vpop.permute.xlu0 %2539
    %2542 = vset.pattern.permute.xlu0 0
    %2543 = vperm.xlu0 %2542, %v2529
    %v2544 = vpop.permute.xlu0 %2543
    %2546 = vset.pattern.permute.xlu0 0
    %2547 = vperm.xlu0 %2546, %v2533
    %v2548 = vpop.permute.xlu0 %2547
    %v2550 = vadd.f32 %v2472, %v2536
    %v2551 = vadd.f32 %v2477, %v2536
    %v2552 = vadd.f32 %v2482, %v2540
    %v2553 = vadd.f32 %v2487, %v2540
    %v2554 = vadd.f32 %v2492, %v2544
    %v2555 = vadd.f32 %v2497, %v2544
    %v2556 = vadd.f32 %v2502, %v2548
    %v2557 = vadd.f32 %v2507, %v2548
    %v2558 = vxor.u32 %v2550, 2147483648
    %v2559 = vxor.u32 %v2551, 2147483648
    %v2560 = vxor.u32 %v2552, 2147483648
    %v2561 = vxor.u32 %v2553, 2147483648
    %v2562 = vxor.u32 %v2554, 2147483648
    %v2563 = vxor.u32 %v2555, 2147483648
    %v2564 = vxor.u32 %v2556, 2147483648
    %v2565 = vxor.u32 %v2557, 2147483648
    %v2566 = vmul.f32 %v2558, 1.442695
    %v2567 = vpow.pop %v2566
    %v2568 = vmul.f32 %v2559, 1.442695
    %v2569 = vpow.pop %v2568
    %v2570 = vmul.f32 %v2560, 1.442695
    %v2571 = vpow.pop %v2570
    %v2572 = vmul.f32 %v2561, 1.442695
    %v2573 = vpow.pop %v2572
    %v2574 = vmul.f32 %v2562, 1.442695
    %v2575 = vpow.pop %v2574
    %v2576 = vmul.f32 %v2563, 1.442695
    %v2577 = vpow.pop %v2576
    %v2578 = vmul.f32 %v2564, 1.442695
    %v2579 = vpow.pop %v2578
    %v2580 = vmul.f32 %v2565, 1.442695
    %v2581 = vpow.pop %v2580
    %v2582 = vadd.f32 %v2567, 1.0
    %v2583 = vadd.f32 %v2569, 1.0
    %v2584 = vadd.f32 %v2571, 1.0
    %v2585 = vadd.f32 %v2573, 1.0
    %v2586 = vadd.f32 %v2575, 1.0
    %v2587 = vadd.f32 %v2577, 1.0
    %v2588 = vadd.f32 %v2579, 1.0
    %v2589 = vadd.f32 %v2581, 1.0
    %v2590 = vrcp.pop %v2582
    %v2591 = vmul.f32 1.0, %v2590
    %v2592 = vrcp.pop %v2583
    %v2593 = vmul.f32 1.0, %v2592
    %v2594 = vrcp.pop %v2584
    %v2595 = vmul.f32 1.0, %v2594
    %v2596 = vrcp.pop %v2585
    %v2597 = vmul.f32 1.0, %v2596
    %v2598 = vrcp.pop %v2586
    %v2599 = vmul.f32 1.0, %v2598
    %v2600 = vrcp.pop %v2587
    %v2601 = vmul.f32 1.0, %v2600
    %v2602 = vrcp.pop %v2588
    %v2603 = vmul.f32 1.0, %v2602
    %v2604 = vrcp.pop %v2589
    %v2605 = vmul.f32 1.0, %v2604
    %v2606 = vmul.f32 %v2591, %v2432
    %v2607 = vmul.f32 %v2593, %v2437
    %v2608 = vmul.f32 %v2595, %v2442
    %v2609 = vmul.f32 %v2597, %v2447
    %v2610 = vmul.f32 %v2599, %v2452
    %v2611 = vmul.f32 %v2601, %v2457
    %v2612 = vmul.f32 %v2603, %v2462
    %v2613 = vmul.f32 %v2605, %v2467
    %v2614 = vadd.f32 %v1441, %v2606
    %v2615 = vadd.f32 %v1517, %v2607
    %v2616 = vadd.f32 %v1593, %v2608
    %v2617 = vadd.f32 %v1669, %v2609
    %v2618 = vadd.f32 %v1745, %v2610
    %v2619 = vadd.f32 %v1821, %v2611
    %v2620 = vadd.f32 %v1897, %v2612
    %v2621 = vadd.f32 %v1973, %v2613
    %2624 = vrot.lane.b32.xlu0 %v2616, 8
    %v2625 = vpop.permute.xlu0 %2624
    %2626 = vrot.lane.b32.xlu0 %v2617, 8
    %v2627 = vpop.permute.xlu0 %2626
    %2632 = vrot.lane.b32.xlu0 %v2618, 16
    %v2633 = vpop.permute.xlu0 %2632
    %2634 = vrot.lane.b32.xlu0 %v2619, 16
    %v2635 = vpop.permute.xlu0 %2634
    %2640 = vrot.lane.b32.xlu0 %v2620, 24
    %v2641 = vpop.permute.xlu0 %2640
    %2642 = vrot.lane.b32.xlu0 %v2621, 24
    %v2643 = vpop.permute.xlu0 %2642
    %v2646 = vsel %vm215, %v2614, %v2625
    %v2647 = vsel %vm215, %v2615, %v2627
    %vm2648 = vcmask 130048
    %v2649 = vsel %vm2648, %v2646, %v2633
    %v2650 = vsel %vm2648, %v2647, %v2635
    %vm2651 = vcmask 195584
    %v2652 = vsel %vm2651, %v2649, %v2641
    %v2653 = vsel %vm2651, %v2650, %v2643
    %2654 = vst.msk [vmem:[#allocation11] sm:$0xff] %vm117, %v2652
    %2655 = vst.msk [vmem:[#allocation11 + $0x8] sm:$0xff] %vm117, %v2653
    // Predicated region
    $region62: #{tpu_custom_call.1} parent=1 // pred_check
      _
    $region63: #{tpu_custom_call.1} parent=1 // pred_check_branch
      %2657 = sbr.rel (0) target = $region65
    $region64: #{tpu_custom_call.1} parent=1 // pred_region
      %s2659 = ssub.s32 256, 256
      %2660 = vsyncadd [#allocation4], %s2659
      %s2661 = sshll.u32 [#allocation11], 4
      %s2662 = int_to_ptr.vmem [resolvable:$true] %s2661
      %2667 = dma.vmem_to_hbm [thread:$0]  %s2662, 256, %s10, [#allocation4], 128, 128, 8
    $region65: #{tpu_custom_call.1} parent=1 // pred_fallthru
      _
    // Predicated region
    $region66: #{tpu_custom_call.1} parent=1 // pred_check
      _
    $region67: #{tpu_custom_call.1} parent=1 // pred_check_branch
      %2669 = sbr.rel (0) target = $region69
    $region68: #{tpu_custom_call.1} parent=1 // pred_region
      %2670 = dma.done [#allocation4], 256
    $region69: #{tpu_custom_call.1} parent=1 // pred_fallthru
      _
    %2671 = vsyncpa [#allocation3], 1
    %2672 = vsyncpa [#allocation6], 1
    %2673 = vsyncpa [#allocation9], 1
    %2674 = vsyncpa [#allocation4], 1

</llo_original>
